<compile_context>
chip_gen: v7x
topology: tpu7x:2x2x1
jax: 0.10.0
libtpu: 0.0.40
codegen_flags: <defaults>
</compile_context>

<pallas_src>
from functools import partial

import jax
import jax.numpy as jnp
from jax.experimental import pallas as pl
from jax.experimental.pallas import tpu as pltpu


# -----------------------------------------------------------------------------
# Kernel: one batch element per grid step.
#   xe_ref, xo_ref : (H, Wp, Cin)   even / odd W columns of the NHWC input
#   w1_ref         : (9, Cin,  Cout) tap-major folded conv1 weights
#   w2_ref         : (9, Cout, Cout) tap-major folded conv2 weights
#   b1_ref, b2_ref : (1, Cout) f32   folded biases
#   o_ref          : (Hp*Wp, Cout) f32
# -----------------------------------------------------------------------------
def _down_kernel(xe_ref, xo_ref, w1_ref, w2_ref, b1_ref, b2_ref, o_ref):
    f32 = jnp.float32
    hh, wp, _ = xe_ref.shape          # hh = H (pre-pool rows), wp = W // 2
    hp = hh // 2
    cout = w1_ref.shape[2]
    s = hp * wp

    # ---- MaxPool2d(2): W pairs were pre-split host-side (xe/xo); H pairs are
    #      folded with a free outer-dim reshape.  Pure VPU max, no MXU.
    def rowpool(v):                                    # (H, Wp, C) -> (Hp, Wp, C)
        v4 = v.reshape(hp, 2, wp, v.shape[-1])
        return jnp.maximum(v4[:, 0], v4[:, 1])

    pooled = jnp.maximum(rowpool(xe_ref[...]), rowpool(xo_ref[...]))  # (Hp,Wp,Cin)

    # ---- zero-padded spatial shifts (outer-dim / sublane-dim slices + concat)
    def shift_h(a, dh):                                # out[h] = a[h+dh]
        if dh == 0:
            return a
        z = jnp.zeros((1,) + a.shape[1:], a.dtype)
        if dh > 0:
            return jnp.concatenate([a[1:], z], axis=0)
        return jnp.concatenate([z, a[:-1]], axis=0)

    def shift_w(a, dw):                                # out[:, w] = a[:, w+dw]
        if dw == 0:
            return a
        z = jnp.zeros((a.shape[0], 1, a.shape[2]), a.dtype)
        if dw > 0:
            return jnp.concatenate([a[:, 1:], z], axis=1)
        return jnp.concatenate([z, a[:, :-1]], axis=1)

    # ---- 3x3 conv (pad=1) + folded-BN bias + ReLU:
    #      only the channel contraction hits the MXU (9 taps, f32 accumulation).
    def conv3x3_bn_relu(z3, w_ref, b_ref):
        cin_l = z3.shape[-1]
        acc = jnp.broadcast_to(b_ref[...], (s, w_ref.shape[2])).astype(f32)
        for dh in (-1, 0, 1):
            zh = shift_h(z3, dh)
            for dw in (-1, 0, 1):
                tap = 3 * (dh + 1) + (dw + 1)
                zs = shift_w(zh, dw).reshape(s, cin_l)          # free reshape
                acc = acc + jnp.dot(zs, w_ref[tap],
                                    preferred_element_type=f32)
        return jnp.maximum(acc, 0.0)       # ReLU; Dropout is identity (eval mode)

    h1 = conv3x3_bn_relu(pooled, w1_ref, b1_ref)                 # (S, Cout) f32
    h1m = h1.astype(w2_ref.dtype).reshape(hp, wp, cout)          # free reshape
    out = conv3x3_bn_relu(h1m, w2_ref, b2_ref)                   # (S, Cout) f32
    o_ref[...] = out.astype(o_ref.dtype)


# -----------------------------------------------------------------------------
# Host-side helpers
# -----------------------------------------------------------------------------
def _fold_bn(w, b, gamma, beta, mean, var, eps):
    """Fold inference-mode BatchNorm into conv weight / bias (exact affine)."""
    scale = gamma / jnp.sqrt(var + eps)
    return w * scale[:, None, None, None], (b - mean) * scale + beta


def _fold_bn_params(params, eps=1e-5):
    (w1, b1, g1, be1, rm1, rv1, w2, b2, g2, be2, rm2, rv2) = params
    f32 = jnp.float32
    w1e, b1e = _fold_bn(w1.astype(f32), b1.astype(f32), g1, be1, rm1, rv1, eps)
    w2e, b2e = _fold_bn(w2.astype(f32), b2.astype(f32), g2, be2, rm2, rv2, eps)
    return w1e, b1e, w2e, b2e


def _tap_major(w_eff, dtype):
    """(Cout, Cin, 3, 3) -> (9, Cin, Cout): tap index = 3*kh + kw."""
    cout, cin = w_eff.shape[0], w_eff.shape[1]
    return jnp.transpose(w_eff, (2, 3, 1, 0)).reshape(9, cin, cout).astype(dtype)


# -----------------------------------------------------------------------------
# Forward
# -----------------------------------------------------------------------------
@partial(jax.jit, static_argnames=("matmul_dtype",))
def down_forward(x, params, matmul_dtype=jnp.bfloat16):
    """Down block forward. x: (N, Cin, H, W) float32. Returns (N, Cout, H/2, W/2)."""
    n, cin, h, w = x.shape
    assert h % 2 == 0 and w % 2 == 0, "MaxPool2d(2) needs even spatial dims"
    hp, wp = h // 2, w // 2
    cout = params[0].shape[0]
    f32 = jnp.float32

    w1e, b1e, w2e, b2e = _fold_bn_params(params)
    w1k = _tap_major(w1e, matmul_dtype)                 # (9, Cin,  Cout)
    w2k = _tap_major(w2e, matmul_dtype)                 # (9, Cout, Cout)
    b1r = b1e.reshape(1, cout).astype(f32)
    b2r = b2e.reshape(1, cout).astype(f32)

    # One host-side relayout: NCHW -> NHWC (channels on lanes for the MXU
    # contraction), with the W even/odd split for the pool fused into the same
    # copy.  Activations are cast to matmul_dtype (halves DMA bytes for bf16).
    x_nhwc = jnp.transpose(x, (0, 2, 3, 1)).astype(matmul_dtype)   # (N, H, W, Cin)
    xe = x_nhwc[:, :, 0::2, :]                                     # (N, H, Wp, Cin)
    xo = x_nhwc[:, :, 1::2, :]

    out2d = pl.pallas_call(
        _down_kernel,
        out_shape=jax.ShapeDtypeStruct((n, hp * wp, cout), f32),
        grid_spec=pltpu.PrefetchScalarGridSpec(
            num_scalar_prefetch=0,
            grid=(n,),
            in_specs=[
                pl.BlockSpec((None, h, wp, cin), lambda i: (i, 0, 0, 0)),   # xe
                pl.BlockSpec((None, h, wp, cin), lambda i: (i, 0, 0, 0)),   # xo
                pl.BlockSpec((9, cin, cout), lambda i: (0, 0, 0)),          # w1
                pl.BlockSpec((9, cout, cout), lambda i: (0, 0, 0)),         # w2
                pl.BlockSpec((1, cout), lambda i: (0, 0)),                  # b1
                pl.BlockSpec((1, cout), lambda i: (0, 0)),                  # b2
            ],
            out_specs=pl.BlockSpec((None, hp * wp, cout), lambda i: (i, 0, 0)),
        ),
        compiler_params=pltpu.CompilerParams(
            dimension_semantics=("parallel",),
            vmem_limit_bytes=32 * 1024 * 1024,
        ),
    )(xe, xo, w1k, w2k, b1r, b2r)

    # (N, Hp*Wp, Cout) -> (N, Cout, Hp, Wp)  (host-side relayout back to NCHW)
    return jnp.transpose(out2d.reshape(n, hp, wp, cout), (0, 3, 1, 2))


# -----------------------------------------------------------------------------
# Parameter init (mimics nn.Conv2d / nn.BatchNorm2d parameter sets)
# -----------------------------------------------------------------------------
def init_down_params(key, in_channels, out_channels, dropout=0.1, dtype=jnp.float32):
    del dropout  # Dropout has no parameters and is identity in inference mode.
    ks = jax.random.split(key, 12)

    def conv_init(kw, kb, cin, cout):
        bound = 1.0 / jnp.sqrt(jnp.asarray(cin * 9, dtype))
        wgt = jax.random.uniform(kw, (cout, cin, 3, 3), dtype, -bound, bound)
        bia = jax.random.uniform(kb, (cout,), dtype, -bound, bound)
        return wgt, bia

    def bn_init(kg, kb, km, kv, c):
        gamma = jax.random.uniform(kg, (c,), dtype, 0.5, 1.5)
        beta = 0.1 * jax.random.normal(kb, (c,), dtype)
        mean = 0.1 * jax.random.normal(km, (c,), dtype)
        var = jax.random.uniform(kv, (c,), dtype, 0.5, 1.5)
        return gamma, beta, mean, var

    w1, b1 = conv_init(ks[0], ks[1], in_channels, out_channels)
    w2, b2 = conv_init(ks[2], ks[3], out_channels, out_channels)
    g1, be1, rm1, rv1 = bn_init(ks[4], ks[5], ks[6], ks[7], out_channels)
    g2, be2, rm2, rv2 = bn_init(ks[8], ks[9], ks[10], ks[11], out_channels)
    return (w1, b1, g1, be1, rm1, rv1, w2, b2, g2, be2, rm2, rv2)


# -----------------------------------------------------------------------------
# Pure-JAX references (same inference-mode semantics as the PyTorch module)
# -----------------------------------------------------------------------------
def _conv_bias_relu(y, wt, b):
    z = jax.lax.conv_general_dilated(
        y, wt, window_strides=(1, 1), padding=((1, 1), (1, 1)),
        dimension_numbers=("NCHW", "OIHW", "NCHW"),
        precision=jax.lax.Precision.HIGHEST)
    return jnp.maximum(z + b[None, :, None, None], 0.0)


def down_reference(x, params, eps=1e-5):
    """Exact f32 reference (BN with running stats, Dropout identity)."""
    (w1, b1, g1, be1, rm1, rv1, w2, b2, g2, be2, rm2, rv2) = params
    n, c, h, w = x.shape
    xp = x.reshape(n, c, h // 2, 2, w // 2, 2).max(axis=(3, 5))      # MaxPool2d(2)

    def conv_bn_relu(y, wt, b, gamma, beta, mean, var):
        z = jax.lax.conv_general_dilated(
            y, wt, window_strides=(1, 1), padding=((1, 1), (1, 1)),
            dimension_numbers=("NCHW", "OIHW", "NCHW"),
            precision=jax.lax.Precision.HIGHEST)
        z = z + b[None, :, None, None]
        z = (z - mean[None, :, None, None]) * (
            gamma[None, :, None, None] / jnp.sqrt(var[None, :, None, None] + eps)
        ) + beta[None, :, None, None]
        return jnp.maximum(z, 0.0)

    y = conv_bn_relu(xp, w1, b1, g1, be1, rm1, rv1)
    y = conv_bn_relu(y, w2, b2, g2, be2, rm2, rv2)
    return y


def down_reference_matched(x, params, matmul_dtype, eps=1e-5):
    """Reference that quantizes matmul operands exactly like the kernel."""
    w1e, b1e, w2e, b2e = _fold_bn_params(params, eps)
    q = lambda a: a.astype(matmul_dtype).astype(jnp.float32)
    n, c, h, w = x.shape
    xp = q(x).reshape(n, c, h // 2, 2, w // 2, 2).max(axis=(3, 5))
    h1 = _conv_bias_relu(xp, q(w1e), b1e)
    return _conv_bias_relu(q(h1), q(w2e), b2e)


if __name__ == "__main__":
    key = jax.random.PRNGKey(0)
    k_x, k_p = jax.random.split(key)

    N, Cin, H, W = 2, 4, 16, 16
    Cout = 8

    x = jax.random.normal(k_x, (N, Cin, H, W), dtype=jnp.float32)
    params = init_down_params(k_p, Cin, Cout, dropout=0.1)

    # Exact-precision path (f32 matmuls) vs. full f32 reference.
    y32 = jax.block_until_ready(down_forward(x, params, matmul_dtype=jnp.float32))
    y_ref = down_reference(x, params)
    assert y32.shape == (N, Cout, H // 2, W // 2), y32.shape
    assert jnp.allclose(y32, y_ref, atol=2e-3, rtol=2e-3), \
        float(jnp.max(jnp.abs(y32 - y_ref)))

    # Default fast path (bf16 matmul operands, f32 accumulation) vs. a
    # reference with the same quantization points.
    ybf = jax.block_until_ready(down_forward(x, params))
    y_ref_bf = down_reference_matched(x, params, jnp.bfloat16)
    assert ybf.shape == (N, Cout, H // 2, W // 2), ybf.shape
    assert jnp.allclose(ybf, y_ref_bf, atol=3e-3, rtol=3e-3), \
        float(jnp.max(jnp.abs(ybf - y_ref_bf)))

    print("KERNEL_OK")
</pallas_src>

<mosaic_0001>
module attributes {stable_mosaic.version = 11 : i64} {
  func.func @_down_kernel(%arg0: i32, %arg1: memref<1x16x8x4xf32, #tpu.memory_space<vmem>>, %arg2: memref<1x16x8x4xf32, #tpu.memory_space<vmem>>, %arg3: memref<9x4x8xf32, #tpu.memory_space<vmem>>, %arg4: memref<9x8x8xf32, #tpu.memory_space<vmem>>, %arg5: memref<1x8xf32, #tpu.memory_space<vmem>>, %arg6: memref<1x8xf32, #tpu.memory_space<vmem>>, %arg7: memref<1x64x8xf32, #tpu.memory_space<vmem>>) attributes {dimension_semantics = [#tpu.dimension_semantics<parallel>], iteration_bounds = array<i64: 2>, scalar_prefetch = 0 : i64, scratch_operands = 0 : i64, tpu.core_type = #tpu.core_type<tc>, window_params = [{transform_indices = @transform_0, window_bounds = array<i64: 1, 16, 8, 4>}, {transform_indices = @transform_1, window_bounds = array<i64: 1, 16, 8, 4>}, {pipeline_mode = #tpu.pipeline_mode<synchronous>, transform_indices = @transform_2, window_bounds = array<i64: 9, 4, 8>}, {pipeline_mode = #tpu.pipeline_mode<synchronous>, transform_indices = @transform_3, window_bounds = array<i64: 9, 8, 8>}, {pipeline_mode = #tpu.pipeline_mode<synchronous>, transform_indices = @transform_4, window_bounds = array<i64: 1, 8>}, {pipeline_mode = #tpu.pipeline_mode<synchronous>, transform_indices = @transform_5, window_bounds = array<i64: 1, 8>}, {transform_indices = @transform_6, window_bounds = array<i64: 1, 64, 8>}]} {
    %c0 = arith.constant 0 : index
    %c0_0 = arith.constant 0 : index
    %c0_1 = arith.constant 0 : index
    %c0_2 = arith.constant 0 : index
    %0 = vector.load %arg1[%c0, %c0_0, %c0_1, %c0_2] : memref<1x16x8x4xf32, #tpu.memory_space<vmem>>, vector<1x16x8x4xf32>
    %1 = vector.shape_cast %0 : vector<1x16x8x4xf32> to vector<16x8x4xf32>
    %2 = vector.shape_cast %1 : vector<16x8x4xf32> to vector<8x2x8x4xf32>
    %3 = vector.extract_strided_slice %2 {offsets = [0, 0, 0, 0], sizes = [8, 1, 8, 4], strides = [1, 1, 1, 1]} : vector<8x2x8x4xf32> to vector<8x1x8x4xf32>
    %4 = vector.shape_cast %3 : vector<8x1x8x4xf32> to vector<8x8x4xf32>
    %5 = vector.extract_strided_slice %2 {offsets = [0, 1, 0, 0], sizes = [8, 1, 8, 4], strides = [1, 1, 1, 1]} : vector<8x2x8x4xf32> to vector<8x1x8x4xf32>
    %6 = vector.shape_cast %5 : vector<8x1x8x4xf32> to vector<8x8x4xf32>
    %7 = arith.maximumf %4, %6 : vector<8x8x4xf32>
    %c0_3 = arith.constant 0 : index
    %c0_4 = arith.constant 0 : index
    %c0_5 = arith.constant 0 : index
    %c0_6 = arith.constant 0 : index
    %8 = vector.load %arg2[%c0_3, %c0_4, %c0_5, %c0_6] : memref<1x16x8x4xf32, #tpu.memory_space<vmem>>, vector<1x16x8x4xf32>
    %9 = vector.shape_cast %8 : vector<1x16x8x4xf32> to vector<16x8x4xf32>
    %10 = vector.shape_cast %9 : vector<16x8x4xf32> to vector<8x2x8x4xf32>
    %11 = vector.extract_strided_slice %10 {offsets = [0, 0, 0, 0], sizes = [8, 1, 8, 4], strides = [1, 1, 1, 1]} : vector<8x2x8x4xf32> to vector<8x1x8x4xf32>
    %12 = vector.shape_cast %11 : vector<8x1x8x4xf32> to vector<8x8x4xf32>
    %13 = vector.extract_strided_slice %10 {offsets = [0, 1, 0, 0], sizes = [8, 1, 8, 4], strides = [1, 1, 1, 1]} : vector<8x2x8x4xf32> to vector<8x1x8x4xf32>
    %14 = vector.shape_cast %13 : vector<8x1x8x4xf32> to vector<8x8x4xf32>
    %15 = arith.maximumf %12, %14 : vector<8x8x4xf32>
    %16 = arith.maximumf %7, %15 : vector<8x8x4xf32>
    %c0_7 = arith.constant 0 : index
    %c0_8 = arith.constant 0 : index
    %17 = vector.load %arg5[%c0_7, %c0_8] : memref<1x8xf32, #tpu.memory_space<vmem>>, vector<1x8xf32>
    %18 = vector.shape_cast %17 : vector<1x8xf32> to vector<1x8xf32>
    %19 = vector.broadcast %18 : vector<1x8xf32> to vector<64x8xf32>
    %cst = arith.constant 0.000000e+00 : f32
    %20 = vector.broadcast %cst : f32 to vector<1x8x4xf32>
    %21 = vector.extract_strided_slice %16 {offsets = [0, 0, 0], sizes = [7, 8, 4], strides = [1, 1, 1]} : vector<8x8x4xf32> to vector<7x8x4xf32>
    %22 = tpu.concatenate %20, %21 in 0 : vector<1x8x4xf32>, vector<7x8x4xf32> -> vector<8x8x4xf32>
    %cst_9 = arith.constant 0.000000e+00 : f32
    %23 = vector.broadcast %cst_9 : f32 to vector<8x1x4xf32>
    %24 = vector.extract_strided_slice %22 {offsets = [0, 0, 0], sizes = [8, 7, 4], strides = [1, 1, 1]} : vector<8x8x4xf32> to vector<8x7x4xf32>
    %25 = tpu.concatenate %23, %24 in 1 : vector<8x1x4xf32>, vector<8x7x4xf32> -> vector<8x8x4xf32>
    %26 = vector.shape_cast %25 : vector<8x8x4xf32> to vector<64x4xf32>
    %c0_10 = arith.constant 0 : index
    %c0_11 = arith.constant 0 : index
    %c0_12 = arith.constant 0 : index
    %27 = vector.load %arg3[%c0_10, %c0_11, %c0_12] : memref<9x4x8xf32, #tpu.memory_space<vmem>>, vector<1x4x8xf32>
    %28 = vector.shape_cast %27 : vector<1x4x8xf32> to vector<4x8xf32>
    %cst_13 = arith.constant dense<0.000000e+00> : vector<64x8xf32>
    %29 = tpu.matmul %26, %28, %cst_13 {dimension_numbers = #tpu.dot_dimension_numbers<[1], [0], [0], [1], [0, 0, 1, 1], [], []>} : vector<64x4xf32>, vector<4x8xf32>, vector<64x8xf32> -> vector<64x8xf32>
    %30 = arith.addf %19, %29 : vector<64x8xf32>
    %31 = vector.shape_cast %22 : vector<8x8x4xf32> to vector<64x4xf32>
    %c1 = arith.constant 1 : index
    %c0_14 = arith.constant 0 : index
    %c0_15 = arith.constant 0 : index
    %32 = vector.load %arg3[%c1, %c0_14, %c0_15] : memref<9x4x8xf32, #tpu.memory_space<vmem>>, vector<1x4x8xf32>
    %33 = vector.shape_cast %32 : vector<1x4x8xf32> to vector<4x8xf32>
    %cst_16 = arith.constant dense<0.000000e+00> : vector<64x8xf32>
    %34 = tpu.matmul %31, %33, %cst_16 {dimension_numbers = #tpu.dot_dimension_numbers<[1], [0], [0], [1], [0, 0, 1, 1], [], []>} : vector<64x4xf32>, vector<4x8xf32>, vector<64x8xf32> -> vector<64x8xf32>
    %35 = arith.addf %30, %34 : vector<64x8xf32>
    %cst_17 = arith.constant 0.000000e+00 : f32
    %36 = vector.broadcast %cst_17 : f32 to vector<8x1x4xf32>
    %37 = vector.extract_strided_slice %22 {offsets = [0, 1, 0], sizes = [8, 7, 4], strides = [1, 1, 1]} : vector<8x8x4xf32> to vector<8x7x4xf32>
    %38 = tpu.concatenate %37, %36 in 1 : vector<8x7x4xf32>, vector<8x1x4xf32> -> vector<8x8x4xf32>
    %39 = vector.shape_cast %38 : vector<8x8x4xf32> to vector<64x4xf32>
    %c2 = arith.constant 2 : index
    %c0_18 = arith.constant 0 : index
    %c0_19 = arith.constant 0 : index
    %40 = vector.load %arg3[%c2, %c0_18, %c0_19] : memref<9x4x8xf32, #tpu.memory_space<vmem>>, vector<1x4x8xf32>
    %41 = vector.shape_cast %40 : vector<1x4x8xf32> to vector<4x8xf32>
    %cst_20 = arith.constant dense<0.000000e+00> : vector<64x8xf32>
    %42 = tpu.matmul %39, %41, %cst_20 {dimension_numbers = #tpu.dot_dimension_numbers<[1], [0], [0], [1], [0, 0, 1, 1], [], []>} : vector<64x4xf32>, vector<4x8xf32>, vector<64x8xf32> -> vector<64x8xf32>
    %43 = arith.addf %35, %42 : vector<64x8xf32>
    %cst_21 = arith.constant 0.000000e+00 : f32
    %44 = vector.broadcast %cst_21 : f32 to vector<8x1x4xf32>
    %45 = vector.extract_strided_slice %16 {offsets = [0, 0, 0], sizes = [8, 7, 4], strides = [1, 1, 1]} : vector<8x8x4xf32> to vector<8x7x4xf32>
    %46 = tpu.concatenate %44, %45 in 1 : vector<8x1x4xf32>, vector<8x7x4xf32> -> vector<8x8x4xf32>
    %47 = vector.shape_cast %46 : vector<8x8x4xf32> to vector<64x4xf32>
    %c3 = arith.constant 3 : index
    %c0_22 = arith.constant 0 : index
    %c0_23 = arith.constant 0 : index
    %48 = vector.load %arg3[%c3, %c0_22, %c0_23] : memref<9x4x8xf32, #tpu.memory_space<vmem>>, vector<1x4x8xf32>
    %49 = vector.shape_cast %48 : vector<1x4x8xf32> to vector<4x8xf32>
    %cst_24 = arith.constant dense<0.000000e+00> : vector<64x8xf32>
    %50 = tpu.matmul %47, %49, %cst_24 {dimension_numbers = #tpu.dot_dimension_numbers<[1], [0], [0], [1], [0, 0, 1, 1], [], []>} : vector<64x4xf32>, vector<4x8xf32>, vector<64x8xf32> -> vector<64x8xf32>
    %51 = arith.addf %43, %50 : vector<64x8xf32>
    %52 = vector.shape_cast %16 : vector<8x8x4xf32> to vector<64x4xf32>
    %c4 = arith.constant 4 : index
    %c0_25 = arith.constant 0 : index
    %c0_26 = arith.constant 0 : index
    %53 = vector.load %arg3[%c4, %c0_25, %c0_26] : memref<9x4x8xf32, #tpu.memory_space<vmem>>, vector<1x4x8xf32>
    %54 = vector.shape_cast %53 : vector<1x4x8xf32> to vector<4x8xf32>
    %cst_27 = arith.constant dense<0.000000e+00> : vector<64x8xf32>
    %55 = tpu.matmul %52, %54, %cst_27 {dimension_numbers = #tpu.dot_dimension_numbers<[1], [0], [0], [1], [0, 0, 1, 1], [], []>} : vector<64x4xf32>, vector<4x8xf32>, vector<64x8xf32> -> vector<64x8xf32>
    %56 = arith.addf %51, %55 : vector<64x8xf32>
    %cst_28 = arith.constant 0.000000e+00 : f32
    %57 = vector.broadcast %cst_28 : f32 to vector<8x1x4xf32>
    %58 = vector.extract_strided_slice %16 {offsets = [0, 1, 0], sizes = [8, 7, 4], strides = [1, 1, 1]} : vector<8x8x4xf32> to vector<8x7x4xf32>
    %59 = tpu.concatenate %58, %57 in 1 : vector<8x7x4xf32>, vector<8x1x4xf32> -> vector<8x8x4xf32>
    %60 = vector.shape_cast %59 : vector<8x8x4xf32> to vector<64x4xf32>
    %c5 = arith.constant 5 : index
    %c0_29 = arith.constant 0 : index
    %c0_30 = arith.constant 0 : index
    %61 = vector.load %arg3[%c5, %c0_29, %c0_30] : memref<9x4x8xf32, #tpu.memory_space<vmem>>, vector<1x4x8xf32>
    %62 = vector.shape_cast %61 : vector<1x4x8xf32> to vector<4x8xf32>
    %cst_31 = arith.constant dense<0.000000e+00> : vector<64x8xf32>
    %63 = tpu.matmul %60, %62, %cst_31 {dimension_numbers = #tpu.dot_dimension_numbers<[1], [0], [0], [1], [0, 0, 1, 1], [], []>} : vector<64x4xf32>, vector<4x8xf32>, vector<64x8xf32> -> vector<64x8xf32>
    %64 = arith.addf %56, %63 : vector<64x8xf32>
    %cst_32 = arith.constant 0.000000e+00 : f32
    %65 = vector.broadcast %cst_32 : f32 to vector<1x8x4xf32>
    %66 = vector.extract_strided_slice %16 {offsets = [1, 0, 0], sizes = [7, 8, 4], strides = [1, 1, 1]} : vector<8x8x4xf32> to vector<7x8x4xf32>
    %67 = tpu.concatenate %66, %65 in 0 : vector<7x8x4xf32>, vector<1x8x4xf32> -> vector<8x8x4xf32>
    %cst_33 = arith.constant 0.000000e+00 : f32
    %68 = vector.broadcast %cst_33 : f32 to vector<8x1x4xf32>
    %69 = vector.extract_strided_slice %67 {offsets = [0, 0, 0], sizes = [8, 7, 4], strides = [1, 1, 1]} : vector<8x8x4xf32> to vector<8x7x4xf32>
    %70 = tpu.concatenate %68, %69 in 1 : vector<8x1x4xf32>, vector<8x7x4xf32> -> vector<8x8x4xf32>
    %71 = vector.shape_cast %70 : vector<8x8x4xf32> to vector<64x4xf32>
    %c6 = arith.constant 6 : index
    %c0_34 = arith.constant 0 : index
    %c0_35 = arith.constant 0 : index
    %72 = vector.load %arg3[%c6, %c0_34, %c0_35] : memref<9x4x8xf32, #tpu.memory_space<vmem>>, vector<1x4x8xf32>
    %73 = vector.shape_cast %72 : vector<1x4x8xf32> to vector<4x8xf32>
    %cst_36 = arith.constant dense<0.000000e+00> : vector<64x8xf32>
    %74 = tpu.matmul %71, %73, %cst_36 {dimension_numbers = #tpu.dot_dimension_numbers<[1], [0], [0], [1], [0, 0, 1, 1], [], []>} : vector<64x4xf32>, vector<4x8xf32>, vector<64x8xf32> -> vector<64x8xf32>
    %75 = arith.addf %64, %74 : vector<64x8xf32>
    %76 = vector.shape_cast %67 : vector<8x8x4xf32> to vector<64x4xf32>
    %c7 = arith.constant 7 : index
    %c0_37 = arith.constant 0 : index
    %c0_38 = arith.constant 0 : index
    %77 = vector.load %arg3[%c7, %c0_37, %c0_38] : memref<9x4x8xf32, #tpu.memory_space<vmem>>, vector<1x4x8xf32>
    %78 = vector.shape_cast %77 : vector<1x4x8xf32> to vector<4x8xf32>
    %cst_39 = arith.constant dense<0.000000e+00> : vector<64x8xf32>
    %79 = tpu.matmul %76, %78, %cst_39 {dimension_numbers = #tpu.dot_dimension_numbers<[1], [0], [0], [1], [0, 0, 1, 1], [], []>} : vector<64x4xf32>, vector<4x8xf32>, vector<64x8xf32> -> vector<64x8xf32>
    %80 = arith.addf %75, %79 : vector<64x8xf32>
    %cst_40 = arith.constant 0.000000e+00 : f32
    %81 = vector.broadcast %cst_40 : f32 to vector<8x1x4xf32>
    %82 = vector.extract_strided_slice %67 {offsets = [0, 1, 0], sizes = [8, 7, 4], strides = [1, 1, 1]} : vector<8x8x4xf32> to vector<8x7x4xf32>
    %83 = tpu.concatenate %82, %81 in 1 : vector<8x7x4xf32>, vector<8x1x4xf32> -> vector<8x8x4xf32>
    %84 = vector.shape_cast %83 : vector<8x8x4xf32> to vector<64x4xf32>
    %c8 = arith.constant 8 : index
    %c0_41 = arith.constant 0 : index
    %c0_42 = arith.constant 0 : index
    %85 = vector.load %arg3[%c8, %c0_41, %c0_42] : memref<9x4x8xf32, #tpu.memory_space<vmem>>, vector<1x4x8xf32>
    %86 = vector.shape_cast %85 : vector<1x4x8xf32> to vector<4x8xf32>
    %cst_43 = arith.constant dense<0.000000e+00> : vector<64x8xf32>
    %87 = tpu.matmul %84, %86, %cst_43 {dimension_numbers = #tpu.dot_dimension_numbers<[1], [0], [0], [1], [0, 0, 1, 1], [], []>} : vector<64x4xf32>, vector<4x8xf32>, vector<64x8xf32> -> vector<64x8xf32>
    %88 = arith.addf %80, %87 : vector<64x8xf32>
    %cst_44 = arith.constant 0.000000e+00 : f32
    %89 = vector.broadcast %cst_44 : f32 to vector<64x8xf32>
    %90 = arith.maximumf %88, %89 : vector<64x8xf32>
    %91 = vector.shape_cast %90 : vector<64x8xf32> to vector<8x8x8xf32>
    %c0_45 = arith.constant 0 : index
    %c0_46 = arith.constant 0 : index
    %92 = vector.load %arg6[%c0_45, %c0_46] : memref<1x8xf32, #tpu.memory_space<vmem>>, vector<1x8xf32>
    %93 = vector.shape_cast %92 : vector<1x8xf32> to vector<1x8xf32>
    %94 = vector.broadcast %93 : vector<1x8xf32> to vector<64x8xf32>
    %cst_47 = arith.constant 0.000000e+00 : f32
    %95 = vector.broadcast %cst_47 : f32 to vector<1x8x8xf32>
    %96 = vector.extract_strided_slice %91 {offsets = [0, 0, 0], sizes = [7, 8, 8], strides = [1, 1, 1]} : vector<8x8x8xf32> to vector<7x8x8xf32>
    %97 = tpu.concatenate %95, %96 in 0 : vector<1x8x8xf32>, vector<7x8x8xf32> -> vector<8x8x8xf32>
    %cst_48 = arith.constant 0.000000e+00 : f32
    %98 = vector.broadcast %cst_48 : f32 to vector<8x1x8xf32>
    %99 = vector.extract_strided_slice %97 {offsets = [0, 0, 0], sizes = [8, 7, 8], strides = [1, 1, 1]} : vector<8x8x8xf32> to vector<8x7x8xf32>
    %100 = tpu.concatenate %98, %99 in 1 : vector<8x1x8xf32>, vector<8x7x8xf32> -> vector<8x8x8xf32>
    %101 = vector.shape_cast %100 : vector<8x8x8xf32> to vector<64x8xf32>
    %c0_49 = arith.constant 0 : index
    %c0_50 = arith.constant 0 : index
    %c0_51 = arith.constant 0 : index
    %102 = vector.load %arg4[%c0_49, %c0_50, %c0_51] : memref<9x8x8xf32, #tpu.memory_space<vmem>>, vector<1x8x8xf32>
    %103 = vector.shape_cast %102 : vector<1x8x8xf32> to vector<8x8xf32>
    %cst_52 = arith.constant dense<0.000000e+00> : vector<64x8xf32>
    %104 = tpu.matmul %101, %103, %cst_52 {dimension_numbers = #tpu.dot_dimension_numbers<[1], [0], [0], [1], [0, 0, 1, 1], [], []>} : vector<64x8xf32>, vector<8x8xf32>, vector<64x8xf32> -> vector<64x8xf32>
    %105 = arith.addf %94, %104 : vector<64x8xf32>
    %106 = vector.shape_cast %97 : vector<8x8x8xf32> to vector<64x8xf32>
    %c1_53 = arith.constant 1 : index
    %c0_54 = arith.constant 0 : index
    %c0_55 = arith.constant 0 : index
    %107 = vector.load %arg4[%c1_53, %c0_54, %c0_55] : memref<9x8x8xf32, #tpu.memory_space<vmem>>, vector<1x8x8xf32>
    %108 = vector.shape_cast %107 : vector<1x8x8xf32> to vector<8x8xf32>
    %cst_56 = arith.constant dense<0.000000e+00> : vector<64x8xf32>
    %109 = tpu.matmul %106, %108, %cst_56 {dimension_numbers = #tpu.dot_dimension_numbers<[1], [0], [0], [1], [0, 0, 1, 1], [], []>} : vector<64x8xf32>, vector<8x8xf32>, vector<64x8xf32> -> vector<64x8xf32>
    %110 = arith.addf %105, %109 : vector<64x8xf32>
    %cst_57 = arith.constant 0.000000e+00 : f32
    %111 = vector.broadcast %cst_57 : f32 to vector<8x1x8xf32>
    %112 = vector.extract_strided_slice %97 {offsets = [0, 1, 0], sizes = [8, 7, 8], strides = [1, 1, 1]} : vector<8x8x8xf32> to vector<8x7x8xf32>
    %113 = tpu.concatenate %112, %111 in 1 : vector<8x7x8xf32>, vector<8x1x8xf32> -> vector<8x8x8xf32>
    %114 = vector.shape_cast %113 : vector<8x8x8xf32> to vector<64x8xf32>
    %c2_58 = arith.constant 2 : index
    %c0_59 = arith.constant 0 : index
    %c0_60 = arith.constant 0 : index
    %115 = vector.load %arg4[%c2_58, %c0_59, %c0_60] : memref<9x8x8xf32, #tpu.memory_space<vmem>>, vector<1x8x8xf32>
    %116 = vector.shape_cast %115 : vector<1x8x8xf32> to vector<8x8xf32>
    %cst_61 = arith.constant dense<0.000000e+00> : vector<64x8xf32>
    %117 = tpu.matmul %114, %116, %cst_61 {dimension_numbers = #tpu.dot_dimension_numbers<[1], [0], [0], [1], [0, 0, 1, 1], [], []>} : vector<64x8xf32>, vector<8x8xf32>, vector<64x8xf32> -> vector<64x8xf32>
    %118 = arith.addf %110, %117 : vector<64x8xf32>
    %cst_62 = arith.constant 0.000000e+00 : f32
    %119 = vector.broadcast %cst_62 : f32 to vector<8x1x8xf32>
    %120 = vector.extract_strided_slice %91 {offsets = [0, 0, 0], sizes = [8, 7, 8], strides = [1, 1, 1]} : vector<8x8x8xf32> to vector<8x7x8xf32>
    %121 = tpu.concatenate %119, %120 in 1 : vector<8x1x8xf32>, vector<8x7x8xf32> -> vector<8x8x8xf32>
    %122 = vector.shape_cast %121 : vector<8x8x8xf32> to vector<64x8xf32>
    %c3_63 = arith.constant 3 : index
    %c0_64 = arith.constant 0 : index
    %c0_65 = arith.constant 0 : index
    %123 = vector.load %arg4[%c3_63, %c0_64, %c0_65] : memref<9x8x8xf32, #tpu.memory_space<vmem>>, vector<1x8x8xf32>
    %124 = vector.shape_cast %123 : vector<1x8x8xf32> to vector<8x8xf32>
    %cst_66 = arith.constant dense<0.000000e+00> : vector<64x8xf32>
    %125 = tpu.matmul %122, %124, %cst_66 {dimension_numbers = #tpu.dot_dimension_numbers<[1], [0], [0], [1], [0, 0, 1, 1], [], []>} : vector<64x8xf32>, vector<8x8xf32>, vector<64x8xf32> -> vector<64x8xf32>
    %126 = arith.addf %118, %125 : vector<64x8xf32>
    %127 = vector.shape_cast %91 : vector<8x8x8xf32> to vector<64x8xf32>
    %c4_67 = arith.constant 4 : index
    %c0_68 = arith.constant 0 : index
    %c0_69 = arith.constant 0 : index
    %128 = vector.load %arg4[%c4_67, %c0_68, %c0_69] : memref<9x8x8xf32, #tpu.memory_space<vmem>>, vector<1x8x8xf32>
    %129 = vector.shape_cast %128 : vector<1x8x8xf32> to vector<8x8xf32>
    %cst_70 = arith.constant dense<0.000000e+00> : vector<64x8xf32>
    %130 = tpu.matmul %127, %129, %cst_70 {dimension_numbers = #tpu.dot_dimension_numbers<[1], [0], [0], [1], [0, 0, 1, 1], [], []>} : vector<64x8xf32>, vector<8x8xf32>, vector<64x8xf32> -> vector<64x8xf32>
    %131 = arith.addf %126, %130 : vector<64x8xf32>
    %cst_71 = arith.constant 0.000000e+00 : f32
    %132 = vector.broadcast %cst_71 : f32 to vector<8x1x8xf32>
    %133 = vector.extract_strided_slice %91 {offsets = [0, 1, 0], sizes = [8, 7, 8], strides = [1, 1, 1]} : vector<8x8x8xf32> to vector<8x7x8xf32>
    %134 = tpu.concatenate %133, %132 in 1 : vector<8x7x8xf32>, vector<8x1x8xf32> -> vector<8x8x8xf32>
    %135 = vector.shape_cast %134 : vector<8x8x8xf32> to vector<64x8xf32>
    %c5_72 = arith.constant 5 : index
    %c0_73 = arith.constant 0 : index
    %c0_74 = arith.constant 0 : index
    %136 = vector.load %arg4[%c5_72, %c0_73, %c0_74] : memref<9x8x8xf32, #tpu.memory_space<vmem>>, vector<1x8x8xf32>
    %137 = vector.shape_cast %136 : vector<1x8x8xf32> to vector<8x8xf32>
    %cst_75 = arith.constant dense<0.000000e+00> : vector<64x8xf32>
    %138 = tpu.matmul %135, %137, %cst_75 {dimension_numbers = #tpu.dot_dimension_numbers<[1], [0], [0], [1], [0, 0, 1, 1], [], []>} : vector<64x8xf32>, vector<8x8xf32>, vector<64x8xf32> -> vector<64x8xf32>
    %139 = arith.addf %131, %138 : vector<64x8xf32>
    %cst_76 = arith.constant 0.000000e+00 : f32
    %140 = vector.broadcast %cst_76 : f32 to vector<1x8x8xf32>
    %141 = vector.extract_strided_slice %91 {offsets = [1, 0, 0], sizes = [7, 8, 8], strides = [1, 1, 1]} : vector<8x8x8xf32> to vector<7x8x8xf32>
    %142 = tpu.concatenate %141, %140 in 0 : vector<7x8x8xf32>, vector<1x8x8xf32> -> vector<8x8x8xf32>
    %cst_77 = arith.constant 0.000000e+00 : f32
    %143 = vector.broadcast %cst_77 : f32 to vector<8x1x8xf32>
    %144 = vector.extract_strided_slice %142 {offsets = [0, 0, 0], sizes = [8, 7, 8], strides = [1, 1, 1]} : vector<8x8x8xf32> to vector<8x7x8xf32>
    %145 = tpu.concatenate %143, %144 in 1 : vector<8x1x8xf32>, vector<8x7x8xf32> -> vector<8x8x8xf32>
    %146 = vector.shape_cast %145 : vector<8x8x8xf32> to vector<64x8xf32>
    %c6_78 = arith.constant 6 : index
    %c0_79 = arith.constant 0 : index
    %c0_80 = arith.constant 0 : index
    %147 = vector.load %arg4[%c6_78, %c0_79, %c0_80] : memref<9x8x8xf32, #tpu.memory_space<vmem>>, vector<1x8x8xf32>
    %148 = vector.shape_cast %147 : vector<1x8x8xf32> to vector<8x8xf32>
    %cst_81 = arith.constant dense<0.000000e+00> : vector<64x8xf32>
    %149 = tpu.matmul %146, %148, %cst_81 {dimension_numbers = #tpu.dot_dimension_numbers<[1], [0], [0], [1], [0, 0, 1, 1], [], []>} : vector<64x8xf32>, vector<8x8xf32>, vector<64x8xf32> -> vector<64x8xf32>
    %150 = arith.addf %139, %149 : vector<64x8xf32>
    %151 = vector.shape_cast %142 : vector<8x8x8xf32> to vector<64x8xf32>
    %c7_82 = arith.constant 7 : index
    %c0_83 = arith.constant 0 : index
    %c0_84 = arith.constant 0 : index
    %152 = vector.load %arg4[%c7_82, %c0_83, %c0_84] : memref<9x8x8xf32, #tpu.memory_space<vmem>>, vector<1x8x8xf32>
    %153 = vector.shape_cast %152 : vector<1x8x8xf32> to vector<8x8xf32>
    %cst_85 = arith.constant dense<0.000000e+00> : vector<64x8xf32>
    %154 = tpu.matmul %151, %153, %cst_85 {dimension_numbers = #tpu.dot_dimension_numbers<[1], [0], [0], [1], [0, 0, 1, 1], [], []>} : vector<64x8xf32>, vector<8x8xf32>, vector<64x8xf32> -> vector<64x8xf32>
    %155 = arith.addf %150, %154 : vector<64x8xf32>
    %cst_86 = arith.constant 0.000000e+00 : f32
    %156 = vector.broadcast %cst_86 : f32 to vector<8x1x8xf32>
    %157 = vector.extract_strided_slice %142 {offsets = [0, 1, 0], sizes = [8, 7, 8], strides = [1, 1, 1]} : vector<8x8x8xf32> to vector<8x7x8xf32>
    %158 = tpu.concatenate %157, %156 in 1 : vector<8x7x8xf32>, vector<8x1x8xf32> -> vector<8x8x8xf32>
    %159 = vector.shape_cast %158 : vector<8x8x8xf32> to vector<64x8xf32>
    %c8_87 = arith.constant 8 : index
    %c0_88 = arith.constant 0 : index
    %c0_89 = arith.constant 0 : index
    %160 = vector.load %arg4[%c8_87, %c0_88, %c0_89] : memref<9x8x8xf32, #tpu.memory_space<vmem>>, vector<1x8x8xf32>
    %161 = vector.shape_cast %160 : vector<1x8x8xf32> to vector<8x8xf32>
    %cst_90 = arith.constant dense<0.000000e+00> : vector<64x8xf32>
    %162 = tpu.matmul %159, %161, %cst_90 {dimension_numbers = #tpu.dot_dimension_numbers<[1], [0], [0], [1], [0, 0, 1, 1], [], []>} : vector<64x8xf32>, vector<8x8xf32>, vector<64x8xf32> -> vector<64x8xf32>
    %163 = arith.addf %155, %162 : vector<64x8xf32>
    %cst_91 = arith.constant 0.000000e+00 : f32
    %164 = vector.broadcast %cst_91 : f32 to vector<64x8xf32>
    %165 = arith.maximumf %163, %164 : vector<64x8xf32>
    %c0_92 = arith.constant 0 : index
    %c0_93 = arith.constant 0 : index
    %c0_94 = arith.constant 0 : index
    %166 = vector.load %arg7[%c0_92, %c0_93, %c0_94] : memref<1x64x8xf32, #tpu.memory_space<vmem>>, vector<1x64x8xf32>
    %167 = vector.shape_cast %166 : vector<1x64x8xf32> to vector<64x8xf32>
    %168 = vector.shape_cast %165 : vector<64x8xf32> to vector<1x64x8xf32>
    tpu.vector_store %arg7[%c0_92, %c0_93, %c0_94], %168 {strides = array<i32>} : memref<1x64x8xf32, #tpu.memory_space<vmem>>, vector<1x64x8xf32>,
    return
  }
  func.func @transform_0(%arg0: i32) -> (i32, i32, i32, i32) {
    %c0_i32 = arith.constant 0 : i32
    %c0_i32_0 = arith.constant 0 : i32
    %c0_i32_1 = arith.constant 0 : i32
    %c0_i32_2 = arith.constant 0 : i32
    return %arg0, %c0_i32, %c0_i32_0, %c0_i32_1 : i32, i32, i32, i32
  }
  func.func @transform_1(%arg0: i32) -> (i32, i32, i32, i32) {
    %c0_i32 = arith.constant 0 : i32
    %c0_i32_0 = arith.constant 0 : i32
    %c0_i32_1 = arith.constant 0 : i32
    %c0_i32_2 = arith.constant 0 : i32
    return %arg0, %c0_i32, %c0_i32_0, %c0_i32_1 : i32, i32, i32, i32
  }
  func.func @transform_2(%arg0: i32) -> (i32, i32, i32) {
    %c0_i32 = arith.constant 0 : i32
    %c0_i32_0 = arith.constant 0 : i32
    %c0_i32_1 = arith.constant 0 : i32
    %c0_i32_2 = arith.constant 0 : i32
    return %c0_i32, %c0_i32_0, %c0_i32_1 : i32, i32, i32
  }
  func.func @transform_3(%arg0: i32) -> (i32, i32, i32) {
    %c0_i32 = arith.constant 0 : i32
    %c0_i32_0 = arith.constant 0 : i32
    %c0_i32_1 = arith.constant 0 : i32
    %c0_i32_2 = arith.constant 0 : i32
    return %c0_i32, %c0_i32_0, %c0_i32_1 : i32, i32, i32
  }
  func.func @transform_4(%arg0: i32) -> (i32, i32) {
    %c0_i32 = arith.constant 0 : i32
    %c0_i32_0 = arith.constant 0 : i32
    %c0_i32_1 = arith.constant 0 : i32
    return %c0_i32, %c0_i32_0 : i32, i32
  }
  func.func @transform_5(%arg0: i32) -> (i32, i32) {
    %c0_i32 = arith.constant 0 : i32
    %c0_i32_0 = arith.constant 0 : i32
    %c0_i32_1 = arith.constant 0 : i32
    return %c0_i32, %c0_i32_0 : i32, i32
  }
  func.func @transform_6(%arg0: i32) -> (i32, i32, i32) {
    %c0_i32 = arith.constant 0 : i32
    %c0_i32_0 = arith.constant 0 : i32
    %c0_i32_1 = arith.constant 0 : i32
    return %arg0, %c0_i32, %c0_i32_0 : i32, i32, i32
  }
}

</mosaic_0001>

<llo_original>
// kernel: down_forward.1
$region0: #{down_forward.1}
  #allocation0 [shape = 'u32[]', space=smem, size = 0x4, offset = 0x4, fixed_abs, tag = 'smem constant byte address 0x4 - core index']
  #allocation1 [shape = 'u32[144,128]{1,0:T(1,128)}', space=vmem, size = 0x12000, scoped, tag = 'internal scratch']
  %s0 = inlined_call_operand.vmem [shape: f32[2,16,8,4], index: 0, kind: input, shape index: {}]
  %s1 = inlined_call_operand.vmem [shape: f32[2,16,8,4], index: 1, kind: input, shape index: {}]
  %s2 = inlined_call_operand.vmem [shape: f32[9,4,8], index: 2, kind: input, shape index: {}]
  %s3 = inlined_call_operand.vmem [shape: f32[9,8,8], index: 3, kind: input, shape index: {}]
  %s4 = inlined_call_operand.vmem [shape: f32[1,8], index: 4, kind: input, shape index: {}]
  %s5 = inlined_call_operand.vmem [shape: f32[1,8], index: 5, kind: input, shape index: {}]
  %s6 = inlined_call_operand.vmem [shape: f32[2,64,8], index: 6, kind: output, shape index: {}]
  %s7 = sld [smem:[#allocation0]]
  $region57: #{down_forward.1} parent=0
    _
  %s9 = ssub.s32 1, %s7
  %s10 = scalar_select 0, %s9, %s7
  loop: start=0, step=1, limit=4
  $region2: #{down_forward.1} parent=0 // loop_pre_header
    _
  $region3: #{down_forward.1} parent=0 // loop_header
    %s12 = sphi 0, %s16
    %p13 = scmp.ge.s32.totalorder %s12, 4
    %s22 = sphi 0, %s24
    %s25 = sphi 0, %s22
    %s26 = sphi 0, %s25
    %s42 = sphi 0, %s26
    %s48 = sphi 0, %s50
    %s51 = sphi 0, %s48
    %s52 = sphi 0, %s51
    %s68 = sphi 0, %s52
    %s72 = sphi 0, %s72
    %s74 = sphi 0, %s72
    %s75 = sphi 0, %s74
    %s89 = sphi 0, %s75
    %s93 = sphi 0, %s93
    %s95 = sphi 0, %s93
    %s96 = sphi 0, %s95
    %s110 = sphi 0, %s96
    %s114 = sphi 0, %s114
    %s116 = sphi 0, %s114
    %s117 = sphi 0, %s116
    %s131 = sphi 0, %s117
    %s135 = sphi 0, %s135
    %s137 = sphi 0, %s135
    %s138 = sphi 0, %s137
    %s152 = sphi 0, %s138
    %s158 = sphi 0, %s160
    %s161 = sphi 0, %s158
    %s162 = sphi 0, %s161
    %s178 = sphi 0, %s162
  $region4: #{down_forward.1} parent=0 // loop_header_branch
    %15 = sbr.rel (%p13) target = $region8
  $region5: #{down_forward.1} parent=0 // loop_body
    %s17 = ssub.s32 %s12, 1
    %s18 = ssub.s32 %s12, 2
    %s19 = sadd.s32 %s12, 1
    %s20 = ssub.s32 %s12, %s19
    %p21 = scmp.eq.s32.totalorder %s20, 0
    %s23 = sadd.s32 %s22, 1
    %s24 = scalar_select %p21, %s22, %s23
    %p27 = pneg %p21
    %p28 = scmp.eq.s32.totalorder %s12, 1
    %p29 = por %p27, %p28
    %p30 = scmp.ne.s32.totalorder %s22, %s25
    %p31 = scmp.eq.s32.totalorder %s12, 0
    %p32 = por %p30, %p31
    %p33 = scmp.ne.s32.totalorder %s22, %s25
    %p34 = scmp.eq.s32.totalorder %s17, 1
    %p35 = por %p33, %p34
    %p36 = scmp.ne.s32.totalorder %s25, %s26
    %p37 = scmp.eq.s32.totalorder %s17, 0
    %p38 = por %p36, %p37
    %p39 = scmp.ne.s32.totalorder %s25, %s26
    %p40 = scmp.eq.s32.totalorder %s18, 1
    %p41 = por %p39, %p40
    %p43 = scmp.ne.s32.totalorder %s26, %s42
    %p44 = scmp.eq.s32.totalorder %s18, 0
    %p45 = por %p43, %p44
    %s46 = ssub.s32 %s12, %s19
    %p47 = scmp.eq.s32.totalorder %s46, 0
    %s49 = sadd.s32 %s48, 1
    %s50 = scalar_select %p47, %s48, %s49
    %p53 = pneg %p47
    %p54 = scmp.eq.s32.totalorder %s12, 1
    %p55 = por %p53, %p54
    %p56 = scmp.ne.s32.totalorder %s48, %s51
    %p57 = scmp.eq.s32.totalorder %s12, 0
    %p58 = por %p56, %p57
    %p59 = scmp.ne.s32.totalorder %s48, %s51
    %p60 = scmp.eq.s32.totalorder %s17, 1
    %p61 = por %p59, %p60
    %p62 = scmp.ne.s32.totalorder %s51, %s52
    %p63 = scmp.eq.s32.totalorder %s17, 0
    %p64 = por %p62, %p63
    %p65 = scmp.ne.s32.totalorder %s51, %s52
    %p66 = scmp.eq.s32.totalorder %s18, 1
    %p67 = por %p65, %p66
    %p69 = scmp.ne.s32.totalorder %s52, %s68
    %p70 = scmp.eq.s32.totalorder %s18, 0
    %p71 = por %p69, %p70
    %s73 = sadd.s32 %s72, 1
    %p76 = scmp.eq.s32.totalorder %s12, 1
    %p77 = scmp.ne.s32.totalorder %s72, %s74
    %p78 = scmp.eq.s32.totalorder %s12, 0
    %p79 = por %p77, %p78
    %p80 = scmp.ne.s32.totalorder %s72, %s74
    %p81 = scmp.eq.s32.totalorder %s17, 1
    %p82 = por %p80, %p81
    %p83 = scmp.ne.s32.totalorder %s74, %s75
    %p84 = scmp.eq.s32.totalorder %s17, 0
    %p85 = por %p83, %p84
    %p86 = scmp.ne.s32.totalorder %s74, %s75
    %p87 = scmp.eq.s32.totalorder %s18, 1
    %p88 = por %p86, %p87
    %p90 = scmp.ne.s32.totalorder %s75, %s89
    %p91 = scmp.eq.s32.totalorder %s18, 0
    %p92 = por %p90, %p91
    %s94 = sadd.s32 %s93, 1
    %p97 = scmp.eq.s32.totalorder %s12, 1
    %p98 = scmp.ne.s32.totalorder %s93, %s95
    %p99 = scmp.eq.s32.totalorder %s12, 0
    %p100 = por %p98, %p99
    %p101 = scmp.ne.s32.totalorder %s93, %s95
    %p102 = scmp.eq.s32.totalorder %s17, 1
    %p103 = por %p101, %p102
    %p104 = scmp.ne.s32.totalorder %s95, %s96
    %p105 = scmp.eq.s32.totalorder %s17, 0
    %p106 = por %p104, %p105
    %p107 = scmp.ne.s32.totalorder %s95, %s96
    %p108 = scmp.eq.s32.totalorder %s18, 1
    %p109 = por %p107, %p108
    %p111 = scmp.ne.s32.totalorder %s96, %s110
    %p112 = scmp.eq.s32.totalorder %s18, 0
    %p113 = por %p111, %p112
    %s115 = sadd.s32 %s114, 1
    %p118 = scmp.eq.s32.totalorder %s12, 1
    %p119 = scmp.ne.s32.totalorder %s114, %s116
    %p120 = scmp.eq.s32.totalorder %s12, 0
    %p121 = por %p119, %p120
    %p122 = scmp.ne.s32.totalorder %s114, %s116
    %p123 = scmp.eq.s32.totalorder %s17, 1
    %p124 = por %p122, %p123
    %p125 = scmp.ne.s32.totalorder %s116, %s117
    %p126 = scmp.eq.s32.totalorder %s17, 0
    %p127 = por %p125, %p126
    %p128 = scmp.ne.s32.totalorder %s116, %s117
    %p129 = scmp.eq.s32.totalorder %s18, 1
    %p130 = por %p128, %p129
    %p132 = scmp.ne.s32.totalorder %s117, %s131
    %p133 = scmp.eq.s32.totalorder %s18, 0
    %p134 = por %p132, %p133
    %s136 = sadd.s32 %s135, 1
    %p139 = scmp.eq.s32.totalorder %s12, 1
    %p140 = scmp.ne.s32.totalorder %s135, %s137
    %p141 = scmp.eq.s32.totalorder %s12, 0
    %p142 = por %p140, %p141
    %p143 = scmp.ne.s32.totalorder %s135, %s137
    %p144 = scmp.eq.s32.totalorder %s17, 1
    %p145 = por %p143, %p144
    %p146 = scmp.ne.s32.totalorder %s137, %s138
    %p147 = scmp.eq.s32.totalorder %s17, 0
    %p148 = por %p146, %p147
    %p149 = scmp.ne.s32.totalorder %s137, %s138
    %p150 = scmp.eq.s32.totalorder %s18, 1
    %p151 = por %p149, %p150
    %p153 = scmp.ne.s32.totalorder %s138, %s152
    %p154 = scmp.eq.s32.totalorder %s18, 0
    %p155 = por %p153, %p154
    %s156 = ssub.s32 %s12, %s19
    %p157 = scmp.eq.s32.totalorder %s156, 0
    %s159 = sadd.s32 %s158, 1
    %s160 = scalar_select %p157, %s158, %s159
    %p163 = pneg %p157
    %p164 = scmp.eq.s32.totalorder %s12, 1
    %p165 = por %p163, %p164
    %p166 = scmp.ne.s32.totalorder %s158, %s161
    %p167 = scmp.eq.s32.totalorder %s12, 0
    %p168 = por %p166, %p167
    %p169 = scmp.ne.s32.totalorder %s158, %s161
    %p170 = scmp.eq.s32.totalorder %s17, 1
    %p171 = por %p169, %p170
    %p172 = scmp.ne.s32.totalorder %s161, %s162
    %p173 = scmp.eq.s32.totalorder %s17, 0
    %p174 = por %p172, %p173
    %p175 = scmp.ne.s32.totalorder %s161, %s162
    %p176 = scmp.eq.s32.totalorder %s18, 1
    %p177 = por %p175, %p176
    %p179 = scmp.ne.s32.totalorder %s162, %s178
    %p180 = scmp.eq.s32.totalorder %s18, 0
    %p181 = por %p179, %p180
    %p182 = scmp.le.s32.totalorder 1, %s12
    %p183 = scmp.lt.s32.totalorder %s12, 3
    %p184 = pnand %p182, %p183
    %p185 = pneg %p184
    // Predicated region
    $region9: #{down_forward.1} parent=5 // pred_check
      _
    $region10: #{down_forward.1} parent=5 // pred_check_branch
      %187 = sbr.rel (%p184) target = $region12
    $region11: #{down_forward.1} parent=5 // pred_region
      %s188 = ssub.s32 %s12, 1
      // Predicated region
      $region13: #{down_forward.1} parent=11 // pred_check
        %p189 = pneg %p85
      $region14: #{down_forward.1} parent=11 // pred_check_branch
        %191 = sbr.rel (%p189) target = $region16
      $region15: #{down_forward.1} parent=11 // pred_region
        _
      $region16: #{down_forward.1} parent=11 // pred_fallthru
        _
      // Predicated region
      $region17: #{down_forward.1} parent=11 // pred_check
        %p192 = pneg %p106
      $region18: #{down_forward.1} parent=11 // pred_check_branch
        %194 = sbr.rel (%p192) target = $region20
      $region19: #{down_forward.1} parent=11 // pred_region
        _
      $region20: #{down_forward.1} parent=11 // pred_fallthru
        _
      // Predicated region
      $region21: #{down_forward.1} parent=11 // pred_check
        %p195 = pneg %p127
      $region22: #{down_forward.1} parent=11 // pred_check_branch
        %197 = sbr.rel (%p195) target = $region24
      $region23: #{down_forward.1} parent=11 // pred_region
        _
      $region24: #{down_forward.1} parent=11 // pred_fallthru
        _
      // Predicated region
      $region25: #{down_forward.1} parent=11 // pred_check
        %p198 = pneg %p148
      $region26: #{down_forward.1} parent=11 // pred_check_branch
        %200 = sbr.rel (%p198) target = $region28
      $region27: #{down_forward.1} parent=11 // pred_region
        _
      $region28: #{down_forward.1} parent=11 // pred_fallthru
        _
    $region12: #{down_forward.1} parent=5 // pred_fallthru
      _
    %p201 = scmp.lt.s32.totalorder %s12, 2
    // Predicated region
    $region29: #{down_forward.1} parent=5 // pred_check
      %p202 = pneg %p201
    $region30: #{down_forward.1} parent=5 // pred_check_branch
      %204 = sbr.rel (%p202) target = $region32
    $region31: #{down_forward.1} parent=5 // pred_region
      // Predicated region
      $region33: #{down_forward.1} parent=31 // pred_check
        %p205 = pneg %p32
      $region34: #{down_forward.1} parent=31 // pred_check_branch
        %207 = sbr.rel (%p205) target = $region36
      $region35: #{down_forward.1} parent=31 // pred_region
        %p208 = scmp.lt.s32.totalorder %s12, 1
        %s209 = scalar_select %p208, %s12, 1
        %s210 = smul.addr %s209, 16
        %s211 = smul.addr %s210, 8
        %s212 = scalar_lea.vmem %s0, %s211
      $region36: #{down_forward.1} parent=31 // pred_fallthru
        _
      // Predicated region
      $region37: #{down_forward.1} parent=31 // pred_check
        %p213 = pneg %p58
      $region38: #{down_forward.1} parent=31 // pred_check_branch
        %215 = sbr.rel (%p213) target = $region40
      $region39: #{down_forward.1} parent=31 // pred_region
        %p216 = scmp.lt.s32.totalorder %s12, 1
        %s217 = scalar_select %p216, %s12, 1
        %s218 = smul.addr %s217, 16
        %s219 = smul.addr %s218, 8
        %s220 = scalar_lea.vmem %s1, %s219
      $region40: #{down_forward.1} parent=31 // pred_fallthru
        _
    $region32: #{down_forward.1} parent=5 // pred_fallthru
      _
    %p221 = scmp.le.s32.totalorder 1, %s12
    %p222 = scmp.lt.s32.totalorder %s12, 3
    %p223 = pnand %p221, %p222
    %p224 = pneg %p223
    // Predicated region
    $region41: #{down_forward.1} parent=5 // pred_check
      _
    $region42: #{down_forward.1} parent=5 // pred_check_branch
      %226 = sbr.rel (%p223) target = $region44
    $region43: #{down_forward.1} parent=5 // pred_region
      %s227 = ssub.s32 %s12, 1
      %p228 = scmp.lt.s32.totalorder %s17, 1
      %s229 = scalar_select %p228, %s17, 1
      %s230 = smul.addr %s229, 16
      %s231 = smul.addr %s230, 8
      %s232 = scalar_lea.vmem %s0, %s231
      %p233 = pneg %p38
      %p234 = pneg %p35
      %p235 = scmp.lt.s32.totalorder %s17, 1
      %s236 = scalar_select %p235, %s17, 1
      %s237 = smul.addr %s236, 16
      %s238 = smul.addr %s237, 8
      %s239 = scalar_lea.vmem %s1, %s238
      %p240 = pneg %p64
      %p241 = pneg %p61
      %p242 = pneg %p85
      %p243 = pneg %p82
      %p244 = pneg %p106
      %p245 = pneg %p103
      %p246 = pneg %p127
      %p247 = pneg %p124
      %p248 = pneg %p148
      %p249 = pneg %p145
      %p250 = pneg %p174
      %p251 = pneg %p171
      %p252 = scmp.lt.s32.totalorder %s17, 1
      %s253 = scalar_select %p252, %s17, 1
      %s254 = smul.addr %s253, 8
      %s255 = smul.addr %s254, 8
      %s256 = scalar_lea.vmem %s6, %s255
      %p257 = scmp.lt.s32.totalorder %s17, 1
      %s258 = scalar_select %p257, %s17, 1
      %s259 = smul.addr %s258, 16
      %s260 = smul.addr %s259, 8
      %s261 = scalar_lea.vmem %s0, %s260
      %p262 = scmp.lt.s32.totalorder %s17, 1
      %s263 = scalar_select %p262, %s17, 1
      %s264 = smul.addr %s263, 16
      %s265 = smul.addr %s264, 8
      %s266 = scalar_lea.vmem %s1, %s265
      %p267 = scmp.lt.s32.totalorder %s17, 1
      %s268 = scalar_select %p267, %s17, 1
      %s269 = smul.addr %s268, 8
      %s270 = smul.addr %s269, 8
      %s271 = scalar_lea.vmem %s6, %s270
      %v272 = vld [vmem:[%s261] sm:$0xff]
      %v273 = vld [vmem:[%s261 + $0x8] sm:$0xff]
      %v274 = vld [vmem:[%s261 + $0x10] sm:$0xff]
      %v275 = vld [vmem:[%s261 + $0x18] sm:$0xff]
      %v276 = vld [vmem:[%s261 + $0x20] sm:$0xff]
      %v277 = vld [vmem:[%s261 + $0x28] sm:$0xff]
      %v278 = vld [vmem:[%s261 + $0x30] sm:$0xff]
      %v279 = vld [vmem:[%s261 + $0x38] sm:$0xff]
      %v280 = vld [vmem:[%s261 + $0x40] sm:$0xff]
      %v281 = vld [vmem:[%s261 + $0x48] sm:$0xff]
      %v282 = vld [vmem:[%s261 + $0x50] sm:$0xff]
      %v283 = vld [vmem:[%s261 + $0x58] sm:$0xff]
      %v284 = vld [vmem:[%s261 + $0x60] sm:$0xff]
      %v285 = vld [vmem:[%s261 + $0x68] sm:$0xff]
      %v286 = vld [vmem:[%s261 + $0x70] sm:$0xff]
      %v287 = vld [vmem:[%s261 + $0x78] sm:$0xff]
      %v288 = vmax.f32 %v272, %v273
      %v289 = vmax.f32 %v274, %v275
      %v290 = vmax.f32 %v276, %v277
      %v291 = vmax.f32 %v278, %v279
      %v292 = vmax.f32 %v280, %v281
      %v293 = vmax.f32 %v282, %v283
      %v294 = vmax.f32 %v284, %v285
      %v295 = vmax.f32 %v286, %v287
      %v296 = vld [vmem:[%s266] sm:$0xff]
      %v297 = vld [vmem:[%s266 + $0x8] sm:$0xff]
      %v298 = vld [vmem:[%s266 + $0x10] sm:$0xff]
      %v299 = vld [vmem:[%s266 + $0x18] sm:$0xff]
      %v300 = vld [vmem:[%s266 + $0x20] sm:$0xff]
      %v301 = vld [vmem:[%s266 + $0x28] sm:$0xff]
      %v302 = vld [vmem:[%s266 + $0x30] sm:$0xff]
      %v303 = vld [vmem:[%s266 + $0x38] sm:$0xff]
      %v304 = vld [vmem:[%s266 + $0x40] sm:$0xff]
      %v305 = vld [vmem:[%s266 + $0x48] sm:$0xff]
      %v306 = vld [vmem:[%s266 + $0x50] sm:$0xff]
      %v307 = vld [vmem:[%s266 + $0x58] sm:$0xff]
      %v308 = vld [vmem:[%s266 + $0x60] sm:$0xff]
      %v309 = vld [vmem:[%s266 + $0x68] sm:$0xff]
      %v310 = vld [vmem:[%s266 + $0x70] sm:$0xff]
      %v311 = vld [vmem:[%s266 + $0x78] sm:$0xff]
      %v312 = vmax.f32 %v296, %v297
      %v313 = vmax.f32 %v298, %v299
      %v314 = vmax.f32 %v300, %v301
      %v315 = vmax.f32 %v302, %v303
      %v316 = vmax.f32 %v304, %v305
      %v317 = vmax.f32 %v306, %v307
      %v318 = vmax.f32 %v308, %v309
      %v319 = vmax.f32 %v310, %v311
      %v320 = vmax.f32 %v288, %v312
      %v321 = vmax.f32 %v289, %v313
      %v322 = vmax.f32 %v290, %v314
      %v323 = vmax.f32 %v291, %v315
      %v324 = vmax.f32 %v292, %v316
      %v325 = vmax.f32 %v293, %v317
      %v326 = vmax.f32 %v294, %v318
      %v327 = vmax.f32 %v295, %v319
      %v328 = vld [vmem:[%s4] sm:$0x1]
      %v330 = vlaneseq
      %v331 = vshrl.u32 %v330, 7
      %v332 = vsub.s32 0, %v331
      %v333 = vrot.slane %v328, %v332
      %v343 = vrot.slane 0.0, 7
      %v344 = vrot.slane %v320, 7
      %v345 = vrot.slane %v321, 7
      %v346 = vrot.slane %v322, 7
      %v347 = vrot.slane %v323, 7
      %v348 = vrot.slane %v324, 7
      %v349 = vrot.slane %v325, 7
      %v350 = vrot.slane %v326, 7
      %vm359 = vcmask 1040384
      %v360 = vsel %vm359, 0.0, %v343
      %v361 = vsel %vm359, 0.0, %v344
      %v362 = vsel %vm359, 0.0, %v345
      %v363 = vsel %vm359, 0.0, %v346
      %v364 = vsel %vm359, 0.0, %v347
      %v365 = vsel %vm359, 0.0, %v348
      %v366 = vsel %vm359, 0.0, %v349
      %v367 = vsel %vm359, 0.0, %v350
      %v368 = vld [vmem:[%s2] sm:$0xf]
      %vm369 = vcmask 31744
      %v371 = vsel %vm369, %v360, 0
      %v374 = vsel %vm369, %v361, 0
      %v377 = vsel %vm369, %v362, 0
      %v380 = vsel %vm369, %v363, 0
      %v383 = vsel %vm369, %v364, 0
      %v386 = vsel %vm369, %v365, 0
      %v389 = vsel %vm369, %v366, 0
      %v392 = vsel %vm369, %v367, 0
      %vm394 = vcmask 1043456
      %v396 = vsel %vm394, %v368, 0
      %398 = vmatprep.subr.mxu0 0.0
      %399 = vmatpush1.msra.mxu0 %v396
      %400 = vmatprep.subr.mxu0 0.0
      %401 = vmatpush1.msra.mxu0 0.0
      %402 = vmatprep.subr.mxu0 0.0
      %403 = vmatpush1.msra.mxu0 0.0
      %404 = vmatprep.subr.mxu0 0.0
      %405 = vmatpush1.msra.mxu0 0.0
      %406 = vmatprep.subr.mxu0 0.0
      %407 = vmatpush1.msra.mxu0 0.0
      %408 = vmatprep.subr.mxu0 0.0
      %409 = vmatpush1.msra.mxu0 0.0
      %410 = vmatprep.subr.mxu0 0.0
      %411 = vmatpush1.msra.mxu0 0.0
      %412 = vmatprep.subr.mxu0 0.0
      %413 = vmatpush1.msra.mxu0 0.0
      %414 = vmatprep.subr.mxu0 0.0
      %415 = vmatpush1.msra.mxu0 0.0
      %416 = vmatprep.subr.mxu0 0.0
      %417 = vmatpush1.msra.mxu0 0.0
      %418 = vmatprep.subr.mxu0 0.0
      %419 = vmatpush1.msra.mxu0 0.0
      %420 = vmatprep.subr.mxu0 0.0
      %421 = vmatpush1.msra.mxu0 0.0
      %422 = vmatprep.subr.mxu0 0.0
      %423 = vmatpush1.msra.mxu0 0.0
      %424 = vmatprep.subr.mxu0 0.0
      %425 = vmatpush1.msra.mxu0 0.0
      %426 = vmatprep.subr.mxu0 0.0
      %427 = vmatpush1.msra.mxu0 0.0
      %428 = vmatprep.subr.mxu0 0.0
      %429 = vmatpush1.msra.mxu0 0.0
      %430 = vmatprep.subr.mxu0 0.0
      %431 = vmatpush1.msra.mxu0 0.0
      %432 = vmatprep.subr.mxu0 0.0
      %433 = vmatpush1.msra.mxu0 0.0
      %434 = vmatprep.subr.mxu0 0.0
      %435 = vmatpush1.msra.mxu0 0.0
      %436 = vmatprep.subr.mxu0 0.0
      %437 = vmatpush1.msra.mxu0 0.0
      %438 = vmatprep.subr.mxu0 0.0
      %439 = vmatpush1.msra.mxu0 0.0
      %440 = vmatprep.subr.mxu0 0.0
      %441 = vmatpush1.msra.mxu0 0.0
      %442 = vmatprep.subr.mxu0 0.0
      %443 = vmatpush1.msra.mxu0 0.0
      %444 = vmatprep.subr.mxu0 0.0
      %445 = vmatpush1.msra.mxu0 0.0
      %446 = vmatprep.subr.mxu0 0.0
      %447 = vmatpush1.msra.mxu0 0.0
      %448 = vmatprep.subr.mxu0 0.0
      %449 = vmatpush1.msra.mxu0 0.0
      %450 = vmatprep.subr.mxu0 0.0
      %451 = vmatpush1.msra.mxu0 0.0
      %452 = vmatprep.subr.mxu0 0.0
      %453 = vmatpush1.msra.mxu0 0.0
      %454 = vmatprep.subr.mxu0 0.0
      %455 = vmatpush1.msra.mxu0 0.0
      %456 = vmatprep.subr.mxu0 0.0
      %457 = vmatpush1.msra.mxu0 0.0
      %458 = vmatprep.subr.mxu0 0.0
      %459 = vmatpush1.msra.mxu0 0.0
      %460 = vmatprep.subr.mxu0 0.0
      %461 = vmatpush1.msra.mxu0 0.0
      %462 = vmatprep.mubr.f32.mxu0 0.0
      %463 = vmatmul.mubr.f32.gmra.mrb[0].mxu0 %v371
      %v464 = vpop.f32.mrb[0].mxu0
      %v465 = vadd.f32 0.0, %v464
      %v466 = vpop.f32.mrb[0].mxu0
      %467 = vmatprep.mubr.f32.mxu0 0.0
      %468 = vmatmul.mubr.f32.gmra.mrb[0].mxu0 %v374
      %v469 = vpop.f32.mrb[0].mxu0
      %v470 = vadd.f32 0.0, %v469
      %v471 = vpop.f32.mrb[0].mxu0
      %472 = vmatprep.mubr.f32.mxu0 0.0
      %473 = vmatmul.mubr.f32.gmra.mrb[0].mxu0 %v377
      %v474 = vpop.f32.mrb[0].mxu0
      %v475 = vadd.f32 0.0, %v474
      %v476 = vpop.f32.mrb[0].mxu0
      %477 = vmatprep.mubr.f32.mxu0 0.0
      %478 = vmatmul.mubr.f32.gmra.mrb[0].mxu0 %v380
      %v479 = vpop.f32.mrb[0].mxu0
      %v480 = vadd.f32 0.0, %v479
      %v481 = vpop.f32.mrb[0].mxu0
      %482 = vmatprep.mubr.f32.mxu0 0.0
      %483 = vmatmul.mubr.f32.gmra.mrb[0].mxu0 %v383
      %v484 = vpop.f32.mrb[0].mxu0
      %v485 = vadd.f32 0.0, %v484
      %v486 = vpop.f32.mrb[0].mxu0
      %487 = vmatprep.mubr.f32.mxu0 0.0
      %488 = vmatmul.mubr.f32.gmra.mrb[0].mxu0 %v386
      %v489 = vpop.f32.mrb[0].mxu0
      %v490 = vadd.f32 0.0, %v489
      %v491 = vpop.f32.mrb[0].mxu0
      %492 = vmatprep.mubr.f32.mxu0 0.0
      %493 = vmatmul.mubr.f32.gmra.mrb[0].mxu0 %v389
      %v494 = vpop.f32.mrb[0].mxu0
      %v495 = vadd.f32 0.0, %v494
      %v496 = vpop.f32.mrb[0].mxu0
      %497 = vmatprep.mubr.f32.mxu0 0.0
      %498 = vmatmul.mubr.f32.gmra.mrb[0].mxu0 %v392
      %v499 = vpop.f32.mrb[0].mxu0
      %v500 = vadd.f32 0.0, %v499
      %v501 = vpop.f32.mrb[0].mxu0
      %502 = vdwg.mxu0
      %v503 = vadd.f32 %v333, %v465
      %v504 = vadd.f32 %v333, %v470
      %v505 = vadd.f32 %v333, %v475
      %v506 = vadd.f32 %v333, %v480
      %v507 = vadd.f32 %v333, %v485
      %v508 = vadd.f32 %v333, %v490
      %v509 = vadd.f32 %v333, %v495
      %v510 = vadd.f32 %v333, %v500
      %s511 = scalar_lea.vmem %s2, 4
      %v512 = vld [vmem:[%s511] sm:$0xf]
      %v513 = vsel %vm369, 0.0, 0
      %v515 = vsel %vm369, %v320, 0
      %v517 = vsel %vm369, %v321, 0
      %v519 = vsel %vm369, %v322, 0
      %v521 = vsel %vm369, %v323, 0
      %v523 = vsel %vm369, %v324, 0
      %v525 = vsel %vm369, %v325, 0
      %v527 = vsel %vm369, %v326, 0
      %v530 = vsel %vm394, %v512, 0
      %532 = vmatprep.subr.mxu0 0.0
      %533 = vmatpush1.msra.mxu0 %v530
      %534 = vmatprep.subr.mxu0 0.0
      %535 = vmatpush1.msra.mxu0 0.0
      %536 = vmatprep.subr.mxu0 0.0
      %537 = vmatpush1.msra.mxu0 0.0
      %538 = vmatprep.subr.mxu0 0.0
      %539 = vmatpush1.msra.mxu0 0.0
      %540 = vmatprep.subr.mxu0 0.0
      %541 = vmatpush1.msra.mxu0 0.0
      %542 = vmatprep.subr.mxu0 0.0
      %543 = vmatpush1.msra.mxu0 0.0
      %544 = vmatprep.subr.mxu0 0.0
      %545 = vmatpush1.msra.mxu0 0.0
      %546 = vmatprep.subr.mxu0 0.0
      %547 = vmatpush1.msra.mxu0 0.0
      %548 = vmatprep.subr.mxu0 0.0
      %549 = vmatpush1.msra.mxu0 0.0
      %550 = vmatprep.subr.mxu0 0.0
      %551 = vmatpush1.msra.mxu0 0.0
      %552 = vmatprep.subr.mxu0 0.0
      %553 = vmatpush1.msra.mxu0 0.0
      %554 = vmatprep.subr.mxu0 0.0
      %555 = vmatpush1.msra.mxu0 0.0
      %556 = vmatprep.subr.mxu0 0.0
      %557 = vmatpush1.msra.mxu0 0.0
      %558 = vmatprep.subr.mxu0 0.0
      %559 = vmatpush1.msra.mxu0 0.0
      %560 = vmatprep.subr.mxu0 0.0
      %561 = vmatpush1.msra.mxu0 0.0
      %562 = vmatprep.subr.mxu0 0.0
      %563 = vmatpush1.msra.mxu0 0.0
      %564 = vmatprep.subr.mxu0 0.0
      %565 = vmatpush1.msra.mxu0 0.0
      %566 = vmatprep.subr.mxu0 0.0
      %567 = vmatpush1.msra.mxu0 0.0
      %568 = vmatprep.subr.mxu0 0.0
      %569 = vmatpush1.msra.mxu0 0.0
      %570 = vmatprep.subr.mxu0 0.0
      %571 = vmatpush1.msra.mxu0 0.0
      %572 = vmatprep.subr.mxu0 0.0
      %573 = vmatpush1.msra.mxu0 0.0
      %574 = vmatprep.subr.mxu0 0.0
      %575 = vmatpush1.msra.mxu0 0.0
      %576 = vmatprep.subr.mxu0 0.0
      %577 = vmatpush1.msra.mxu0 0.0
      %578 = vmatprep.subr.mxu0 0.0
      %579 = vmatpush1.msra.mxu0 0.0
      %580 = vmatprep.subr.mxu0 0.0
      %581 = vmatpush1.msra.mxu0 0.0
      %582 = vmatprep.subr.mxu0 0.0
      %583 = vmatpush1.msra.mxu0 0.0
      %584 = vmatprep.subr.mxu0 0.0
      %585 = vmatpush1.msra.mxu0 0.0
      %586 = vmatprep.subr.mxu0 0.0
      %587 = vmatpush1.msra.mxu0 0.0
      %588 = vmatprep.subr.mxu0 0.0
      %589 = vmatpush1.msra.mxu0 0.0
      %590 = vmatprep.subr.mxu0 0.0
      %591 = vmatpush1.msra.mxu0 0.0
      %592 = vmatprep.subr.mxu0 0.0
      %593 = vmatpush1.msra.mxu0 0.0
      %594 = vmatprep.subr.mxu0 0.0
      %595 = vmatpush1.msra.mxu0 0.0
      %596 = vmatprep.mubr.f32.mxu0 0.0
      %597 = vmatmul.mubr.f32.gmra.mrb[0].mxu0 %v513
      %v598 = vpop.f32.mrb[0].mxu0
      %v599 = vadd.f32 0.0, %v598
      %v600 = vpop.f32.mrb[0].mxu0
      %601 = vmatprep.mubr.f32.mxu0 0.0
      %602 = vmatmul.mubr.f32.gmra.mrb[0].mxu0 %v515
      %v603 = vpop.f32.mrb[0].mxu0
      %v604 = vadd.f32 0.0, %v603
      %v605 = vpop.f32.mrb[0].mxu0
      %606 = vmatprep.mubr.f32.mxu0 0.0
      %607 = vmatmul.mubr.f32.gmra.mrb[0].mxu0 %v517
      %v608 = vpop.f32.mrb[0].mxu0
      %v609 = vadd.f32 0.0, %v608
      %v610 = vpop.f32.mrb[0].mxu0
      %611 = vmatprep.mubr.f32.mxu0 0.0
      %612 = vmatmul.mubr.f32.gmra.mrb[0].mxu0 %v519
      %v613 = vpop.f32.mrb[0].mxu0
      %v614 = vadd.f32 0.0, %v613
      %v615 = vpop.f32.mrb[0].mxu0
      %616 = vmatprep.mubr.f32.mxu0 0.0
      %617 = vmatmul.mubr.f32.gmra.mrb[0].mxu0 %v521
      %v618 = vpop.f32.mrb[0].mxu0
      %v619 = vadd.f32 0.0, %v618
      %v620 = vpop.f32.mrb[0].mxu0
      %621 = vmatprep.mubr.f32.mxu0 0.0
      %622 = vmatmul.mubr.f32.gmra.mrb[0].mxu0 %v523
      %v623 = vpop.f32.mrb[0].mxu0
      %v624 = vadd.f32 0.0, %v623
      %v625 = vpop.f32.mrb[0].mxu0
      %626 = vmatprep.mubr.f32.mxu0 0.0
      %627 = vmatmul.mubr.f32.gmra.mrb[0].mxu0 %v525
      %v628 = vpop.f32.mrb[0].mxu0
      %v629 = vadd.f32 0.0, %v628
      %v630 = vpop.f32.mrb[0].mxu0
      %631 = vmatprep.mubr.f32.mxu0 0.0
      %632 = vmatmul.mubr.f32.gmra.mrb[0].mxu0 %v527
      %v633 = vpop.f32.mrb[0].mxu0
      %v634 = vadd.f32 0.0, %v633
      %v635 = vpop.f32.mrb[0].mxu0
      %636 = vdwg.mxu0
      %v637 = vadd.f32 %v503, %v599
      %v638 = vadd.f32 %v504, %v604
      %v639 = vadd.f32 %v505, %v609
      %v640 = vadd.f32 %v506, %v614
      %v641 = vadd.f32 %v507, %v619
      %v642 = vadd.f32 %v508, %v624
      %v643 = vadd.f32 %v509, %v629
      %v644 = vadd.f32 %v510, %v634
      %v645 = vrot.slane 0.0, 1
      %v646 = vrot.slane %v320, 1
      %v647 = vrot.slane %v321, 1
      %v648 = vrot.slane %v322, 1
      %v649 = vrot.slane %v323, 1
      %v650 = vrot.slane %v324, 1
      %v651 = vrot.slane %v325, 1
      %v652 = vrot.slane %v326, 1
      %vm661 = vcmask 1046528
      %v662 = vsel %vm661, %v645, 0.0
      %v663 = vsel %vm661, %v646, 0.0
      %v664 = vsel %vm661, %v647, 0.0
      %v665 = vsel %vm661, %v648, 0.0
      %v666 = vsel %vm661, %v649, 0.0
      %v667 = vsel %vm661, %v650, 0.0
      %v668 = vsel %vm661, %v651, 0.0
      %v669 = vsel %vm661, %v652, 0.0
      %s670 = scalar_lea.vmem %s2, 8
      %v671 = vld [vmem:[%s670] sm:$0xf]
      %v673 = vsel %vm369, %v662, 0
      %v676 = vsel %vm369, %v663, 0
      %v679 = vsel %vm369, %v664, 0
      %v682 = vsel %vm369, %v665, 0
      %v685 = vsel %vm369, %v666, 0
      %v688 = vsel %vm369, %v667, 0
      %v691 = vsel %vm369, %v668, 0
      %v694 = vsel %vm369, %v669, 0
      %v697 = vsel %vm394, %v671, 0
      %699 = vmatprep.subr.mxu0 0.0
      %700 = vmatpush1.msra.mxu0 %v697
      %701 = vmatprep.subr.mxu0 0.0
      %702 = vmatpush1.msra.mxu0 0.0
      %703 = vmatprep.subr.mxu0 0.0
      %704 = vmatpush1.msra.mxu0 0.0
      %705 = vmatprep.subr.mxu0 0.0
      %706 = vmatpush1.msra.mxu0 0.0
      %707 = vmatprep.subr.mxu0 0.0
      %708 = vmatpush1.msra.mxu0 0.0
      %709 = vmatprep.subr.mxu0 0.0
      %710 = vmatpush1.msra.mxu0 0.0
      %711 = vmatprep.subr.mxu0 0.0
      %712 = vmatpush1.msra.mxu0 0.0
      %713 = vmatprep.subr.mxu0 0.0
      %714 = vmatpush1.msra.mxu0 0.0
      %715 = vmatprep.subr.mxu0 0.0
      %716 = vmatpush1.msra.mxu0 0.0
      %717 = vmatprep.subr.mxu0 0.0
      %718 = vmatpush1.msra.mxu0 0.0
      %719 = vmatprep.subr.mxu0 0.0
      %720 = vmatpush1.msra.mxu0 0.0
      %721 = vmatprep.subr.mxu0 0.0
      %722 = vmatpush1.msra.mxu0 0.0
      %723 = vmatprep.subr.mxu0 0.0
      %724 = vmatpush1.msra.mxu0 0.0
      %725 = vmatprep.subr.mxu0 0.0
      %726 = vmatpush1.msra.mxu0 0.0
      %727 = vmatprep.subr.mxu0 0.0
      %728 = vmatpush1.msra.mxu0 0.0
      %729 = vmatprep.subr.mxu0 0.0
      %730 = vmatpush1.msra.mxu0 0.0
      %731 = vmatprep.subr.mxu0 0.0
      %732 = vmatpush1.msra.mxu0 0.0
      %733 = vmatprep.subr.mxu0 0.0
      %734 = vmatpush1.msra.mxu0 0.0
      %735 = vmatprep.subr.mxu0 0.0
      %736 = vmatpush1.msra.mxu0 0.0
      %737 = vmatprep.subr.mxu0 0.0
      %738 = vmatpush1.msra.mxu0 0.0
      %739 = vmatprep.subr.mxu0 0.0
      %740 = vmatpush1.msra.mxu0 0.0
      %741 = vmatprep.subr.mxu0 0.0
      %742 = vmatpush1.msra.mxu0 0.0
      %743 = vmatprep.subr.mxu0 0.0
      %744 = vmatpush1.msra.mxu0 0.0
      %745 = vmatprep.subr.mxu0 0.0
      %746 = vmatpush1.msra.mxu0 0.0
      %747 = vmatprep.subr.mxu0 0.0
      %748 = vmatpush1.msra.mxu0 0.0
      %749 = vmatprep.subr.mxu0 0.0
      %750 = vmatpush1.msra.mxu0 0.0
      %751 = vmatprep.subr.mxu0 0.0
      %752 = vmatpush1.msra.mxu0 0.0
      %753 = vmatprep.subr.mxu0 0.0
      %754 = vmatpush1.msra.mxu0 0.0
      %755 = vmatprep.subr.mxu0 0.0
      %756 = vmatpush1.msra.mxu0 0.0
      %757 = vmatprep.subr.mxu0 0.0
      %758 = vmatpush1.msra.mxu0 0.0
      %759 = vmatprep.subr.mxu0 0.0
      %760 = vmatpush1.msra.mxu0 0.0
      %761 = vmatprep.subr.mxu0 0.0
      %762 = vmatpush1.msra.mxu0 0.0
      %763 = vmatprep.mubr.f32.mxu0 0.0
      %764 = vmatmul.mubr.f32.gmra.mrb[0].mxu0 %v673
      %v765 = vpop.f32.mrb[0].mxu0
      %v766 = vadd.f32 0.0, %v765
      %v767 = vpop.f32.mrb[0].mxu0
      %768 = vmatprep.mubr.f32.mxu0 0.0
      %769 = vmatmul.mubr.f32.gmra.mrb[0].mxu0 %v676
      %v770 = vpop.f32.mrb[0].mxu0
      %v771 = vadd.f32 0.0, %v770
      %v772 = vpop.f32.mrb[0].mxu0
      %773 = vmatprep.mubr.f32.mxu0 0.0
      %774 = vmatmul.mubr.f32.gmra.mrb[0].mxu0 %v679
      %v775 = vpop.f32.mrb[0].mxu0
      %v776 = vadd.f32 0.0, %v775
      %v777 = vpop.f32.mrb[0].mxu0
      %778 = vmatprep.mubr.f32.mxu0 0.0
      %779 = vmatmul.mubr.f32.gmra.mrb[0].mxu0 %v682
      %v780 = vpop.f32.mrb[0].mxu0
      %v781 = vadd.f32 0.0, %v780
      %v782 = vpop.f32.mrb[0].mxu0
      %783 = vmatprep.mubr.f32.mxu0 0.0
      %784 = vmatmul.mubr.f32.gmra.mrb[0].mxu0 %v685
      %v785 = vpop.f32.mrb[0].mxu0
      %v786 = vadd.f32 0.0, %v785
      %v787 = vpop.f32.mrb[0].mxu0
      %788 = vmatprep.mubr.f32.mxu0 0.0
      %789 = vmatmul.mubr.f32.gmra.mrb[0].mxu0 %v688
      %v790 = vpop.f32.mrb[0].mxu0
      %v791 = vadd.f32 0.0, %v790
      %v792 = vpop.f32.mrb[0].mxu0
      %793 = vmatprep.mubr.f32.mxu0 0.0
      %794 = vmatmul.mubr.f32.gmra.mrb[0].mxu0 %v691
      %v795 = vpop.f32.mrb[0].mxu0
      %v796 = vadd.f32 0.0, %v795
      %v797 = vpop.f32.mrb[0].mxu0
      %798 = vmatprep.mubr.f32.mxu0 0.0
      %799 = vmatmul.mubr.f32.gmra.mrb[0].mxu0 %v694
      %v800 = vpop.f32.mrb[0].mxu0
      %v801 = vadd.f32 0.0, %v800
      %v802 = vpop.f32.mrb[0].mxu0
      %803 = vdwg.mxu0
      %v804 = vadd.f32 %v637, %v766
      %v805 = vadd.f32 %v638, %v771
      %v806 = vadd.f32 %v639, %v776
      %v807 = vadd.f32 %v640, %v781
      %v808 = vadd.f32 %v641, %v786
      %v809 = vadd.f32 %v642, %v791
      %v810 = vadd.f32 %v643, %v796
      %v811 = vadd.f32 %v644, %v801
      %v813 = vrot.slane %v327, 7
      %v815 = vsel %vm359, 0.0, %v813
      %s816 = scalar_lea.vmem %s2, 12
      %v817 = vld [vmem:[%s816] sm:$0xf]
      %v819 = vsel %vm369, %v815, 0
      %v822 = vsel %vm394, %v817, 0
      %824 = vmatprep.subr.mxu0 0.0
      %825 = vmatpush1.msra.mxu0 %v822
      %826 = vmatprep.subr.mxu0 0.0
      %827 = vmatpush1.msra.mxu0 0.0
      %828 = vmatprep.subr.mxu0 0.0
      %829 = vmatpush1.msra.mxu0 0.0
      %830 = vmatprep.subr.mxu0 0.0
      %831 = vmatpush1.msra.mxu0 0.0
      %832 = vmatprep.subr.mxu0 0.0
      %833 = vmatpush1.msra.mxu0 0.0
      %834 = vmatprep.subr.mxu0 0.0
      %835 = vmatpush1.msra.mxu0 0.0
      %836 = vmatprep.subr.mxu0 0.0
      %837 = vmatpush1.msra.mxu0 0.0
      %838 = vmatprep.subr.mxu0 0.0
      %839 = vmatpush1.msra.mxu0 0.0
      %840 = vmatprep.subr.mxu0 0.0
      %841 = vmatpush1.msra.mxu0 0.0
      %842 = vmatprep.subr.mxu0 0.0
      %843 = vmatpush1.msra.mxu0 0.0
      %844 = vmatprep.subr.mxu0 0.0
      %845 = vmatpush1.msra.mxu0 0.0
      %846 = vmatprep.subr.mxu0 0.0
      %847 = vmatpush1.msra.mxu0 0.0
      %848 = vmatprep.subr.mxu0 0.0
      %849 = vmatpush1.msra.mxu0 0.0
      %850 = vmatprep.subr.mxu0 0.0
      %851 = vmatpush1.msra.mxu0 0.0
      %852 = vmatprep.subr.mxu0 0.0
      %853 = vmatpush1.msra.mxu0 0.0
      %854 = vmatprep.subr.mxu0 0.0
      %855 = vmatpush1.msra.mxu0 0.0
      %856 = vmatprep.subr.mxu0 0.0
      %857 = vmatpush1.msra.mxu0 0.0
      %858 = vmatprep.subr.mxu0 0.0
      %859 = vmatpush1.msra.mxu0 0.0
      %860 = vmatprep.subr.mxu0 0.0
      %861 = vmatpush1.msra.mxu0 0.0
      %862 = vmatprep.subr.mxu0 0.0
      %863 = vmatpush1.msra.mxu0 0.0
      %864 = vmatprep.subr.mxu0 0.0
      %865 = vmatpush1.msra.mxu0 0.0
      %866 = vmatprep.subr.mxu0 0.0
      %867 = vmatpush1.msra.mxu0 0.0
      %868 = vmatprep.subr.mxu0 0.0
      %869 = vmatpush1.msra.mxu0 0.0
      %870 = vmatprep.subr.mxu0 0.0
      %871 = vmatpush1.msra.mxu0 0.0
      %872 = vmatprep.subr.mxu0 0.0
      %873 = vmatpush1.msra.mxu0 0.0
      %874 = vmatprep.subr.mxu0 0.0
      %875 = vmatpush1.msra.mxu0 0.0
      %876 = vmatprep.subr.mxu0 0.0
      %877 = vmatpush1.msra.mxu0 0.0
      %878 = vmatprep.subr.mxu0 0.0
      %879 = vmatpush1.msra.mxu0 0.0
      %880 = vmatprep.subr.mxu0 0.0
      %881 = vmatpush1.msra.mxu0 0.0
      %882 = vmatprep.subr.mxu0 0.0
      %883 = vmatpush1.msra.mxu0 0.0
      %884 = vmatprep.subr.mxu0 0.0
      %885 = vmatpush1.msra.mxu0 0.0
      %886 = vmatprep.subr.mxu0 0.0
      %887 = vmatpush1.msra.mxu0 0.0
      %888 = vmatprep.mubr.f32.mxu0 0.0
      %889 = vmatmul.mubr.f32.gmra.mrb[0].mxu0 %v374
      %v890 = vpop.f32.mrb[0].mxu0
      %v891 = vadd.f32 0.0, %v890
      %v892 = vpop.f32.mrb[0].mxu0
      %893 = vmatprep.mubr.f32.mxu0 0.0
      %894 = vmatmul.mubr.f32.gmra.mrb[0].mxu0 %v377
      %v895 = vpop.f32.mrb[0].mxu0
      %v896 = vadd.f32 0.0, %v895
      %v897 = vpop.f32.mrb[0].mxu0
      %898 = vmatprep.mubr.f32.mxu0 0.0
      %899 = vmatmul.mubr.f32.gmra.mrb[0].mxu0 %v380
      %v900 = vpop.f32.mrb[0].mxu0
      %v901 = vadd.f32 0.0, %v900
      %v902 = vpop.f32.mrb[0].mxu0
      %903 = vmatprep.mubr.f32.mxu0 0.0
      %904 = vmatmul.mubr.f32.gmra.mrb[0].mxu0 %v383
      %v905 = vpop.f32.mrb[0].mxu0
      %v906 = vadd.f32 0.0, %v905
      %v907 = vpop.f32.mrb[0].mxu0
      %908 = vmatprep.mubr.f32.mxu0 0.0
      %909 = vmatmul.mubr.f32.gmra.mrb[0].mxu0 %v386
      %v910 = vpop.f32.mrb[0].mxu0
      %v911 = vadd.f32 0.0, %v910
      %v912 = vpop.f32.mrb[0].mxu0
      %913 = vmatprep.mubr.f32.mxu0 0.0
      %914 = vmatmul.mubr.f32.gmra.mrb[0].mxu0 %v389
      %v915 = vpop.f32.mrb[0].mxu0
      %v916 = vadd.f32 0.0, %v915
      %v917 = vpop.f32.mrb[0].mxu0
      %918 = vmatprep.mubr.f32.mxu0 0.0
      %919 = vmatmul.mubr.f32.gmra.mrb[0].mxu0 %v392
      %v920 = vpop.f32.mrb[0].mxu0
      %v921 = vadd.f32 0.0, %v920
      %v922 = vpop.f32.mrb[0].mxu0
      %923 = vmatprep.mubr.f32.mxu0 0.0
      %924 = vmatmul.mubr.f32.gmra.mrb[0].mxu0 %v819
      %v925 = vpop.f32.mrb[0].mxu0
      %v926 = vadd.f32 0.0, %v925
      %v927 = vpop.f32.mrb[0].mxu0
      %928 = vdwg.mxu0
      %v929 = vadd.f32 %v804, %v891
      %v930 = vadd.f32 %v805, %v896
      %v931 = vadd.f32 %v806, %v901
      %v932 = vadd.f32 %v807, %v906
      %v933 = vadd.f32 %v808, %v911
      %v934 = vadd.f32 %v809, %v916
      %v935 = vadd.f32 %v810, %v921
      %v936 = vadd.f32 %v811, %v926
      %s937 = scalar_lea.vmem %s2, 16
      %v938 = vld [vmem:[%s937] sm:$0xf]
      %v939 = vsel %vm369, %v327, 0
      %v942 = vsel %vm394, %v938, 0
      %944 = vmatprep.subr.mxu0 0.0
      %945 = vmatpush1.msra.mxu0 %v942
      %946 = vmatprep.subr.mxu0 0.0
      %947 = vmatpush1.msra.mxu0 0.0
      %948 = vmatprep.subr.mxu0 0.0
      %949 = vmatpush1.msra.mxu0 0.0
      %950 = vmatprep.subr.mxu0 0.0
      %951 = vmatpush1.msra.mxu0 0.0
      %952 = vmatprep.subr.mxu0 0.0
      %953 = vmatpush1.msra.mxu0 0.0
      %954 = vmatprep.subr.mxu0 0.0
      %955 = vmatpush1.msra.mxu0 0.0
      %956 = vmatprep.subr.mxu0 0.0
      %957 = vmatpush1.msra.mxu0 0.0
      %958 = vmatprep.subr.mxu0 0.0
      %959 = vmatpush1.msra.mxu0 0.0
      %960 = vmatprep.subr.mxu0 0.0
      %961 = vmatpush1.msra.mxu0 0.0
      %962 = vmatprep.subr.mxu0 0.0
      %963 = vmatpush1.msra.mxu0 0.0
      %964 = vmatprep.subr.mxu0 0.0
      %965 = vmatpush1.msra.mxu0 0.0
      %966 = vmatprep.subr.mxu0 0.0
      %967 = vmatpush1.msra.mxu0 0.0
      %968 = vmatprep.subr.mxu0 0.0
      %969 = vmatpush1.msra.mxu0 0.0
      %970 = vmatprep.subr.mxu0 0.0
      %971 = vmatpush1.msra.mxu0 0.0
      %972 = vmatprep.subr.mxu0 0.0
      %973 = vmatpush1.msra.mxu0 0.0
      %974 = vmatprep.subr.mxu0 0.0
      %975 = vmatpush1.msra.mxu0 0.0
      %976 = vmatprep.subr.mxu0 0.0
      %977 = vmatpush1.msra.mxu0 0.0
      %978 = vmatprep.subr.mxu0 0.0
      %979 = vmatpush1.msra.mxu0 0.0
      %980 = vmatprep.subr.mxu0 0.0
      %981 = vmatpush1.msra.mxu0 0.0
      %982 = vmatprep.subr.mxu0 0.0
      %983 = vmatpush1.msra.mxu0 0.0
      %984 = vmatprep.subr.mxu0 0.0
      %985 = vmatpush1.msra.mxu0 0.0
      %986 = vmatprep.subr.mxu0 0.0
      %987 = vmatpush1.msra.mxu0 0.0
      %988 = vmatprep.subr.mxu0 0.0
      %989 = vmatpush1.msra.mxu0 0.0
      %990 = vmatprep.subr.mxu0 0.0
      %991 = vmatpush1.msra.mxu0 0.0
      %992 = vmatprep.subr.mxu0 0.0
      %993 = vmatpush1.msra.mxu0 0.0
      %994 = vmatprep.subr.mxu0 0.0
      %995 = vmatpush1.msra.mxu0 0.0
      %996 = vmatprep.subr.mxu0 0.0
      %997 = vmatpush1.msra.mxu0 0.0
      %998 = vmatprep.subr.mxu0 0.0
      %999 = vmatpush1.msra.mxu0 0.0
      %1000 = vmatprep.subr.mxu0 0.0
      %1001 = vmatpush1.msra.mxu0 0.0
      %1002 = vmatprep.subr.mxu0 0.0
      %1003 = vmatpush1.msra.mxu0 0.0
      %1004 = vmatprep.subr.mxu0 0.0
      %1005 = vmatpush1.msra.mxu0 0.0
      %1006 = vmatprep.subr.mxu0 0.0
      %1007 = vmatpush1.msra.mxu0 0.0
      %1008 = vmatprep.mubr.f32.mxu0 0.0
      %1009 = vmatmul.mubr.f32.gmra.mrb[0].mxu0 %v515
      %v1010 = vpop.f32.mrb[0].mxu0
      %v1011 = vadd.f32 0.0, %v1010
      %v1012 = vpop.f32.mrb[0].mxu0
      %1013 = vmatprep.mubr.f32.mxu0 0.0
      %1014 = vmatmul.mubr.f32.gmra.mrb[0].mxu0 %v517
      %v1015 = vpop.f32.mrb[0].mxu0
      %v1016 = vadd.f32 0.0, %v1015
      %v1017 = vpop.f32.mrb[0].mxu0
      %1018 = vmatprep.mubr.f32.mxu0 0.0
      %1019 = vmatmul.mubr.f32.gmra.mrb[0].mxu0 %v519
      %v1020 = vpop.f32.mrb[0].mxu0
      %v1021 = vadd.f32 0.0, %v1020
      %v1022 = vpop.f32.mrb[0].mxu0
      %1023 = vmatprep.mubr.f32.mxu0 0.0
      %1024 = vmatmul.mubr.f32.gmra.mrb[0].mxu0 %v521
      %v1025 = vpop.f32.mrb[0].mxu0
      %v1026 = vadd.f32 0.0, %v1025
      %v1027 = vpop.f32.mrb[0].mxu0
      %1028 = vmatprep.mubr.f32.mxu0 0.0
      %1029 = vmatmul.mubr.f32.gmra.mrb[0].mxu0 %v523
      %v1030 = vpop.f32.mrb[0].mxu0
      %v1031 = vadd.f32 0.0, %v1030
      %v1032 = vpop.f32.mrb[0].mxu0
      %1033 = vmatprep.mubr.f32.mxu0 0.0
      %1034 = vmatmul.mubr.f32.gmra.mrb[0].mxu0 %v525
      %v1035 = vpop.f32.mrb[0].mxu0
      %v1036 = vadd.f32 0.0, %v1035
      %v1037 = vpop.f32.mrb[0].mxu0
      %1038 = vmatprep.mubr.f32.mxu0 0.0
      %1039 = vmatmul.mubr.f32.gmra.mrb[0].mxu0 %v527
      %v1040 = vpop.f32.mrb[0].mxu0
      %v1041 = vadd.f32 0.0, %v1040
      %v1042 = vpop.f32.mrb[0].mxu0
      %1043 = vmatprep.mubr.f32.mxu0 0.0
      %1044 = vmatmul.mubr.f32.gmra.mrb[0].mxu0 %v939
      %v1045 = vpop.f32.mrb[0].mxu0
      %v1046 = vadd.f32 0.0, %v1045
      %v1047 = vpop.f32.mrb[0].mxu0
      %1048 = vdwg.mxu0
      %v1049 = vadd.f32 %v929, %v1011
      %v1050 = vadd.f32 %v930, %v1016
      %v1051 = vadd.f32 %v931, %v1021
      %v1052 = vadd.f32 %v932, %v1026
      %v1053 = vadd.f32 %v933, %v1031
      %v1054 = vadd.f32 %v934, %v1036
      %v1055 = vadd.f32 %v935, %v1041
      %v1056 = vadd.f32 %v936, %v1046
      %v1057 = vrot.slane %v327, 1
      %v1059 = vsel %vm661, %v1057, 0.0
      %s1060 = scalar_lea.vmem %s2, 20
      %v1061 = vld [vmem:[%s1060] sm:$0xf]
      %v1063 = vsel %vm369, %v1059, 0
      %v1066 = vsel %vm394, %v1061, 0
      %1068 = vmatprep.subr.mxu0 0.0
      %1069 = vmatpush1.msra.mxu0 %v1066
      %1070 = vmatprep.subr.mxu0 0.0
      %1071 = vmatpush1.msra.mxu0 0.0
      %1072 = vmatprep.subr.mxu0 0.0
      %1073 = vmatpush1.msra.mxu0 0.0
      %1074 = vmatprep.subr.mxu0 0.0
      %1075 = vmatpush1.msra.mxu0 0.0
      %1076 = vmatprep.subr.mxu0 0.0
      %1077 = vmatpush1.msra.mxu0 0.0
      %1078 = vmatprep.subr.mxu0 0.0
      %1079 = vmatpush1.msra.mxu0 0.0
      %1080 = vmatprep.subr.mxu0 0.0
      %1081 = vmatpush1.msra.mxu0 0.0
      %1082 = vmatprep.subr.mxu0 0.0
      %1083 = vmatpush1.msra.mxu0 0.0
      %1084 = vmatprep.subr.mxu0 0.0
      %1085 = vmatpush1.msra.mxu0 0.0
      %1086 = vmatprep.subr.mxu0 0.0
      %1087 = vmatpush1.msra.mxu0 0.0
      %1088 = vmatprep.subr.mxu0 0.0
      %1089 = vmatpush1.msra.mxu0 0.0
      %1090 = vmatprep.subr.mxu0 0.0
      %1091 = vmatpush1.msra.mxu0 0.0
      %1092 = vmatprep.subr.mxu0 0.0
      %1093 = vmatpush1.msra.mxu0 0.0
      %1094 = vmatprep.subr.mxu0 0.0
      %1095 = vmatpush1.msra.mxu0 0.0
      %1096 = vmatprep.subr.mxu0 0.0
      %1097 = vmatpush1.msra.mxu0 0.0
      %1098 = vmatprep.subr.mxu0 0.0
      %1099 = vmatpush1.msra.mxu0 0.0
      %1100 = vmatprep.subr.mxu0 0.0
      %1101 = vmatpush1.msra.mxu0 0.0
      %1102 = vmatprep.subr.mxu0 0.0
      %1103 = vmatpush1.msra.mxu0 0.0
      %1104 = vmatprep.subr.mxu0 0.0
      %1105 = vmatpush1.msra.mxu0 0.0
      %1106 = vmatprep.subr.mxu0 0.0
      %1107 = vmatpush1.msra.mxu0 0.0
      %1108 = vmatprep.subr.mxu0 0.0
      %1109 = vmatpush1.msra.mxu0 0.0
      %1110 = vmatprep.subr.mxu0 0.0
      %1111 = vmatpush1.msra.mxu0 0.0
      %1112 = vmatprep.subr.mxu0 0.0
      %1113 = vmatpush1.msra.mxu0 0.0
      %1114 = vmatprep.subr.mxu0 0.0
      %1115 = vmatpush1.msra.mxu0 0.0
      %1116 = vmatprep.subr.mxu0 0.0
      %1117 = vmatpush1.msra.mxu0 0.0
      %1118 = vmatprep.subr.mxu0 0.0
      %1119 = vmatpush1.msra.mxu0 0.0
      %1120 = vmatprep.subr.mxu0 0.0
      %1121 = vmatpush1.msra.mxu0 0.0
      %1122 = vmatprep.subr.mxu0 0.0
      %1123 = vmatpush1.msra.mxu0 0.0
      %1124 = vmatprep.subr.mxu0 0.0
      %1125 = vmatpush1.msra.mxu0 0.0
      %1126 = vmatprep.subr.mxu0 0.0
      %1127 = vmatpush1.msra.mxu0 0.0
      %1128 = vmatprep.subr.mxu0 0.0
      %1129 = vmatpush1.msra.mxu0 0.0
      %1130 = vmatprep.subr.mxu0 0.0
      %1131 = vmatpush1.msra.mxu0 0.0
      %1132 = vmatprep.mubr.f32.mxu0 0.0
      %1133 = vmatmul.mubr.f32.gmra.mrb[0].mxu0 %v676
      %v1134 = vpop.f32.mrb[0].mxu0
      %v1135 = vadd.f32 0.0, %v1134
      %v1136 = vpop.f32.mrb[0].mxu0
      %1137 = vmatprep.mubr.f32.mxu0 0.0
      %1138 = vmatmul.mubr.f32.gmra.mrb[0].mxu0 %v679
      %v1139 = vpop.f32.mrb[0].mxu0
      %v1140 = vadd.f32 0.0, %v1139
      %v1141 = vpop.f32.mrb[0].mxu0
      %1142 = vmatprep.mubr.f32.mxu0 0.0
      %1143 = vmatmul.mubr.f32.gmra.mrb[0].mxu0 %v682
      %v1144 = vpop.f32.mrb[0].mxu0
      %v1145 = vadd.f32 0.0, %v1144
      %v1146 = vpop.f32.mrb[0].mxu0
      %1147 = vmatprep.mubr.f32.mxu0 0.0
      %1148 = vmatmul.mubr.f32.gmra.mrb[0].mxu0 %v685
      %v1149 = vpop.f32.mrb[0].mxu0
      %v1150 = vadd.f32 0.0, %v1149
      %v1151 = vpop.f32.mrb[0].mxu0
      %1152 = vmatprep.mubr.f32.mxu0 0.0
      %1153 = vmatmul.mubr.f32.gmra.mrb[0].mxu0 %v688
      %v1154 = vpop.f32.mrb[0].mxu0
      %v1155 = vadd.f32 0.0, %v1154
      %v1156 = vpop.f32.mrb[0].mxu0
      %1157 = vmatprep.mubr.f32.mxu0 0.0
      %1158 = vmatmul.mubr.f32.gmra.mrb[0].mxu0 %v691
      %v1159 = vpop.f32.mrb[0].mxu0
      %v1160 = vadd.f32 0.0, %v1159
      %v1161 = vpop.f32.mrb[0].mxu0
      %1162 = vmatprep.mubr.f32.mxu0 0.0
      %1163 = vmatmul.mubr.f32.gmra.mrb[0].mxu0 %v694
      %v1164 = vpop.f32.mrb[0].mxu0
      %v1165 = vadd.f32 0.0, %v1164
      %v1166 = vpop.f32.mrb[0].mxu0
      %1167 = vmatprep.mubr.f32.mxu0 0.0
      %1168 = vmatmul.mubr.f32.gmra.mrb[0].mxu0 %v1063
      %v1169 = vpop.f32.mrb[0].mxu0
      %v1170 = vadd.f32 0.0, %v1169
      %v1171 = vpop.f32.mrb[0].mxu0
      %1172 = vdwg.mxu0
      %v1173 = vadd.f32 %v1049, %v1135
      %v1174 = vadd.f32 %v1050, %v1140
      %v1175 = vadd.f32 %v1051, %v1145
      %v1176 = vadd.f32 %v1052, %v1150
      %v1177 = vadd.f32 %v1053, %v1155
      %v1178 = vadd.f32 %v1054, %v1160
      %v1179 = vadd.f32 %v1055, %v1165
      %v1180 = vadd.f32 %v1056, %v1170
      %s1181 = scalar_lea.vmem %s2, 24
      %v1182 = vld [vmem:[%s1181] sm:$0xf]
      %v1184 = vsel %vm394, %v1182, 0
      %1186 = vmatprep.subr.mxu0 0.0
      %1187 = vmatpush1.msra.mxu0 %v1184
      %1188 = vmatprep.subr.mxu0 0.0
      %1189 = vmatpush1.msra.mxu0 0.0
      %1190 = vmatprep.subr.mxu0 0.0
      %1191 = vmatpush1.msra.mxu0 0.0
      %1192 = vmatprep.subr.mxu0 0.0
      %1193 = vmatpush1.msra.mxu0 0.0
      %1194 = vmatprep.subr.mxu0 0.0
      %1195 = vmatpush1.msra.mxu0 0.0
      %1196 = vmatprep.subr.mxu0 0.0
      %1197 = vmatpush1.msra.mxu0 0.0
      %1198 = vmatprep.subr.mxu0 0.0
      %1199 = vmatpush1.msra.mxu0 0.0
      %1200 = vmatprep.subr.mxu0 0.0
      %1201 = vmatpush1.msra.mxu0 0.0
      %1202 = vmatprep.subr.mxu0 0.0
      %1203 = vmatpush1.msra.mxu0 0.0
      %1204 = vmatprep.subr.mxu0 0.0
      %1205 = vmatpush1.msra.mxu0 0.0
      %1206 = vmatprep.subr.mxu0 0.0
      %1207 = vmatpush1.msra.mxu0 0.0
      %1208 = vmatprep.subr.mxu0 0.0
      %1209 = vmatpush1.msra.mxu0 0.0
      %1210 = vmatprep.subr.mxu0 0.0
      %1211 = vmatpush1.msra.mxu0 0.0
      %1212 = vmatprep.subr.mxu0 0.0
      %1213 = vmatpush1.msra.mxu0 0.0
      %1214 = vmatprep.subr.mxu0 0.0
      %1215 = vmatpush1.msra.mxu0 0.0
      %1216 = vmatprep.subr.mxu0 0.0
      %1217 = vmatpush1.msra.mxu0 0.0
      %1218 = vmatprep.subr.mxu0 0.0
      %1219 = vmatpush1.msra.mxu0 0.0
      %1220 = vmatprep.subr.mxu0 0.0
      %1221 = vmatpush1.msra.mxu0 0.0
      %1222 = vmatprep.subr.mxu0 0.0
      %1223 = vmatpush1.msra.mxu0 0.0
      %1224 = vmatprep.subr.mxu0 0.0
      %1225 = vmatpush1.msra.mxu0 0.0
      %1226 = vmatprep.subr.mxu0 0.0
      %1227 = vmatpush1.msra.mxu0 0.0
      %1228 = vmatprep.subr.mxu0 0.0
      %1229 = vmatpush1.msra.mxu0 0.0
      %1230 = vmatprep.subr.mxu0 0.0
      %1231 = vmatpush1.msra.mxu0 0.0
      %1232 = vmatprep.subr.mxu0 0.0
      %1233 = vmatpush1.msra.mxu0 0.0
      %1234 = vmatprep.subr.mxu0 0.0
      %1235 = vmatpush1.msra.mxu0 0.0
      %1236 = vmatprep.subr.mxu0 0.0
      %1237 = vmatpush1.msra.mxu0 0.0
      %1238 = vmatprep.subr.mxu0 0.0
      %1239 = vmatpush1.msra.mxu0 0.0
      %1240 = vmatprep.subr.mxu0 0.0
      %1241 = vmatpush1.msra.mxu0 0.0
      %1242 = vmatprep.subr.mxu0 0.0
      %1243 = vmatpush1.msra.mxu0 0.0
      %1244 = vmatprep.subr.mxu0 0.0
      %1245 = vmatpush1.msra.mxu0 0.0
      %1246 = vmatprep.subr.mxu0 0.0
      %1247 = vmatpush1.msra.mxu0 0.0
      %1248 = vmatprep.subr.mxu0 0.0
      %1249 = vmatpush1.msra.mxu0 0.0
      %1250 = vmatprep.mubr.f32.mxu0 0.0
      %1251 = vmatmul.mubr.f32.gmra.mrb[0].mxu0 %v377
      %v1252 = vpop.f32.mrb[0].mxu0
      %v1253 = vadd.f32 0.0, %v1252
      %v1254 = vpop.f32.mrb[0].mxu0
      %1255 = vmatprep.mubr.f32.mxu0 0.0
      %1256 = vmatmul.mubr.f32.gmra.mrb[0].mxu0 %v380
      %v1257 = vpop.f32.mrb[0].mxu0
      %v1258 = vadd.f32 0.0, %v1257
      %v1259 = vpop.f32.mrb[0].mxu0
      %1260 = vmatprep.mubr.f32.mxu0 0.0
      %1261 = vmatmul.mubr.f32.gmra.mrb[0].mxu0 %v383
      %v1262 = vpop.f32.mrb[0].mxu0
      %v1263 = vadd.f32 0.0, %v1262
      %v1264 = vpop.f32.mrb[0].mxu0
      %1265 = vmatprep.mubr.f32.mxu0 0.0
      %1266 = vmatmul.mubr.f32.gmra.mrb[0].mxu0 %v386
      %v1267 = vpop.f32.mrb[0].mxu0
      %v1268 = vadd.f32 0.0, %v1267
      %v1269 = vpop.f32.mrb[0].mxu0
      %1270 = vmatprep.mubr.f32.mxu0 0.0
      %1271 = vmatmul.mubr.f32.gmra.mrb[0].mxu0 %v389
      %v1272 = vpop.f32.mrb[0].mxu0
      %v1273 = vadd.f32 0.0, %v1272
      %v1274 = vpop.f32.mrb[0].mxu0
      %1275 = vmatprep.mubr.f32.mxu0 0.0
      %1276 = vmatmul.mubr.f32.gmra.mrb[0].mxu0 %v392
      %v1277 = vpop.f32.mrb[0].mxu0
      %v1278 = vadd.f32 0.0, %v1277
      %v1279 = vpop.f32.mrb[0].mxu0
      %1280 = vmatprep.mubr.f32.mxu0 0.0
      %1281 = vmatmul.mubr.f32.gmra.mrb[0].mxu0 %v819
      %v1282 = vpop.f32.mrb[0].mxu0
      %v1283 = vadd.f32 0.0, %v1282
      %v1284 = vpop.f32.mrb[0].mxu0
      %1285 = vmatprep.mubr.f32.mxu0 0.0
      %1286 = vmatmul.mubr.f32.gmra.mrb[0].mxu0 %v371
      %v1287 = vpop.f32.mrb[0].mxu0
      %v1288 = vadd.f32 0.0, %v1287
      %v1289 = vpop.f32.mrb[0].mxu0
      %1290 = vdwg.mxu0
      %v1291 = vadd.f32 %v1173, %v1253
      %v1292 = vadd.f32 %v1174, %v1258
      %v1293 = vadd.f32 %v1175, %v1263
      %v1294 = vadd.f32 %v1176, %v1268
      %v1295 = vadd.f32 %v1177, %v1273
      %v1296 = vadd.f32 %v1178, %v1278
      %v1297 = vadd.f32 %v1179, %v1283
      %v1298 = vadd.f32 %v1180, %v1288
      %s1299 = scalar_lea.vmem %s2, 28
      %v1300 = vld [vmem:[%s1299] sm:$0xf]
      %v1302 = vsel %vm394, %v1300, 0
      %1304 = vmatprep.subr.mxu0 0.0
      %1305 = vmatpush1.msra.mxu0 %v1302
      %1306 = vmatprep.subr.mxu0 0.0
      %1307 = vmatpush1.msra.mxu0 0.0
      %1308 = vmatprep.subr.mxu0 0.0
      %1309 = vmatpush1.msra.mxu0 0.0
      %1310 = vmatprep.subr.mxu0 0.0
      %1311 = vmatpush1.msra.mxu0 0.0
      %1312 = vmatprep.subr.mxu0 0.0
      %1313 = vmatpush1.msra.mxu0 0.0
      %1314 = vmatprep.subr.mxu0 0.0
      %1315 = vmatpush1.msra.mxu0 0.0
      %1316 = vmatprep.subr.mxu0 0.0
      %1317 = vmatpush1.msra.mxu0 0.0
      %1318 = vmatprep.subr.mxu0 0.0
      %1319 = vmatpush1.msra.mxu0 0.0
      %1320 = vmatprep.subr.mxu0 0.0
      %1321 = vmatpush1.msra.mxu0 0.0
      %1322 = vmatprep.subr.mxu0 0.0
      %1323 = vmatpush1.msra.mxu0 0.0
      %1324 = vmatprep.subr.mxu0 0.0
      %1325 = vmatpush1.msra.mxu0 0.0
      %1326 = vmatprep.subr.mxu0 0.0
      %1327 = vmatpush1.msra.mxu0 0.0
      %1328 = vmatprep.subr.mxu0 0.0
      %1329 = vmatpush1.msra.mxu0 0.0
      %1330 = vmatprep.subr.mxu0 0.0
      %1331 = vmatpush1.msra.mxu0 0.0
      %1332 = vmatprep.subr.mxu0 0.0
      %1333 = vmatpush1.msra.mxu0 0.0
      %1334 = vmatprep.subr.mxu0 0.0
      %1335 = vmatpush1.msra.mxu0 0.0
      %1336 = vmatprep.subr.mxu0 0.0
      %1337 = vmatpush1.msra.mxu0 0.0
      %1338 = vmatprep.subr.mxu0 0.0
      %1339 = vmatpush1.msra.mxu0 0.0
      %1340 = vmatprep.subr.mxu0 0.0
      %1341 = vmatpush1.msra.mxu0 0.0
      %1342 = vmatprep.subr.mxu0 0.0
      %1343 = vmatpush1.msra.mxu0 0.0
      %1344 = vmatprep.subr.mxu0 0.0
      %1345 = vmatpush1.msra.mxu0 0.0
      %1346 = vmatprep.subr.mxu0 0.0
      %1347 = vmatpush1.msra.mxu0 0.0
      %1348 = vmatprep.subr.mxu0 0.0
      %1349 = vmatpush1.msra.mxu0 0.0
      %1350 = vmatprep.subr.mxu0 0.0
      %1351 = vmatpush1.msra.mxu0 0.0
      %1352 = vmatprep.subr.mxu0 0.0
      %1353 = vmatpush1.msra.mxu0 0.0
      %1354 = vmatprep.subr.mxu0 0.0
      %1355 = vmatpush1.msra.mxu0 0.0
      %1356 = vmatprep.subr.mxu0 0.0
      %1357 = vmatpush1.msra.mxu0 0.0
      %1358 = vmatprep.subr.mxu0 0.0
      %1359 = vmatpush1.msra.mxu0 0.0
      %1360 = vmatprep.subr.mxu0 0.0
      %1361 = vmatpush1.msra.mxu0 0.0
      %1362 = vmatprep.subr.mxu0 0.0
      %1363 = vmatpush1.msra.mxu0 0.0
      %1364 = vmatprep.subr.mxu0 0.0
      %1365 = vmatpush1.msra.mxu0 0.0
      %1366 = vmatprep.subr.mxu0 0.0
      %1367 = vmatpush1.msra.mxu0 0.0
      %1368 = vmatprep.mubr.f32.mxu0 0.0
      %1369 = vmatmul.mubr.f32.gmra.mrb[0].mxu0 %v517
      %v1370 = vpop.f32.mrb[0].mxu0
      %v1371 = vadd.f32 0.0, %v1370
      %v1372 = vpop.f32.mrb[0].mxu0
      %1373 = vmatprep.mubr.f32.mxu0 0.0
      %1374 = vmatmul.mubr.f32.gmra.mrb[0].mxu0 %v519
      %v1375 = vpop.f32.mrb[0].mxu0
      %v1376 = vadd.f32 0.0, %v1375
      %v1377 = vpop.f32.mrb[0].mxu0
      %1378 = vmatprep.mubr.f32.mxu0 0.0
      %1379 = vmatmul.mubr.f32.gmra.mrb[0].mxu0 %v521
      %v1380 = vpop.f32.mrb[0].mxu0
      %v1381 = vadd.f32 0.0, %v1380
      %v1382 = vpop.f32.mrb[0].mxu0
      %1383 = vmatprep.mubr.f32.mxu0 0.0
      %1384 = vmatmul.mubr.f32.gmra.mrb[0].mxu0 %v523
      %v1385 = vpop.f32.mrb[0].mxu0
      %v1386 = vadd.f32 0.0, %v1385
      %v1387 = vpop.f32.mrb[0].mxu0
      %1388 = vmatprep.mubr.f32.mxu0 0.0
      %1389 = vmatmul.mubr.f32.gmra.mrb[0].mxu0 %v525
      %v1390 = vpop.f32.mrb[0].mxu0
      %v1391 = vadd.f32 0.0, %v1390
      %v1392 = vpop.f32.mrb[0].mxu0
      %1393 = vmatprep.mubr.f32.mxu0 0.0
      %1394 = vmatmul.mubr.f32.gmra.mrb[0].mxu0 %v527
      %v1395 = vpop.f32.mrb[0].mxu0
      %v1396 = vadd.f32 0.0, %v1395
      %v1397 = vpop.f32.mrb[0].mxu0
      %1398 = vmatprep.mubr.f32.mxu0 0.0
      %1399 = vmatmul.mubr.f32.gmra.mrb[0].mxu0 %v939
      %v1400 = vpop.f32.mrb[0].mxu0
      %v1401 = vadd.f32 0.0, %v1400
      %v1402 = vpop.f32.mrb[0].mxu0
      %1403 = vmatprep.mubr.f32.mxu0 0.0
      %1404 = vmatmul.mubr.f32.gmra.mrb[0].mxu0 %v513
      %v1405 = vpop.f32.mrb[0].mxu0
      %v1406 = vadd.f32 0.0, %v1405
      %v1407 = vpop.f32.mrb[0].mxu0
      %1408 = vdwg.mxu0
      %v1409 = vadd.f32 %v1291, %v1371
      %v1410 = vadd.f32 %v1292, %v1376
      %v1411 = vadd.f32 %v1293, %v1381
      %v1412 = vadd.f32 %v1294, %v1386
      %v1413 = vadd.f32 %v1295, %v1391
      %v1414 = vadd.f32 %v1296, %v1396
      %v1415 = vadd.f32 %v1297, %v1401
      %v1416 = vadd.f32 %v1298, %v1406
      %s1417 = scalar_lea.vmem %s2, 32
      %v1418 = vld [vmem:[%s1417] sm:$0xf]
      %v1420 = vsel %vm394, %v1418, 0
      %1422 = vmatprep.subr.mxu0 0.0
      %1423 = vmatpush1.msra.mxu0 %v1420
      %1424 = vmatprep.subr.mxu0 0.0
      %1425 = vmatpush1.msra.mxu0 0.0
      %1426 = vmatprep.subr.mxu0 0.0
      %1427 = vmatpush1.msra.mxu0 0.0
      %1428 = vmatprep.subr.mxu0 0.0
      %1429 = vmatpush1.msra.mxu0 0.0
      %1430 = vmatprep.subr.mxu0 0.0
      %1431 = vmatpush1.msra.mxu0 0.0
      %1432 = vmatprep.subr.mxu0 0.0
      %1433 = vmatpush1.msra.mxu0 0.0
      %1434 = vmatprep.subr.mxu0 0.0
      %1435 = vmatpush1.msra.mxu0 0.0
      %1436 = vmatprep.subr.mxu0 0.0
      %1437 = vmatpush1.msra.mxu0 0.0
      %1438 = vmatprep.subr.mxu0 0.0
      %1439 = vmatpush1.msra.mxu0 0.0
      %1440 = vmatprep.subr.mxu0 0.0
      %1441 = vmatpush1.msra.mxu0 0.0
      %1442 = vmatprep.subr.mxu0 0.0
      %1443 = vmatpush1.msra.mxu0 0.0
      %1444 = vmatprep.subr.mxu0 0.0
      %1445 = vmatpush1.msra.mxu0 0.0
      %1446 = vmatprep.subr.mxu0 0.0
      %1447 = vmatpush1.msra.mxu0 0.0
      %1448 = vmatprep.subr.mxu0 0.0
      %1449 = vmatpush1.msra.mxu0 0.0
      %1450 = vmatprep.subr.mxu0 0.0
      %1451 = vmatpush1.msra.mxu0 0.0
      %1452 = vmatprep.subr.mxu0 0.0
      %1453 = vmatpush1.msra.mxu0 0.0
      %1454 = vmatprep.subr.mxu0 0.0
      %1455 = vmatpush1.msra.mxu0 0.0
      %1456 = vmatprep.subr.mxu0 0.0
      %1457 = vmatpush1.msra.mxu0 0.0
      %1458 = vmatprep.subr.mxu0 0.0
      %1459 = vmatpush1.msra.mxu0 0.0
      %1460 = vmatprep.subr.mxu0 0.0
      %1461 = vmatpush1.msra.mxu0 0.0
      %1462 = vmatprep.subr.mxu0 0.0
      %1463 = vmatpush1.msra.mxu0 0.0
      %1464 = vmatprep.subr.mxu0 0.0
      %1465 = vmatpush1.msra.mxu0 0.0
      %1466 = vmatprep.subr.mxu0 0.0
      %1467 = vmatpush1.msra.mxu0 0.0
      %1468 = vmatprep.subr.mxu0 0.0
      %1469 = vmatpush1.msra.mxu0 0.0
      %1470 = vmatprep.subr.mxu0 0.0
      %1471 = vmatpush1.msra.mxu0 0.0
      %1472 = vmatprep.subr.mxu0 0.0
      %1473 = vmatpush1.msra.mxu0 0.0
      %1474 = vmatprep.subr.mxu0 0.0
      %1475 = vmatpush1.msra.mxu0 0.0
      %1476 = vmatprep.subr.mxu0 0.0
      %1477 = vmatpush1.msra.mxu0 0.0
      %1478 = vmatprep.subr.mxu0 0.0
      %1479 = vmatpush1.msra.mxu0 0.0
      %1480 = vmatprep.subr.mxu0 0.0
      %1481 = vmatpush1.msra.mxu0 0.0
      %1482 = vmatprep.subr.mxu0 0.0
      %1483 = vmatpush1.msra.mxu0 0.0
      %1484 = vmatprep.subr.mxu0 0.0
      %1485 = vmatpush1.msra.mxu0 0.0
      %1486 = vmatprep.mubr.f32.mxu0 0.0
      %1487 = vmatmul.mubr.f32.gmra.mrb[0].mxu0 %v679
      %v1488 = vpop.f32.mrb[0].mxu0
      %v1489 = vadd.f32 0.0, %v1488
      %v1490 = vpop.f32.mrb[0].mxu0
      %1491 = vmatprep.mubr.f32.mxu0 0.0
      %1492 = vmatmul.mubr.f32.gmra.mrb[0].mxu0 %v682
      %v1493 = vpop.f32.mrb[0].mxu0
      %v1494 = vadd.f32 0.0, %v1493
      %v1495 = vpop.f32.mrb[0].mxu0
      %1496 = vmatprep.mubr.f32.mxu0 0.0
      %1497 = vmatmul.mubr.f32.gmra.mrb[0].mxu0 %v685
      %v1498 = vpop.f32.mrb[0].mxu0
      %v1499 = vadd.f32 0.0, %v1498
      %v1500 = vpop.f32.mrb[0].mxu0
      %1501 = vmatprep.mubr.f32.mxu0 0.0
      %1502 = vmatmul.mubr.f32.gmra.mrb[0].mxu0 %v688
      %v1503 = vpop.f32.mrb[0].mxu0
      %v1504 = vadd.f32 0.0, %v1503
      %v1505 = vpop.f32.mrb[0].mxu0
      %1506 = vmatprep.mubr.f32.mxu0 0.0
      %1507 = vmatmul.mubr.f32.gmra.mrb[0].mxu0 %v691
      %v1508 = vpop.f32.mrb[0].mxu0
      %v1509 = vadd.f32 0.0, %v1508
      %v1510 = vpop.f32.mrb[0].mxu0
      %1511 = vmatprep.mubr.f32.mxu0 0.0
      %1512 = vmatmul.mubr.f32.gmra.mrb[0].mxu0 %v694
      %v1513 = vpop.f32.mrb[0].mxu0
      %v1514 = vadd.f32 0.0, %v1513
      %v1515 = vpop.f32.mrb[0].mxu0
      %1516 = vmatprep.mubr.f32.mxu0 0.0
      %1517 = vmatmul.mubr.f32.gmra.mrb[0].mxu0 %v1063
      %v1518 = vpop.f32.mrb[0].mxu0
      %v1519 = vadd.f32 0.0, %v1518
      %v1520 = vpop.f32.mrb[0].mxu0
      %1521 = vmatprep.mubr.f32.mxu0 0.0
      %1522 = vmatmul.mubr.f32.gmra.mrb[0].mxu0 %v673
      %v1523 = vpop.f32.mrb[0].mxu0
      %v1524 = vadd.f32 0.0, %v1523
      %v1525 = vpop.f32.mrb[0].mxu0
      %1526 = vdwg.mxu0
      %v1527 = vadd.f32 %v1409, %v1489
      %v1528 = vadd.f32 %v1410, %v1494
      %v1529 = vadd.f32 %v1411, %v1499
      %v1530 = vadd.f32 %v1412, %v1504
      %v1531 = vadd.f32 %v1413, %v1509
      %v1532 = vadd.f32 %v1414, %v1514
      %v1533 = vadd.f32 %v1415, %v1519
      %v1534 = vadd.f32 %v1416, %v1524
      %v1535 = vmax.f32 %v1527, 0.0
      %v1536 = vmax.f32 %v1528, 0.0
      %v1537 = vmax.f32 %v1529, 0.0
      %v1538 = vmax.f32 %v1530, 0.0
      %v1539 = vmax.f32 %v1531, 0.0
      %v1540 = vmax.f32 %v1532, 0.0
      %v1541 = vmax.f32 %v1533, 0.0
      %v1542 = vmax.f32 %v1534, 0.0
      %v1543 = vld [vmem:[%s5] sm:$0x1]
      %v1545 = vlaneseq
      %v1546 = vshrl.u32 %v1545, 7
      %v1547 = vsub.s32 0, %v1546
      %v1548 = vrot.slane %v1543, %v1547
      %v1557 = vrot.slane %v1535, 7
      %v1558 = vrot.slane %v1536, 7
      %v1559 = vrot.slane %v1537, 7
      %v1560 = vrot.slane %v1538, 7
      %v1561 = vrot.slane %v1539, 7
      %v1562 = vrot.slane %v1540, 7
      %v1563 = vrot.slane %v1541, 7
      %v1571 = vsel %vm359, 0.0, %v1557
      %v1572 = vsel %vm359, 0.0, %v1558
      %v1573 = vsel %vm359, 0.0, %v1559
      %v1574 = vsel %vm359, 0.0, %v1560
      %v1575 = vsel %vm359, 0.0, %v1561
      %v1576 = vsel %vm359, 0.0, %v1562
      %v1577 = vsel %vm359, 0.0, %v1563
      %v1578 = vld [vmem:[%s3] sm:$0xff]
      %vm1579 = vcmask 64512
      %v1580 = vsel %vm1579, %v360, 0
      %v1583 = vsel %vm1579, %v1571, 0
      %v1586 = vsel %vm1579, %v1572, 0
      %v1589 = vsel %vm1579, %v1573, 0
      %v1592 = vsel %vm1579, %v1574, 0
      %v1595 = vsel %vm1579, %v1575, 0
      %v1598 = vsel %vm1579, %v1576, 0
      %v1601 = vsel %vm1579, %v1577, 0
      %1603 = vmatprep.subr.mxu0 0.0
      %1604 = vmatpush1.msra.mxu0 %v1578
      %1605 = vmatprep.subr.mxu0 0.0
      %1606 = vmatpush1.msra.mxu0 0.0
      %1607 = vmatprep.subr.mxu0 0.0
      %1608 = vmatpush1.msra.mxu0 0.0
      %1609 = vmatprep.subr.mxu0 0.0
      %1610 = vmatpush1.msra.mxu0 0.0
      %1611 = vmatprep.subr.mxu0 0.0
      %1612 = vmatpush1.msra.mxu0 0.0
      %1613 = vmatprep.subr.mxu0 0.0
      %1614 = vmatpush1.msra.mxu0 0.0
      %1615 = vmatprep.subr.mxu0 0.0
      %1616 = vmatpush1.msra.mxu0 0.0
      %1617 = vmatprep.subr.mxu0 0.0
      %1618 = vmatpush1.msra.mxu0 0.0
      %1619 = vmatprep.subr.mxu0 0.0
      %1620 = vmatpush1.msra.mxu0 0.0
      %1621 = vmatprep.subr.mxu0 0.0
      %1622 = vmatpush1.msra.mxu0 0.0
      %1623 = vmatprep.subr.mxu0 0.0
      %1624 = vmatpush1.msra.mxu0 0.0
      %1625 = vmatprep.subr.mxu0 0.0
      %1626 = vmatpush1.msra.mxu0 0.0
      %1627 = vmatprep.subr.mxu0 0.0
      %1628 = vmatpush1.msra.mxu0 0.0
      %1629 = vmatprep.subr.mxu0 0.0
      %1630 = vmatpush1.msra.mxu0 0.0
      %1631 = vmatprep.subr.mxu0 0.0
      %1632 = vmatpush1.msra.mxu0 0.0
      %1633 = vmatprep.subr.mxu0 0.0
      %1634 = vmatpush1.msra.mxu0 0.0
      %1635 = vmatprep.subr.mxu0 0.0
      %1636 = vmatpush1.msra.mxu0 0.0
      %1637 = vmatprep.subr.mxu0 0.0
      %1638 = vmatpush1.msra.mxu0 0.0
      %1639 = vmatprep.subr.mxu0 0.0
      %1640 = vmatpush1.msra.mxu0 0.0
      %1641 = vmatprep.subr.mxu0 0.0
      %1642 = vmatpush1.msra.mxu0 0.0
      %1643 = vmatprep.subr.mxu0 0.0
      %1644 = vmatpush1.msra.mxu0 0.0
      %1645 = vmatprep.subr.mxu0 0.0
      %1646 = vmatpush1.msra.mxu0 0.0
      %1647 = vmatprep.subr.mxu0 0.0
      %1648 = vmatpush1.msra.mxu0 0.0
      %1649 = vmatprep.subr.mxu0 0.0
      %1650 = vmatpush1.msra.mxu0 0.0
      %1651 = vmatprep.subr.mxu0 0.0
      %1652 = vmatpush1.msra.mxu0 0.0
      %1653 = vmatprep.subr.mxu0 0.0
      %1654 = vmatpush1.msra.mxu0 0.0
      %1655 = vmatprep.subr.mxu0 0.0
      %1656 = vmatpush1.msra.mxu0 0.0
      %1657 = vmatprep.subr.mxu0 0.0
      %1658 = vmatpush1.msra.mxu0 0.0
      %1659 = vmatprep.subr.mxu0 0.0
      %1660 = vmatpush1.msra.mxu0 0.0
      %1661 = vmatprep.subr.mxu0 0.0
      %1662 = vmatpush1.msra.mxu0 0.0
      %1663 = vmatprep.subr.mxu0 0.0
      %1664 = vmatpush1.msra.mxu0 0.0
      %1665 = vmatprep.subr.mxu0 0.0
      %1666 = vmatpush1.msra.mxu0 0.0
      %1667 = vmatprep.mubr.f32.mxu0 0.0
      %1668 = vmatmul.mubr.f32.gmra.mrb[0].mxu0 %v1580
      %v1669 = vpop.f32.mrb[0].mxu0
      %v1670 = vadd.f32 0.0, %v1669
      %v1671 = vpop.f32.mrb[0].mxu0
      %1672 = vmatprep.mubr.f32.mxu0 0.0
      %1673 = vmatmul.mubr.f32.gmra.mrb[0].mxu0 %v1583
      %v1674 = vpop.f32.mrb[0].mxu0
      %v1675 = vadd.f32 0.0, %v1674
      %v1676 = vpop.f32.mrb[0].mxu0
      %1677 = vmatprep.mubr.f32.mxu0 0.0
      %1678 = vmatmul.mubr.f32.gmra.mrb[0].mxu0 %v1586
      %v1679 = vpop.f32.mrb[0].mxu0
      %v1680 = vadd.f32 0.0, %v1679
      %v1681 = vpop.f32.mrb[0].mxu0
      %1682 = vmatprep.mubr.f32.mxu0 0.0
      %1683 = vmatmul.mubr.f32.gmra.mrb[0].mxu0 %v1589
      %v1684 = vpop.f32.mrb[0].mxu0
      %v1685 = vadd.f32 0.0, %v1684
      %v1686 = vpop.f32.mrb[0].mxu0
      %1687 = vmatprep.mubr.f32.mxu0 0.0
      %1688 = vmatmul.mubr.f32.gmra.mrb[0].mxu0 %v1592
      %v1689 = vpop.f32.mrb[0].mxu0
      %v1690 = vadd.f32 0.0, %v1689
      %v1691 = vpop.f32.mrb[0].mxu0
      %1692 = vmatprep.mubr.f32.mxu0 0.0
      %1693 = vmatmul.mubr.f32.gmra.mrb[0].mxu0 %v1595
      %v1694 = vpop.f32.mrb[0].mxu0
      %v1695 = vadd.f32 0.0, %v1694
      %v1696 = vpop.f32.mrb[0].mxu0
      %1697 = vmatprep.mubr.f32.mxu0 0.0
      %1698 = vmatmul.mubr.f32.gmra.mrb[0].mxu0 %v1598
      %v1699 = vpop.f32.mrb[0].mxu0
      %v1700 = vadd.f32 0.0, %v1699
      %v1701 = vpop.f32.mrb[0].mxu0
      %1702 = vmatprep.mubr.f32.mxu0 0.0
      %1703 = vmatmul.mubr.f32.gmra.mrb[0].mxu0 %v1601
      %v1704 = vpop.f32.mrb[0].mxu0
      %v1705 = vadd.f32 0.0, %v1704
      %v1706 = vpop.f32.mrb[0].mxu0
      %1707 = vdwg.mxu0
      %v1708 = vadd.f32 %v1548, %v1670
      %v1709 = vadd.f32 %v1548, %v1675
      %v1710 = vadd.f32 %v1548, %v1680
      %v1711 = vadd.f32 %v1548, %v1685
      %v1712 = vadd.f32 %v1548, %v1690
      %v1713 = vadd.f32 %v1548, %v1695
      %v1714 = vadd.f32 %v1548, %v1700
      %v1715 = vadd.f32 %v1548, %v1705
      %s1716 = scalar_lea.vmem %s3, 8
      %v1717 = vld [vmem:[%s1716] sm:$0xff]
      %v1718 = vsel %vm1579, 0.0, 0
      %v1720 = vsel %vm1579, %v1535, 0
      %v1722 = vsel %vm1579, %v1536, 0
      %v1724 = vsel %vm1579, %v1537, 0
      %v1726 = vsel %vm1579, %v1538, 0
      %v1728 = vsel %vm1579, %v1539, 0
      %v1730 = vsel %vm1579, %v1540, 0
      %v1732 = vsel %vm1579, %v1541, 0
      %1734 = vmatprep.subr.mxu0 0.0
      %1735 = vmatpush1.msra.mxu0 %v1717
      %1736 = vmatprep.subr.mxu0 0.0
      %1737 = vmatpush1.msra.mxu0 0.0
      %1738 = vmatprep.subr.mxu0 0.0
      %1739 = vmatpush1.msra.mxu0 0.0
      %1740 = vmatprep.subr.mxu0 0.0
      %1741 = vmatpush1.msra.mxu0 0.0
      %1742 = vmatprep.subr.mxu0 0.0
      %1743 = vmatpush1.msra.mxu0 0.0
      %1744 = vmatprep.subr.mxu0 0.0
      %1745 = vmatpush1.msra.mxu0 0.0
      %1746 = vmatprep.subr.mxu0 0.0
      %1747 = vmatpush1.msra.mxu0 0.0
      %1748 = vmatprep.subr.mxu0 0.0
      %1749 = vmatpush1.msra.mxu0 0.0
      %1750 = vmatprep.subr.mxu0 0.0
      %1751 = vmatpush1.msra.mxu0 0.0
      %1752 = vmatprep.subr.mxu0 0.0
      %1753 = vmatpush1.msra.mxu0 0.0
      %1754 = vmatprep.subr.mxu0 0.0
      %1755 = vmatpush1.msra.mxu0 0.0
      %1756 = vmatprep.subr.mxu0 0.0
      %1757 = vmatpush1.msra.mxu0 0.0
      %1758 = vmatprep.subr.mxu0 0.0
      %1759 = vmatpush1.msra.mxu0 0.0
      %1760 = vmatprep.subr.mxu0 0.0
      %1761 = vmatpush1.msra.mxu0 0.0
      %1762 = vmatprep.subr.mxu0 0.0
      %1763 = vmatpush1.msra.mxu0 0.0
      %1764 = vmatprep.subr.mxu0 0.0
      %1765 = vmatpush1.msra.mxu0 0.0
      %1766 = vmatprep.subr.mxu0 0.0
      %1767 = vmatpush1.msra.mxu0 0.0
      %1768 = vmatprep.subr.mxu0 0.0
      %1769 = vmatpush1.msra.mxu0 0.0
      %1770 = vmatprep.subr.mxu0 0.0
      %1771 = vmatpush1.msra.mxu0 0.0
      %1772 = vmatprep.subr.mxu0 0.0
      %1773 = vmatpush1.msra.mxu0 0.0
      %1774 = vmatprep.subr.mxu0 0.0
      %1775 = vmatpush1.msra.mxu0 0.0
      %1776 = vmatprep.subr.mxu0 0.0
      %1777 = vmatpush1.msra.mxu0 0.0
      %1778 = vmatprep.subr.mxu0 0.0
      %1779 = vmatpush1.msra.mxu0 0.0
      %1780 = vmatprep.subr.mxu0 0.0
      %1781 = vmatpush1.msra.mxu0 0.0
      %1782 = vmatprep.subr.mxu0 0.0
      %1783 = vmatpush1.msra.mxu0 0.0
      %1784 = vmatprep.subr.mxu0 0.0
      %1785 = vmatpush1.msra.mxu0 0.0
      %1786 = vmatprep.subr.mxu0 0.0
      %1787 = vmatpush1.msra.mxu0 0.0
      %1788 = vmatprep.subr.mxu0 0.0
      %1789 = vmatpush1.msra.mxu0 0.0
      %1790 = vmatprep.subr.mxu0 0.0
      %1791 = vmatpush1.msra.mxu0 0.0
      %1792 = vmatprep.subr.mxu0 0.0
      %1793 = vmatpush1.msra.mxu0 0.0
      %1794 = vmatprep.subr.mxu0 0.0
      %1795 = vmatpush1.msra.mxu0 0.0
      %1796 = vmatprep.subr.mxu0 0.0
      %1797 = vmatpush1.msra.mxu0 0.0
      %1798 = vmatprep.mubr.f32.mxu0 0.0
      %1799 = vmatmul.mubr.f32.gmra.mrb[0].mxu0 %v1718
      %v1800 = vpop.f32.mrb[0].mxu0
      %v1801 = vadd.f32 0.0, %v1800
      %v1802 = vpop.f32.mrb[0].mxu0
      %1803 = vmatprep.mubr.f32.mxu0 0.0
      %1804 = vmatmul.mubr.f32.gmra.mrb[0].mxu0 %v1720
      %v1805 = vpop.f32.mrb[0].mxu0
      %v1806 = vadd.f32 0.0, %v1805
      %v1807 = vpop.f32.mrb[0].mxu0
      %1808 = vmatprep.mubr.f32.mxu0 0.0
      %1809 = vmatmul.mubr.f32.gmra.mrb[0].mxu0 %v1722
      %v1810 = vpop.f32.mrb[0].mxu0
      %v1811 = vadd.f32 0.0, %v1810
      %v1812 = vpop.f32.mrb[0].mxu0
      %1813 = vmatprep.mubr.f32.mxu0 0.0
      %1814 = vmatmul.mubr.f32.gmra.mrb[0].mxu0 %v1724
      %v1815 = vpop.f32.mrb[0].mxu0
      %v1816 = vadd.f32 0.0, %v1815
      %v1817 = vpop.f32.mrb[0].mxu0
      %1818 = vmatprep.mubr.f32.mxu0 0.0
      %1819 = vmatmul.mubr.f32.gmra.mrb[0].mxu0 %v1726
      %v1820 = vpop.f32.mrb[0].mxu0
      %v1821 = vadd.f32 0.0, %v1820
      %v1822 = vpop.f32.mrb[0].mxu0
      %1823 = vmatprep.mubr.f32.mxu0 0.0
      %1824 = vmatmul.mubr.f32.gmra.mrb[0].mxu0 %v1728
      %v1825 = vpop.f32.mrb[0].mxu0
      %v1826 = vadd.f32 0.0, %v1825
      %v1827 = vpop.f32.mrb[0].mxu0
      %1828 = vmatprep.mubr.f32.mxu0 0.0
      %1829 = vmatmul.mubr.f32.gmra.mrb[0].mxu0 %v1730
      %v1830 = vpop.f32.mrb[0].mxu0
      %v1831 = vadd.f32 0.0, %v1830
      %v1832 = vpop.f32.mrb[0].mxu0
      %1833 = vmatprep.mubr.f32.mxu0 0.0
      %1834 = vmatmul.mubr.f32.gmra.mrb[0].mxu0 %v1732
      %v1835 = vpop.f32.mrb[0].mxu0
      %v1836 = vadd.f32 0.0, %v1835
      %v1837 = vpop.f32.mrb[0].mxu0
      %1838 = vdwg.mxu0
      %v1839 = vadd.f32 %v1708, %v1801
      %v1840 = vadd.f32 %v1709, %v1806
      %v1841 = vadd.f32 %v1710, %v1811
      %v1842 = vadd.f32 %v1711, %v1816
      %v1843 = vadd.f32 %v1712, %v1821
      %v1844 = vadd.f32 %v1713, %v1826
      %v1845 = vadd.f32 %v1714, %v1831
      %v1846 = vadd.f32 %v1715, %v1836
      %v1847 = vrot.slane %v1535, 1
      %v1848 = vrot.slane %v1536, 1
      %v1849 = vrot.slane %v1537, 1
      %v1850 = vrot.slane %v1538, 1
      %v1851 = vrot.slane %v1539, 1
      %v1852 = vrot.slane %v1540, 1
      %v1853 = vrot.slane %v1541, 1
      %v1861 = vsel %vm661, %v1847, 0.0
      %v1862 = vsel %vm661, %v1848, 0.0
      %v1863 = vsel %vm661, %v1849, 0.0
      %v1864 = vsel %vm661, %v1850, 0.0
      %v1865 = vsel %vm661, %v1851, 0.0
      %v1866 = vsel %vm661, %v1852, 0.0
      %v1867 = vsel %vm661, %v1853, 0.0
      %s1868 = scalar_lea.vmem %s3, 16
      %v1869 = vld [vmem:[%s1868] sm:$0xff]
      %v1870 = vsel %vm1579, %v662, 0
      %v1873 = vsel %vm1579, %v1861, 0
      %v1876 = vsel %vm1579, %v1862, 0
      %v1879 = vsel %vm1579, %v1863, 0
      %v1882 = vsel %vm1579, %v1864, 0
      %v1885 = vsel %vm1579, %v1865, 0
      %v1888 = vsel %vm1579, %v1866, 0
      %v1891 = vsel %vm1579, %v1867, 0
      %1893 = vmatprep.subr.mxu0 0.0
      %1894 = vmatpush1.msra.mxu0 %v1869
      %1895 = vmatprep.subr.mxu0 0.0
      %1896 = vmatpush1.msra.mxu0 0.0
      %1897 = vmatprep.subr.mxu0 0.0
      %1898 = vmatpush1.msra.mxu0 0.0
      %1899 = vmatprep.subr.mxu0 0.0
      %1900 = vmatpush1.msra.mxu0 0.0
      %1901 = vmatprep.subr.mxu0 0.0
      %1902 = vmatpush1.msra.mxu0 0.0
      %1903 = vmatprep.subr.mxu0 0.0
      %1904 = vmatpush1.msra.mxu0 0.0
      %1905 = vmatprep.subr.mxu0 0.0
      %1906 = vmatpush1.msra.mxu0 0.0
      %1907 = vmatprep.subr.mxu0 0.0
      %1908 = vmatpush1.msra.mxu0 0.0
      %1909 = vmatprep.subr.mxu0 0.0
      %1910 = vmatpush1.msra.mxu0 0.0
      %1911 = vmatprep.subr.mxu0 0.0
      %1912 = vmatpush1.msra.mxu0 0.0
      %1913 = vmatprep.subr.mxu0 0.0
      %1914 = vmatpush1.msra.mxu0 0.0
      %1915 = vmatprep.subr.mxu0 0.0
      %1916 = vmatpush1.msra.mxu0 0.0
      %1917 = vmatprep.subr.mxu0 0.0
      %1918 = vmatpush1.msra.mxu0 0.0
      %1919 = vmatprep.subr.mxu0 0.0
      %1920 = vmatpush1.msra.mxu0 0.0
      %1921 = vmatprep.subr.mxu0 0.0
      %1922 = vmatpush1.msra.mxu0 0.0
      %1923 = vmatprep.subr.mxu0 0.0
      %1924 = vmatpush1.msra.mxu0 0.0
      %1925 = vmatprep.subr.mxu0 0.0
      %1926 = vmatpush1.msra.mxu0 0.0
      %1927 = vmatprep.subr.mxu0 0.0
      %1928 = vmatpush1.msra.mxu0 0.0
      %1929 = vmatprep.subr.mxu0 0.0
      %1930 = vmatpush1.msra.mxu0 0.0
      %1931 = vmatprep.subr.mxu0 0.0
      %1932 = vmatpush1.msra.mxu0 0.0
      %1933 = vmatprep.subr.mxu0 0.0
      %1934 = vmatpush1.msra.mxu0 0.0
      %1935 = vmatprep.subr.mxu0 0.0
      %1936 = vmatpush1.msra.mxu0 0.0
      %1937 = vmatprep.subr.mxu0 0.0
      %1938 = vmatpush1.msra.mxu0 0.0
      %1939 = vmatprep.subr.mxu0 0.0
      %1940 = vmatpush1.msra.mxu0 0.0
      %1941 = vmatprep.subr.mxu0 0.0
      %1942 = vmatpush1.msra.mxu0 0.0
      %1943 = vmatprep.subr.mxu0 0.0
      %1944 = vmatpush1.msra.mxu0 0.0
      %1945 = vmatprep.subr.mxu0 0.0
      %1946 = vmatpush1.msra.mxu0 0.0
      %1947 = vmatprep.subr.mxu0 0.0
      %1948 = vmatpush1.msra.mxu0 0.0
      %1949 = vmatprep.subr.mxu0 0.0
      %1950 = vmatpush1.msra.mxu0 0.0
      %1951 = vmatprep.subr.mxu0 0.0
      %1952 = vmatpush1.msra.mxu0 0.0
      %1953 = vmatprep.subr.mxu0 0.0
      %1954 = vmatpush1.msra.mxu0 0.0
      %1955 = vmatprep.subr.mxu0 0.0
      %1956 = vmatpush1.msra.mxu0 0.0
      %1957 = vmatprep.mubr.f32.mxu0 0.0
      %1958 = vmatmul.mubr.f32.gmra.mrb[0].mxu0 %v1870
      %v1959 = vpop.f32.mrb[0].mxu0
      %v1960 = vadd.f32 0.0, %v1959
      %v1961 = vpop.f32.mrb[0].mxu0
      %1962 = vmatprep.mubr.f32.mxu0 0.0
      %1963 = vmatmul.mubr.f32.gmra.mrb[0].mxu0 %v1873
      %v1964 = vpop.f32.mrb[0].mxu0
      %v1965 = vadd.f32 0.0, %v1964
      %v1966 = vpop.f32.mrb[0].mxu0
      %1967 = vmatprep.mubr.f32.mxu0 0.0
      %1968 = vmatmul.mubr.f32.gmra.mrb[0].mxu0 %v1876
      %v1969 = vpop.f32.mrb[0].mxu0
      %v1970 = vadd.f32 0.0, %v1969
      %v1971 = vpop.f32.mrb[0].mxu0
      %1972 = vmatprep.mubr.f32.mxu0 0.0
      %1973 = vmatmul.mubr.f32.gmra.mrb[0].mxu0 %v1879
      %v1974 = vpop.f32.mrb[0].mxu0
      %v1975 = vadd.f32 0.0, %v1974
      %v1976 = vpop.f32.mrb[0].mxu0
      %1977 = vmatprep.mubr.f32.mxu0 0.0
      %1978 = vmatmul.mubr.f32.gmra.mrb[0].mxu0 %v1882
      %v1979 = vpop.f32.mrb[0].mxu0
      %v1980 = vadd.f32 0.0, %v1979
      %v1981 = vpop.f32.mrb[0].mxu0
      %1982 = vmatprep.mubr.f32.mxu0 0.0
      %1983 = vmatmul.mubr.f32.gmra.mrb[0].mxu0 %v1885
      %v1984 = vpop.f32.mrb[0].mxu0
      %v1985 = vadd.f32 0.0, %v1984
      %v1986 = vpop.f32.mrb[0].mxu0
      %1987 = vmatprep.mubr.f32.mxu0 0.0
      %1988 = vmatmul.mubr.f32.gmra.mrb[0].mxu0 %v1888
      %v1989 = vpop.f32.mrb[0].mxu0
      %v1990 = vadd.f32 0.0, %v1989
      %v1991 = vpop.f32.mrb[0].mxu0
      %1992 = vmatprep.mubr.f32.mxu0 0.0
      %1993 = vmatmul.mubr.f32.gmra.mrb[0].mxu0 %v1891
      %v1994 = vpop.f32.mrb[0].mxu0
      %v1995 = vadd.f32 0.0, %v1994
      %v1996 = vpop.f32.mrb[0].mxu0
      %1997 = vdwg.mxu0
      %v1998 = vadd.f32 %v1839, %v1960
      %v1999 = vadd.f32 %v1840, %v1965
      %v2000 = vadd.f32 %v1841, %v1970
      %v2001 = vadd.f32 %v1842, %v1975
      %v2002 = vadd.f32 %v1843, %v1980
      %v2003 = vadd.f32 %v1844, %v1985
      %v2004 = vadd.f32 %v1845, %v1990
      %v2005 = vadd.f32 %v1846, %v1995
      %v2007 = vrot.slane %v1542, 7
      %v2009 = vsel %vm359, 0.0, %v2007
      %s2010 = scalar_lea.vmem %s3, 24
      %v2011 = vld [vmem:[%s2010] sm:$0xff]
      %v2013 = vsel %vm1579, %v2009, 0
      %2015 = vmatprep.subr.mxu0 0.0
      %2016 = vmatpush1.msra.mxu0 %v2011
      %2017 = vmatprep.subr.mxu0 0.0
      %2018 = vmatpush1.msra.mxu0 0.0
      %2019 = vmatprep.subr.mxu0 0.0
      %2020 = vmatpush1.msra.mxu0 0.0
      %2021 = vmatprep.subr.mxu0 0.0
      %2022 = vmatpush1.msra.mxu0 0.0
      %2023 = vmatprep.subr.mxu0 0.0
      %2024 = vmatpush1.msra.mxu0 0.0
      %2025 = vmatprep.subr.mxu0 0.0
      %2026 = vmatpush1.msra.mxu0 0.0
      %2027 = vmatprep.subr.mxu0 0.0
      %2028 = vmatpush1.msra.mxu0 0.0
      %2029 = vmatprep.subr.mxu0 0.0
      %2030 = vmatpush1.msra.mxu0 0.0
      %2031 = vmatprep.subr.mxu0 0.0
      %2032 = vmatpush1.msra.mxu0 0.0
      %2033 = vmatprep.subr.mxu0 0.0
      %2034 = vmatpush1.msra.mxu0 0.0
      %2035 = vmatprep.subr.mxu0 0.0
      %2036 = vmatpush1.msra.mxu0 0.0
      %2037 = vmatprep.subr.mxu0 0.0
      %2038 = vmatpush1.msra.mxu0 0.0
      %2039 = vmatprep.subr.mxu0 0.0
      %2040 = vmatpush1.msra.mxu0 0.0
      %2041 = vmatprep.subr.mxu0 0.0
      %2042 = vmatpush1.msra.mxu0 0.0
      %2043 = vmatprep.subr.mxu0 0.0
      %2044 = vmatpush1.msra.mxu0 0.0
      %2045 = vmatprep.subr.mxu0 0.0
      %2046 = vmatpush1.msra.mxu0 0.0
      %2047 = vmatprep.subr.mxu0 0.0
      %2048 = vmatpush1.msra.mxu0 0.0
      %2049 = vmatprep.subr.mxu0 0.0
      %2050 = vmatpush1.msra.mxu0 0.0
      %2051 = vmatprep.subr.mxu0 0.0
      %2052 = vmatpush1.msra.mxu0 0.0
      %2053 = vmatprep.subr.mxu0 0.0
      %2054 = vmatpush1.msra.mxu0 0.0
      %2055 = vmatprep.subr.mxu0 0.0
      %2056 = vmatpush1.msra.mxu0 0.0
      %2057 = vmatprep.subr.mxu0 0.0
      %2058 = vmatpush1.msra.mxu0 0.0
      %2059 = vmatprep.subr.mxu0 0.0
      %2060 = vmatpush1.msra.mxu0 0.0
      %2061 = vmatprep.subr.mxu0 0.0
      %2062 = vmatpush1.msra.mxu0 0.0
      %2063 = vmatprep.subr.mxu0 0.0
      %2064 = vmatpush1.msra.mxu0 0.0
      %2065 = vmatprep.subr.mxu0 0.0
      %2066 = vmatpush1.msra.mxu0 0.0
      %2067 = vmatprep.subr.mxu0 0.0
      %2068 = vmatpush1.msra.mxu0 0.0
      %2069 = vmatprep.subr.mxu0 0.0
      %2070 = vmatpush1.msra.mxu0 0.0
      %2071 = vmatprep.subr.mxu0 0.0
      %2072 = vmatpush1.msra.mxu0 0.0
      %2073 = vmatprep.subr.mxu0 0.0
      %2074 = vmatpush1.msra.mxu0 0.0
      %2075 = vmatprep.subr.mxu0 0.0
      %2076 = vmatpush1.msra.mxu0 0.0
      %2077 = vmatprep.subr.mxu0 0.0
      %2078 = vmatpush1.msra.mxu0 0.0
      %2079 = vmatprep.mubr.f32.mxu0 0.0
      %2080 = vmatmul.mubr.f32.gmra.mrb[0].mxu0 %v1583
      %v2081 = vpop.f32.mrb[0].mxu0
      %v2082 = vadd.f32 0.0, %v2081
      %v2083 = vpop.f32.mrb[0].mxu0
      %2084 = vmatprep.mubr.f32.mxu0 0.0
      %2085 = vmatmul.mubr.f32.gmra.mrb[0].mxu0 %v1586
      %v2086 = vpop.f32.mrb[0].mxu0
      %v2087 = vadd.f32 0.0, %v2086
      %v2088 = vpop.f32.mrb[0].mxu0
      %2089 = vmatprep.mubr.f32.mxu0 0.0
      %2090 = vmatmul.mubr.f32.gmra.mrb[0].mxu0 %v1589
      %v2091 = vpop.f32.mrb[0].mxu0
      %v2092 = vadd.f32 0.0, %v2091
      %v2093 = vpop.f32.mrb[0].mxu0
      %2094 = vmatprep.mubr.f32.mxu0 0.0
      %2095 = vmatmul.mubr.f32.gmra.mrb[0].mxu0 %v1592
      %v2096 = vpop.f32.mrb[0].mxu0
      %v2097 = vadd.f32 0.0, %v2096
      %v2098 = vpop.f32.mrb[0].mxu0
      %2099 = vmatprep.mubr.f32.mxu0 0.0
      %2100 = vmatmul.mubr.f32.gmra.mrb[0].mxu0 %v1595
      %v2101 = vpop.f32.mrb[0].mxu0
      %v2102 = vadd.f32 0.0, %v2101
      %v2103 = vpop.f32.mrb[0].mxu0
      %2104 = vmatprep.mubr.f32.mxu0 0.0
      %2105 = vmatmul.mubr.f32.gmra.mrb[0].mxu0 %v1598
      %v2106 = vpop.f32.mrb[0].mxu0
      %v2107 = vadd.f32 0.0, %v2106
      %v2108 = vpop.f32.mrb[0].mxu0
      %2109 = vmatprep.mubr.f32.mxu0 0.0
      %2110 = vmatmul.mubr.f32.gmra.mrb[0].mxu0 %v1601
      %v2111 = vpop.f32.mrb[0].mxu0
      %v2112 = vadd.f32 0.0, %v2111
      %v2113 = vpop.f32.mrb[0].mxu0
      %2114 = vmatprep.mubr.f32.mxu0 0.0
      %2115 = vmatmul.mubr.f32.gmra.mrb[0].mxu0 %v2013
      %v2116 = vpop.f32.mrb[0].mxu0
      %v2117 = vadd.f32 0.0, %v2116
      %v2118 = vpop.f32.mrb[0].mxu0
      %2119 = vdwg.mxu0
      %v2120 = vadd.f32 %v1998, %v2082
      %v2121 = vadd.f32 %v1999, %v2087
      %v2122 = vadd.f32 %v2000, %v2092
      %v2123 = vadd.f32 %v2001, %v2097
      %v2124 = vadd.f32 %v2002, %v2102
      %v2125 = vadd.f32 %v2003, %v2107
      %v2126 = vadd.f32 %v2004, %v2112
      %v2127 = vadd.f32 %v2005, %v2117
      %s2128 = scalar_lea.vmem %s3, 32
      %v2129 = vld [vmem:[%s2128] sm:$0xff]
      %v2130 = vsel %vm1579, %v1542, 0
      %2132 = vmatprep.subr.mxu0 0.0
      %2133 = vmatpush1.msra.mxu0 %v2129
      %2134 = vmatprep.subr.mxu0 0.0
      %2135 = vmatpush1.msra.mxu0 0.0
      %2136 = vmatprep.subr.mxu0 0.0
      %2137 = vmatpush1.msra.mxu0 0.0
      %2138 = vmatprep.subr.mxu0 0.0
      %2139 = vmatpush1.msra.mxu0 0.0
      %2140 = vmatprep.subr.mxu0 0.0
      %2141 = vmatpush1.msra.mxu0 0.0
      %2142 = vmatprep.subr.mxu0 0.0
      %2143 = vmatpush1.msra.mxu0 0.0
      %2144 = vmatprep.subr.mxu0 0.0
      %2145 = vmatpush1.msra.mxu0 0.0
      %2146 = vmatprep.subr.mxu0 0.0
      %2147 = vmatpush1.msra.mxu0 0.0
      %2148 = vmatprep.subr.mxu0 0.0
      %2149 = vmatpush1.msra.mxu0 0.0
      %2150 = vmatprep.subr.mxu0 0.0
      %2151 = vmatpush1.msra.mxu0 0.0
      %2152 = vmatprep.subr.mxu0 0.0
      %2153 = vmatpush1.msra.mxu0 0.0
      %2154 = vmatprep.subr.mxu0 0.0
      %2155 = vmatpush1.msra.mxu0 0.0
      %2156 = vmatprep.subr.mxu0 0.0
      %2157 = vmatpush1.msra.mxu0 0.0
      %2158 = vmatprep.subr.mxu0 0.0
      %2159 = vmatpush1.msra.mxu0 0.0
      %2160 = vmatprep.subr.mxu0 0.0
      %2161 = vmatpush1.msra.mxu0 0.0
      %2162 = vmatprep.subr.mxu0 0.0
      %2163 = vmatpush1.msra.mxu0 0.0
      %2164 = vmatprep.subr.mxu0 0.0
      %2165 = vmatpush1.msra.mxu0 0.0
      %2166 = vmatprep.subr.mxu0 0.0
      %2167 = vmatpush1.msra.mxu0 0.0
      %2168 = vmatprep.subr.mxu0 0.0
      %2169 = vmatpush1.msra.mxu0 0.0
      %2170 = vmatprep.subr.mxu0 0.0
      %2171 = vmatpush1.msra.mxu0 0.0
      %2172 = vmatprep.subr.mxu0 0.0
      %2173 = vmatpush1.msra.mxu0 0.0
      %2174 = vmatprep.subr.mxu0 0.0
      %2175 = vmatpush1.msra.mxu0 0.0
      %2176 = vmatprep.subr.mxu0 0.0
      %2177 = vmatpush1.msra.mxu0 0.0
      %2178 = vmatprep.subr.mxu0 0.0
      %2179 = vmatpush1.msra.mxu0 0.0
      %2180 = vmatprep.subr.mxu0 0.0
      %2181 = vmatpush1.msra.mxu0 0.0
      %2182 = vmatprep.subr.mxu0 0.0
      %2183 = vmatpush1.msra.mxu0 0.0
      %2184 = vmatprep.subr.mxu0 0.0
      %2185 = vmatpush1.msra.mxu0 0.0
      %2186 = vmatprep.subr.mxu0 0.0
      %2187 = vmatpush1.msra.mxu0 0.0
      %2188 = vmatprep.subr.mxu0 0.0
      %2189 = vmatpush1.msra.mxu0 0.0
      %2190 = vmatprep.subr.mxu0 0.0
      %2191 = vmatpush1.msra.mxu0 0.0
      %2192 = vmatprep.subr.mxu0 0.0
      %2193 = vmatpush1.msra.mxu0 0.0
      %2194 = vmatprep.subr.mxu0 0.0
      %2195 = vmatpush1.msra.mxu0 0.0
      %2196 = vmatprep.mubr.f32.mxu0 0.0
      %2197 = vmatmul.mubr.f32.gmra.mrb[0].mxu0 %v1720
      %v2198 = vpop.f32.mrb[0].mxu0
      %v2199 = vadd.f32 0.0, %v2198
      %v2200 = vpop.f32.mrb[0].mxu0
      %2201 = vmatprep.mubr.f32.mxu0 0.0
      %2202 = vmatmul.mubr.f32.gmra.mrb[0].mxu0 %v1722
      %v2203 = vpop.f32.mrb[0].mxu0
      %v2204 = vadd.f32 0.0, %v2203
      %v2205 = vpop.f32.mrb[0].mxu0
      %2206 = vmatprep.mubr.f32.mxu0 0.0
      %2207 = vmatmul.mubr.f32.gmra.mrb[0].mxu0 %v1724
      %v2208 = vpop.f32.mrb[0].mxu0
      %v2209 = vadd.f32 0.0, %v2208
      %v2210 = vpop.f32.mrb[0].mxu0
      %2211 = vmatprep.mubr.f32.mxu0 0.0
      %2212 = vmatmul.mubr.f32.gmra.mrb[0].mxu0 %v1726
      %v2213 = vpop.f32.mrb[0].mxu0
      %v2214 = vadd.f32 0.0, %v2213
      %v2215 = vpop.f32.mrb[0].mxu0
      %2216 = vmatprep.mubr.f32.mxu0 0.0
      %2217 = vmatmul.mubr.f32.gmra.mrb[0].mxu0 %v1728
      %v2218 = vpop.f32.mrb[0].mxu0
      %v2219 = vadd.f32 0.0, %v2218
      %v2220 = vpop.f32.mrb[0].mxu0
      %2221 = vmatprep.mubr.f32.mxu0 0.0
      %2222 = vmatmul.mubr.f32.gmra.mrb[0].mxu0 %v1730
      %v2223 = vpop.f32.mrb[0].mxu0
      %v2224 = vadd.f32 0.0, %v2223
      %v2225 = vpop.f32.mrb[0].mxu0
      %2226 = vmatprep.mubr.f32.mxu0 0.0
      %2227 = vmatmul.mubr.f32.gmra.mrb[0].mxu0 %v1732
      %v2228 = vpop.f32.mrb[0].mxu0
      %v2229 = vadd.f32 0.0, %v2228
      %v2230 = vpop.f32.mrb[0].mxu0
      %2231 = vmatprep.mubr.f32.mxu0 0.0
      %2232 = vmatmul.mubr.f32.gmra.mrb[0].mxu0 %v2130
      %v2233 = vpop.f32.mrb[0].mxu0
      %v2234 = vadd.f32 0.0, %v2233
      %v2235 = vpop.f32.mrb[0].mxu0
      %2236 = vdwg.mxu0
      %v2237 = vadd.f32 %v2120, %v2199
      %v2238 = vadd.f32 %v2121, %v2204
      %v2239 = vadd.f32 %v2122, %v2209
      %v2240 = vadd.f32 %v2123, %v2214
      %v2241 = vadd.f32 %v2124, %v2219
      %v2242 = vadd.f32 %v2125, %v2224
      %v2243 = vadd.f32 %v2126, %v2229
      %v2244 = vadd.f32 %v2127, %v2234
      %v2245 = vrot.slane %v1542, 1
      %v2247 = vsel %vm661, %v2245, 0.0
      %s2248 = scalar_lea.vmem %s3, 40
      %v2249 = vld [vmem:[%s2248] sm:$0xff]
      %v2251 = vsel %vm1579, %v2247, 0
      %2253 = vmatprep.subr.mxu0 0.0
      %2254 = vmatpush1.msra.mxu0 %v2249
      %2255 = vmatprep.subr.mxu0 0.0
      %2256 = vmatpush1.msra.mxu0 0.0
      %2257 = vmatprep.subr.mxu0 0.0
      %2258 = vmatpush1.msra.mxu0 0.0
      %2259 = vmatprep.subr.mxu0 0.0
      %2260 = vmatpush1.msra.mxu0 0.0
      %2261 = vmatprep.subr.mxu0 0.0
      %2262 = vmatpush1.msra.mxu0 0.0
      %2263 = vmatprep.subr.mxu0 0.0
      %2264 = vmatpush1.msra.mxu0 0.0
      %2265 = vmatprep.subr.mxu0 0.0
      %2266 = vmatpush1.msra.mxu0 0.0
      %2267 = vmatprep.subr.mxu0 0.0
      %2268 = vmatpush1.msra.mxu0 0.0
      %2269 = vmatprep.subr.mxu0 0.0
      %2270 = vmatpush1.msra.mxu0 0.0
      %2271 = vmatprep.subr.mxu0 0.0
      %2272 = vmatpush1.msra.mxu0 0.0
      %2273 = vmatprep.subr.mxu0 0.0
      %2274 = vmatpush1.msra.mxu0 0.0
      %2275 = vmatprep.subr.mxu0 0.0
      %2276 = vmatpush1.msra.mxu0 0.0
      %2277 = vmatprep.subr.mxu0 0.0
      %2278 = vmatpush1.msra.mxu0 0.0
      %2279 = vmatprep.subr.mxu0 0.0
      %2280 = vmatpush1.msra.mxu0 0.0
      %2281 = vmatprep.subr.mxu0 0.0
      %2282 = vmatpush1.msra.mxu0 0.0
      %2283 = vmatprep.subr.mxu0 0.0
      %2284 = vmatpush1.msra.mxu0 0.0
      %2285 = vmatprep.subr.mxu0 0.0
      %2286 = vmatpush1.msra.mxu0 0.0
      %2287 = vmatprep.subr.mxu0 0.0
      %2288 = vmatpush1.msra.mxu0 0.0
      %2289 = vmatprep.subr.mxu0 0.0
      %2290 = vmatpush1.msra.mxu0 0.0
      %2291 = vmatprep.subr.mxu0 0.0
      %2292 = vmatpush1.msra.mxu0 0.0
      %2293 = vmatprep.subr.mxu0 0.0
      %2294 = vmatpush1.msra.mxu0 0.0
      %2295 = vmatprep.subr.mxu0 0.0
      %2296 = vmatpush1.msra.mxu0 0.0
      %2297 = vmatprep.subr.mxu0 0.0
      %2298 = vmatpush1.msra.mxu0 0.0
      %2299 = vmatprep.subr.mxu0 0.0
      %2300 = vmatpush1.msra.mxu0 0.0
      %2301 = vmatprep.subr.mxu0 0.0
      %2302 = vmatpush1.msra.mxu0 0.0
      %2303 = vmatprep.subr.mxu0 0.0
      %2304 = vmatpush1.msra.mxu0 0.0
      %2305 = vmatprep.subr.mxu0 0.0
      %2306 = vmatpush1.msra.mxu0 0.0
      %2307 = vmatprep.subr.mxu0 0.0
      %2308 = vmatpush1.msra.mxu0 0.0
      %2309 = vmatprep.subr.mxu0 0.0
      %2310 = vmatpush1.msra.mxu0 0.0
      %2311 = vmatprep.subr.mxu0 0.0
      %2312 = vmatpush1.msra.mxu0 0.0
      %2313 = vmatprep.subr.mxu0 0.0
      %2314 = vmatpush1.msra.mxu0 0.0
      %2315 = vmatprep.subr.mxu0 0.0
      %2316 = vmatpush1.msra.mxu0 0.0
      %2317 = vmatprep.mubr.f32.mxu0 0.0
      %2318 = vmatmul.mubr.f32.gmra.mrb[0].mxu0 %v1873
      %v2319 = vpop.f32.mrb[0].mxu0
      %v2320 = vadd.f32 0.0, %v2319
      %v2321 = vpop.f32.mrb[0].mxu0
      %2322 = vmatprep.mubr.f32.mxu0 0.0
      %2323 = vmatmul.mubr.f32.gmra.mrb[0].mxu0 %v1876
      %v2324 = vpop.f32.mrb[0].mxu0
      %v2325 = vadd.f32 0.0, %v2324
      %v2326 = vpop.f32.mrb[0].mxu0
      %2327 = vmatprep.mubr.f32.mxu0 0.0
      %2328 = vmatmul.mubr.f32.gmra.mrb[0].mxu0 %v1879
      %v2329 = vpop.f32.mrb[0].mxu0
      %v2330 = vadd.f32 0.0, %v2329
      %v2331 = vpop.f32.mrb[0].mxu0
      %2332 = vmatprep.mubr.f32.mxu0 0.0
      %2333 = vmatmul.mubr.f32.gmra.mrb[0].mxu0 %v1882
      %v2334 = vpop.f32.mrb[0].mxu0
      %v2335 = vadd.f32 0.0, %v2334
      %v2336 = vpop.f32.mrb[0].mxu0
      %2337 = vmatprep.mubr.f32.mxu0 0.0
      %2338 = vmatmul.mubr.f32.gmra.mrb[0].mxu0 %v1885
      %v2339 = vpop.f32.mrb[0].mxu0
      %v2340 = vadd.f32 0.0, %v2339
      %v2341 = vpop.f32.mrb[0].mxu0
      %2342 = vmatprep.mubr.f32.mxu0 0.0
      %2343 = vmatmul.mubr.f32.gmra.mrb[0].mxu0 %v1888
      %v2344 = vpop.f32.mrb[0].mxu0
      %v2345 = vadd.f32 0.0, %v2344
      %v2346 = vpop.f32.mrb[0].mxu0
      %2347 = vmatprep.mubr.f32.mxu0 0.0
      %2348 = vmatmul.mubr.f32.gmra.mrb[0].mxu0 %v1891
      %v2349 = vpop.f32.mrb[0].mxu0
      %v2350 = vadd.f32 0.0, %v2349
      %v2351 = vpop.f32.mrb[0].mxu0
      %2352 = vmatprep.mubr.f32.mxu0 0.0
      %2353 = vmatmul.mubr.f32.gmra.mrb[0].mxu0 %v2251
      %v2354 = vpop.f32.mrb[0].mxu0
      %v2355 = vadd.f32 0.0, %v2354
      %v2356 = vpop.f32.mrb[0].mxu0
      %2357 = vdwg.mxu0
      %v2358 = vadd.f32 %v2237, %v2320
      %v2359 = vadd.f32 %v2238, %v2325
      %v2360 = vadd.f32 %v2239, %v2330
      %v2361 = vadd.f32 %v2240, %v2335
      %v2362 = vadd.f32 %v2241, %v2340
      %v2363 = vadd.f32 %v2242, %v2345
      %v2364 = vadd.f32 %v2243, %v2350
      %v2365 = vadd.f32 %v2244, %v2355
      %s2366 = scalar_lea.vmem %s3, 48
      %v2367 = vld [vmem:[%s2366] sm:$0xff]
      %2368 = vmatprep.subr.mxu0 0.0
      %2369 = vmatpush1.msra.mxu0 %v2367
      %2370 = vmatprep.subr.mxu0 0.0
      %2371 = vmatpush1.msra.mxu0 0.0
      %2372 = vmatprep.subr.mxu0 0.0
      %2373 = vmatpush1.msra.mxu0 0.0
      %2374 = vmatprep.subr.mxu0 0.0
      %2375 = vmatpush1.msra.mxu0 0.0
      %2376 = vmatprep.subr.mxu0 0.0
      %2377 = vmatpush1.msra.mxu0 0.0
      %2378 = vmatprep.subr.mxu0 0.0
      %2379 = vmatpush1.msra.mxu0 0.0
      %2380 = vmatprep.subr.mxu0 0.0
      %2381 = vmatpush1.msra.mxu0 0.0
      %2382 = vmatprep.subr.mxu0 0.0
      %2383 = vmatpush1.msra.mxu0 0.0
      %2384 = vmatprep.subr.mxu0 0.0
      %2385 = vmatpush1.msra.mxu0 0.0
      %2386 = vmatprep.subr.mxu0 0.0
      %2387 = vmatpush1.msra.mxu0 0.0
      %2388 = vmatprep.subr.mxu0 0.0
      %2389 = vmatpush1.msra.mxu0 0.0
      %2390 = vmatprep.subr.mxu0 0.0
      %2391 = vmatpush1.msra.mxu0 0.0
      %2392 = vmatprep.subr.mxu0 0.0
      %2393 = vmatpush1.msra.mxu0 0.0
      %2394 = vmatprep.subr.mxu0 0.0
      %2395 = vmatpush1.msra.mxu0 0.0
      %2396 = vmatprep.subr.mxu0 0.0
      %2397 = vmatpush1.msra.mxu0 0.0
      %2398 = vmatprep.subr.mxu0 0.0
      %2399 = vmatpush1.msra.mxu0 0.0
      %2400 = vmatprep.subr.mxu0 0.0
      %2401 = vmatpush1.msra.mxu0 0.0
      %2402 = vmatprep.subr.mxu0 0.0
      %2403 = vmatpush1.msra.mxu0 0.0
      %2404 = vmatprep.subr.mxu0 0.0
      %2405 = vmatpush1.msra.mxu0 0.0
      %2406 = vmatprep.subr.mxu0 0.0
      %2407 = vmatpush1.msra.mxu0 0.0
      %2408 = vmatprep.subr.mxu0 0.0
      %2409 = vmatpush1.msra.mxu0 0.0
      %2410 = vmatprep.subr.mxu0 0.0
      %2411 = vmatpush1.msra.mxu0 0.0
      %2412 = vmatprep.subr.mxu0 0.0
      %2413 = vmatpush1.msra.mxu0 0.0
      %2414 = vmatprep.subr.mxu0 0.0
      %2415 = vmatpush1.msra.mxu0 0.0
      %2416 = vmatprep.subr.mxu0 0.0
      %2417 = vmatpush1.msra.mxu0 0.0
      %2418 = vmatprep.subr.mxu0 0.0
      %2419 = vmatpush1.msra.mxu0 0.0
      %2420 = vmatprep.subr.mxu0 0.0
      %2421 = vmatpush1.msra.mxu0 0.0
      %2422 = vmatprep.subr.mxu0 0.0
      %2423 = vmatpush1.msra.mxu0 0.0
      %2424 = vmatprep.subr.mxu0 0.0
      %2425 = vmatpush1.msra.mxu0 0.0
      %2426 = vmatprep.subr.mxu0 0.0
      %2427 = vmatpush1.msra.mxu0 0.0
      %2428 = vmatprep.subr.mxu0 0.0
      %2429 = vmatpush1.msra.mxu0 0.0
      %2430 = vmatprep.subr.mxu0 0.0
      %2431 = vmatpush1.msra.mxu0 0.0
      %2432 = vmatprep.mubr.f32.mxu0 0.0
      %2433 = vmatmul.mubr.f32.gmra.mrb[0].mxu0 %v1586
      %v2434 = vpop.f32.mrb[0].mxu0
      %v2435 = vadd.f32 0.0, %v2434
      %v2436 = vpop.f32.mrb[0].mxu0
      %2437 = vmatprep.mubr.f32.mxu0 0.0
      %2438 = vmatmul.mubr.f32.gmra.mrb[0].mxu0 %v1589
      %v2439 = vpop.f32.mrb[0].mxu0
      %v2440 = vadd.f32 0.0, %v2439
      %v2441 = vpop.f32.mrb[0].mxu0
      %2442 = vmatprep.mubr.f32.mxu0 0.0
      %2443 = vmatmul.mubr.f32.gmra.mrb[0].mxu0 %v1592
      %v2444 = vpop.f32.mrb[0].mxu0
      %v2445 = vadd.f32 0.0, %v2444
      %v2446 = vpop.f32.mrb[0].mxu0
      %2447 = vmatprep.mubr.f32.mxu0 0.0
      %2448 = vmatmul.mubr.f32.gmra.mrb[0].mxu0 %v1595
      %v2449 = vpop.f32.mrb[0].mxu0
      %v2450 = vadd.f32 0.0, %v2449
      %v2451 = vpop.f32.mrb[0].mxu0
      %2452 = vmatprep.mubr.f32.mxu0 0.0
      %2453 = vmatmul.mubr.f32.gmra.mrb[0].mxu0 %v1598
      %v2454 = vpop.f32.mrb[0].mxu0
      %v2455 = vadd.f32 0.0, %v2454
      %v2456 = vpop.f32.mrb[0].mxu0
      %2457 = vmatprep.mubr.f32.mxu0 0.0
      %2458 = vmatmul.mubr.f32.gmra.mrb[0].mxu0 %v1601
      %v2459 = vpop.f32.mrb[0].mxu0
      %v2460 = vadd.f32 0.0, %v2459
      %v2461 = vpop.f32.mrb[0].mxu0
      %2462 = vmatprep.mubr.f32.mxu0 0.0
      %2463 = vmatmul.mubr.f32.gmra.mrb[0].mxu0 %v2013
      %v2464 = vpop.f32.mrb[0].mxu0
      %v2465 = vadd.f32 0.0, %v2464
      %v2466 = vpop.f32.mrb[0].mxu0
      %2467 = vmatprep.mubr.f32.mxu0 0.0
      %2468 = vmatmul.mubr.f32.gmra.mrb[0].mxu0 %v1580
      %v2469 = vpop.f32.mrb[0].mxu0
      %v2470 = vadd.f32 0.0, %v2469
      %v2471 = vpop.f32.mrb[0].mxu0
      %2472 = vdwg.mxu0
      %v2473 = vadd.f32 %v2358, %v2435
      %v2474 = vadd.f32 %v2359, %v2440
      %v2475 = vadd.f32 %v2360, %v2445
      %v2476 = vadd.f32 %v2361, %v2450
      %v2477 = vadd.f32 %v2362, %v2455
      %v2478 = vadd.f32 %v2363, %v2460
      %v2479 = vadd.f32 %v2364, %v2465
      %v2480 = vadd.f32 %v2365, %v2470
      %s2481 = scalar_lea.vmem %s3, 56
      %v2482 = vld [vmem:[%s2481] sm:$0xff]
      %2483 = vmatprep.subr.mxu0 0.0
      %2484 = vmatpush1.msra.mxu0 %v2482
      %2485 = vmatprep.subr.mxu0 0.0
      %2486 = vmatpush1.msra.mxu0 0.0
      %2487 = vmatprep.subr.mxu0 0.0
      %2488 = vmatpush1.msra.mxu0 0.0
      %2489 = vmatprep.subr.mxu0 0.0
      %2490 = vmatpush1.msra.mxu0 0.0
      %2491 = vmatprep.subr.mxu0 0.0
      %2492 = vmatpush1.msra.mxu0 0.0
      %2493 = vmatprep.subr.mxu0 0.0
      %2494 = vmatpush1.msra.mxu0 0.0
      %2495 = vmatprep.subr.mxu0 0.0
      %2496 = vmatpush1.msra.mxu0 0.0
      %2497 = vmatprep.subr.mxu0 0.0
      %2498 = vmatpush1.msra.mxu0 0.0
      %2499 = vmatprep.subr.mxu0 0.0
      %2500 = vmatpush1.msra.mxu0 0.0
      %2501 = vmatprep.subr.mxu0 0.0
      %2502 = vmatpush1.msra.mxu0 0.0
      %2503 = vmatprep.subr.mxu0 0.0
      %2504 = vmatpush1.msra.mxu0 0.0
      %2505 = vmatprep.subr.mxu0 0.0
      %2506 = vmatpush1.msra.mxu0 0.0
      %2507 = vmatprep.subr.mxu0 0.0
      %2508 = vmatpush1.msra.mxu0 0.0
      %2509 = vmatprep.subr.mxu0 0.0
      %2510 = vmatpush1.msra.mxu0 0.0
      %2511 = vmatprep.subr.mxu0 0.0
      %2512 = vmatpush1.msra.mxu0 0.0
      %2513 = vmatprep.subr.mxu0 0.0
      %2514 = vmatpush1.msra.mxu0 0.0
      %2515 = vmatprep.subr.mxu0 0.0
      %2516 = vmatpush1.msra.mxu0 0.0
      %2517 = vmatprep.subr.mxu0 0.0
      %2518 = vmatpush1.msra.mxu0 0.0
      %2519 = vmatprep.subr.mxu0 0.0
      %2520 = vmatpush1.msra.mxu0 0.0
      %2521 = vmatprep.subr.mxu0 0.0
      %2522 = vmatpush1.msra.mxu0 0.0
      %2523 = vmatprep.subr.mxu0 0.0
      %2524 = vmatpush1.msra.mxu0 0.0
      %2525 = vmatprep.subr.mxu0 0.0
      %2526 = vmatpush1.msra.mxu0 0.0
      %2527 = vmatprep.subr.mxu0 0.0
      %2528 = vmatpush1.msra.mxu0 0.0
      %2529 = vmatprep.subr.mxu0 0.0
      %2530 = vmatpush1.msra.mxu0 0.0
      %2531 = vmatprep.subr.mxu0 0.0
      %2532 = vmatpush1.msra.mxu0 0.0
      %2533 = vmatprep.subr.mxu0 0.0
      %2534 = vmatpush1.msra.mxu0 0.0
      %2535 = vmatprep.subr.mxu0 0.0
      %2536 = vmatpush1.msra.mxu0 0.0
      %2537 = vmatprep.subr.mxu0 0.0
      %2538 = vmatpush1.msra.mxu0 0.0
      %2539 = vmatprep.subr.mxu0 0.0
      %2540 = vmatpush1.msra.mxu0 0.0
      %2541 = vmatprep.subr.mxu0 0.0
      %2542 = vmatpush1.msra.mxu0 0.0
      %2543 = vmatprep.subr.mxu0 0.0
      %2544 = vmatpush1.msra.mxu0 0.0
      %2545 = vmatprep.subr.mxu0 0.0
      %2546 = vmatpush1.msra.mxu0 0.0
      %2547 = vmatprep.mubr.f32.mxu0 0.0
      %2548 = vmatmul.mubr.f32.gmra.mrb[0].mxu0 %v1722
      %v2549 = vpop.f32.mrb[0].mxu0
      %v2550 = vadd.f32 0.0, %v2549
      %v2551 = vpop.f32.mrb[0].mxu0
      %2552 = vmatprep.mubr.f32.mxu0 0.0
      %2553 = vmatmul.mubr.f32.gmra.mrb[0].mxu0 %v1724
      %v2554 = vpop.f32.mrb[0].mxu0
      %v2555 = vadd.f32 0.0, %v2554
      %v2556 = vpop.f32.mrb[0].mxu0
      %2557 = vmatprep.mubr.f32.mxu0 0.0
      %2558 = vmatmul.mubr.f32.gmra.mrb[0].mxu0 %v1726
      %v2559 = vpop.f32.mrb[0].mxu0
      %v2560 = vadd.f32 0.0, %v2559
      %v2561 = vpop.f32.mrb[0].mxu0
      %2562 = vmatprep.mubr.f32.mxu0 0.0
      %2563 = vmatmul.mubr.f32.gmra.mrb[0].mxu0 %v1728
      %v2564 = vpop.f32.mrb[0].mxu0
      %v2565 = vadd.f32 0.0, %v2564
      %v2566 = vpop.f32.mrb[0].mxu0
      %2567 = vmatprep.mubr.f32.mxu0 0.0
      %2568 = vmatmul.mubr.f32.gmra.mrb[0].mxu0 %v1730
      %v2569 = vpop.f32.mrb[0].mxu0
      %v2570 = vadd.f32 0.0, %v2569
      %v2571 = vpop.f32.mrb[0].mxu0
      %2572 = vmatprep.mubr.f32.mxu0 0.0
      %2573 = vmatmul.mubr.f32.gmra.mrb[0].mxu0 %v1732
      %v2574 = vpop.f32.mrb[0].mxu0
      %v2575 = vadd.f32 0.0, %v2574
      %v2576 = vpop.f32.mrb[0].mxu0
      %2577 = vmatprep.mubr.f32.mxu0 0.0
      %2578 = vmatmul.mubr.f32.gmra.mrb[0].mxu0 %v2130
      %v2579 = vpop.f32.mrb[0].mxu0
      %v2580 = vadd.f32 0.0, %v2579
      %v2581 = vpop.f32.mrb[0].mxu0
      %2582 = vmatprep.mubr.f32.mxu0 0.0
      %2583 = vmatmul.mubr.f32.gmra.mrb[0].mxu0 %v1718
      %v2584 = vpop.f32.mrb[0].mxu0
      %v2585 = vadd.f32 0.0, %v2584
      %v2586 = vpop.f32.mrb[0].mxu0
      %2587 = vdwg.mxu0
      %v2588 = vadd.f32 %v2473, %v2550
      %v2589 = vadd.f32 %v2474, %v2555
      %v2590 = vadd.f32 %v2475, %v2560
      %v2591 = vadd.f32 %v2476, %v2565
      %v2592 = vadd.f32 %v2477, %v2570
      %v2593 = vadd.f32 %v2478, %v2575
      %v2594 = vadd.f32 %v2479, %v2580
      %v2595 = vadd.f32 %v2480, %v2585
      %s2596 = scalar_lea.vmem %s3, 64
      %v2597 = vld [vmem:[%s2596] sm:$0xff]
      %2598 = vmatprep.subr.mxu0 0.0
      %2599 = vmatpush1.msra.mxu0 %v2597
      %2600 = vmatprep.subr.mxu0 0.0
      %2601 = vmatpush1.msra.mxu0 0.0
      %2602 = vmatprep.subr.mxu0 0.0
      %2603 = vmatpush1.msra.mxu0 0.0
      %2604 = vmatprep.subr.mxu0 0.0
      %2605 = vmatpush1.msra.mxu0 0.0
      %2606 = vmatprep.subr.mxu0 0.0
      %2607 = vmatpush1.msra.mxu0 0.0
      %2608 = vmatprep.subr.mxu0 0.0
      %2609 = vmatpush1.msra.mxu0 0.0
      %2610 = vmatprep.subr.mxu0 0.0
      %2611 = vmatpush1.msra.mxu0 0.0
      %2612 = vmatprep.subr.mxu0 0.0
      %2613 = vmatpush1.msra.mxu0 0.0
      %2614 = vmatprep.subr.mxu0 0.0
      %2615 = vmatpush1.msra.mxu0 0.0
      %2616 = vmatprep.subr.mxu0 0.0
      %2617 = vmatpush1.msra.mxu0 0.0
      %2618 = vmatprep.subr.mxu0 0.0
      %2619 = vmatpush1.msra.mxu0 0.0
      %2620 = vmatprep.subr.mxu0 0.0
      %2621 = vmatpush1.msra.mxu0 0.0
      %2622 = vmatprep.subr.mxu0 0.0
      %2623 = vmatpush1.msra.mxu0 0.0
      %2624 = vmatprep.subr.mxu0 0.0
      %2625 = vmatpush1.msra.mxu0 0.0
      %2626 = vmatprep.subr.mxu0 0.0
      %2627 = vmatpush1.msra.mxu0 0.0
      %2628 = vmatprep.subr.mxu0 0.0
      %2629 = vmatpush1.msra.mxu0 0.0
      %2630 = vmatprep.subr.mxu0 0.0
      %2631 = vmatpush1.msra.mxu0 0.0
      %2632 = vmatprep.subr.mxu0 0.0
      %2633 = vmatpush1.msra.mxu0 0.0
      %2634 = vmatprep.subr.mxu0 0.0
      %2635 = vmatpush1.msra.mxu0 0.0
      %2636 = vmatprep.subr.mxu0 0.0
      %2637 = vmatpush1.msra.mxu0 0.0
      %2638 = vmatprep.subr.mxu0 0.0
      %2639 = vmatpush1.msra.mxu0 0.0
      %2640 = vmatprep.subr.mxu0 0.0
      %2641 = vmatpush1.msra.mxu0 0.0
      %2642 = vmatprep.subr.mxu0 0.0
      %2643 = vmatpush1.msra.mxu0 0.0
      %2644 = vmatprep.subr.mxu0 0.0
      %2645 = vmatpush1.msra.mxu0 0.0
      %2646 = vmatprep.subr.mxu0 0.0
      %2647 = vmatpush1.msra.mxu0 0.0
      %2648 = vmatprep.subr.mxu0 0.0
      %2649 = vmatpush1.msra.mxu0 0.0
      %2650 = vmatprep.subr.mxu0 0.0
      %2651 = vmatpush1.msra.mxu0 0.0
      %2652 = vmatprep.subr.mxu0 0.0
      %2653 = vmatpush1.msra.mxu0 0.0
      %2654 = vmatprep.subr.mxu0 0.0
      %2655 = vmatpush1.msra.mxu0 0.0
      %2656 = vmatprep.subr.mxu0 0.0
      %2657 = vmatpush1.msra.mxu0 0.0
      %2658 = vmatprep.subr.mxu0 0.0
      %2659 = vmatpush1.msra.mxu0 0.0
      %2660 = vmatprep.subr.mxu0 0.0
      %2661 = vmatpush1.msra.mxu0 0.0
      %2662 = vmatprep.mubr.f32.mxu0 0.0
      %2663 = vmatmul.mubr.f32.gmra.mrb[0].mxu0 %v1876
      %v2664 = vpop.f32.mrb[0].mxu0
      %v2665 = vadd.f32 0.0, %v2664
      %v2666 = vpop.f32.mrb[0].mxu0
      %2667 = vmatprep.mubr.f32.mxu0 0.0
      %2668 = vmatmul.mubr.f32.gmra.mrb[0].mxu0 %v1879
      %v2669 = vpop.f32.mrb[0].mxu0
      %v2670 = vadd.f32 0.0, %v2669
      %v2671 = vpop.f32.mrb[0].mxu0
      %2672 = vmatprep.mubr.f32.mxu0 0.0
      %2673 = vmatmul.mubr.f32.gmra.mrb[0].mxu0 %v1882
      %v2674 = vpop.f32.mrb[0].mxu0
      %v2675 = vadd.f32 0.0, %v2674
      %v2676 = vpop.f32.mrb[0].mxu0
      %2677 = vmatprep.mubr.f32.mxu0 0.0
      %2678 = vmatmul.mubr.f32.gmra.mrb[0].mxu0 %v1885
      %v2679 = vpop.f32.mrb[0].mxu0
      %v2680 = vadd.f32 0.0, %v2679
      %v2681 = vpop.f32.mrb[0].mxu0
      %2682 = vmatprep.mubr.f32.mxu0 0.0
      %2683 = vmatmul.mubr.f32.gmra.mrb[0].mxu0 %v1888
      %v2684 = vpop.f32.mrb[0].mxu0
      %v2685 = vadd.f32 0.0, %v2684
      %v2686 = vpop.f32.mrb[0].mxu0
      %2687 = vmatprep.mubr.f32.mxu0 0.0
      %2688 = vmatmul.mubr.f32.gmra.mrb[0].mxu0 %v1891
      %v2689 = vpop.f32.mrb[0].mxu0
      %v2690 = vadd.f32 0.0, %v2689
      %v2691 = vpop.f32.mrb[0].mxu0
      %2692 = vmatprep.mubr.f32.mxu0 0.0
      %2693 = vmatmul.mubr.f32.gmra.mrb[0].mxu0 %v2251
      %v2694 = vpop.f32.mrb[0].mxu0
      %v2695 = vadd.f32 0.0, %v2694
      %v2696 = vpop.f32.mrb[0].mxu0
      %2697 = vmatprep.mubr.f32.mxu0 0.0
      %2698 = vmatmul.mubr.f32.gmra.mrb[0].mxu0 %v1870
      %v2699 = vpop.f32.mrb[0].mxu0
      %v2700 = vadd.f32 0.0, %v2699
      %v2701 = vpop.f32.mrb[0].mxu0
      %2702 = vdwg.mxu0
      %v2703 = vadd.f32 %v2588, %v2665
      %v2704 = vadd.f32 %v2589, %v2670
      %v2705 = vadd.f32 %v2590, %v2675
      %v2706 = vadd.f32 %v2591, %v2680
      %v2707 = vadd.f32 %v2592, %v2685
      %v2708 = vadd.f32 %v2593, %v2690
      %v2709 = vadd.f32 %v2594, %v2695
      %v2710 = vadd.f32 %v2595, %v2700
      %v2711 = vmax.f32 %v2703, 0.0
      %v2712 = vmax.f32 %v2704, 0.0
      %v2713 = vmax.f32 %v2705, 0.0
      %v2714 = vmax.f32 %v2706, 0.0
      %v2715 = vmax.f32 %v2707, 0.0
      %v2716 = vmax.f32 %v2708, 0.0
      %v2717 = vmax.f32 %v2709, 0.0
      %v2718 = vmax.f32 %v2710, 0.0
      %2719 = vst.msk [vmem:[%s271] sm:$0xff] %vm1579, %v2711
      %2720 = vst.msk [vmem:[%s271 + $0x8] sm:$0xff] %vm1579, %v2712
      %2721 = vst.msk [vmem:[%s271 + $0x10] sm:$0xff] %vm1579, %v2713
      %2722 = vst.msk [vmem:[%s271 + $0x18] sm:$0xff] %vm1579, %v2714
      %2723 = vst.msk [vmem:[%s271 + $0x20] sm:$0xff] %vm1579, %v2715
      %2724 = vst.msk [vmem:[%s271 + $0x28] sm:$0xff] %vm1579, %v2716
      %2725 = vst.msk [vmem:[%s271 + $0x30] sm:$0xff] %vm1579, %v2717
      %2726 = vst.msk [vmem:[%s271 + $0x38] sm:$0xff] %vm1579, %v2718
      %p2727 = scmp.lt.s32.totalorder %s17, 1
      %s2728 = scalar_select %p2727, %s17, 1
      %s2729 = smul.addr %s2728, 8
      %s2730 = smul.addr %s2729, 8
      %s2731 = scalar_lea.vmem %s6, %s2730
      // Predicated region
      $region45: #{down_forward.1} parent=43 // pred_check
        %p2732 = pneg %p171
      $region46: #{down_forward.1} parent=43 // pred_check_branch
        %2734 = sbr.rel (%p2732) target = $region48
      $region47: #{down_forward.1} parent=43 // pred_region
        _
      $region48: #{down_forward.1} parent=43 // pred_fallthru
        _
    $region44: #{down_forward.1} parent=5 // pred_fallthru
      _
    %p2735 = scmp.le.s32.totalorder 2, %s12
    // Predicated region
    $region49: #{down_forward.1} parent=5 // pred_check
      %p2736 = pneg %p2735
    $region50: #{down_forward.1} parent=5 // pred_check_branch
      %2738 = sbr.rel (%p2736) target = $region52
    $region51: #{down_forward.1} parent=5 // pred_region
      %s2739 = ssub.s32 %s12, 2
      // Predicated region
      $region53: #{down_forward.1} parent=51 // pred_check
        %p2740 = pneg %p177
      $region54: #{down_forward.1} parent=51 // pred_check_branch
        %2742 = sbr.rel (%p2740) target = $region56
      $region55: #{down_forward.1} parent=51 // pred_region
        %p2743 = scmp.lt.s32.totalorder %s18, 1
        %s2744 = scalar_select %p2743, %s18, 1
        %s2745 = smul.addr %s2744, 8
        %s2746 = smul.addr %s2745, 8
        %s2747 = scalar_lea.vmem %s6, %s2746
      $region56: #{down_forward.1} parent=51 // pred_fallthru
        _
    $region52: #{down_forward.1} parent=5 // pred_fallthru
      _
  $region6: #{down_forward.1} parent=0 // loop_footer
    %s16 = sadd.s32 1, %s12
  $region7: #{down_forward.1} parent=0 // loop_footer_branch
    %11 = sbr.rel target = $region3
  $region8: #{down_forward.1} parent=0 // loop_exit
    _

</llo_original>
